<compile_context>
chip_gen: v5e
topology: v5e:2x2
jax: 0.10.0
libtpu: 0.0.40
codegen_flags: <defaults>
</compile_context>

<pallas_src>
import jax
import jax.numpy as jnp
from jax.experimental import pallas as pl
from jax.experimental.pallas import tpu as pltpu


def _round_up(x, m):
    return (x + m - 1) // m * m


# ----------------------------------------------------------------------------
# Kernel 1: fused (conv-as-matmul over im2col patches) + 2x2 maxpool + bias + ReLU
#   Four patch matrices (one per pool position) share one resident weight.
#   pool(relu(conv+b)) == relu(max_p(conv_p) + b)  (relu monotone, bias shared).
# ----------------------------------------------------------------------------
def _conv_pool_kernel(p0_ref, p1_ref, p2_ref, p3_ref, w_ref, b_ref, o_ref):
    w = w_ref[...]
    acc = jnp.dot(p0_ref[...], w, preferred_element_type=jnp.float32)
    acc = jnp.maximum(acc, jnp.dot(p1_ref[...], w, preferred_element_type=jnp.float32))
    acc = jnp.maximum(acc, jnp.dot(p2_ref[...], w, preferred_element_type=jnp.float32))
    acc = jnp.maximum(acc, jnp.dot(p3_ref[...], w, preferred_element_type=jnp.float32))
    acc = jnp.maximum(acc + b_ref[...], 0.0)
    o_ref[...] = acc.astype(o_ref.dtype)


def conv3x3_relu_pool(x, w, b, *, block_m=128, out_dtype=jnp.bfloat16):
    """x: (B,H,W,C) NHWC. w: (9*C, Cout), rows ordered (kh, kw, cin). b: (Cout,).
    Returns maxpool2x2(relu(conv3x3_pad1(x) + b)) as (B, H//2, W//2, Cout)."""
    B, H, W, C = x.shape
    K, Cout = w.shape
    assert K == 9 * C and H % 2 == 0 and W % 2 == 0
    Ho, Wo = H // 2, W // 2
    M = B * Ho * Wo

    # One patch matrix per pool position (XLA glue; bf16 to halve HBM bytes).
    xp = jnp.pad(x, ((0, 0), (1, 1), (1, 1), (0, 0)))
    patches = []
    for ph in range(2):
        for pw in range(2):
            cols = [xp[:, ph + dh:ph + dh + H:2, pw + dw:pw + dw + W:2, :]
                    for dh in range(3) for dw in range(3)]
            p = jnp.stack(cols, axis=3).reshape(M, K).astype(jnp.bfloat16)
            patches.append(p)

    tm = min(block_m, _round_up(M, 8))
    m_pad = _round_up(M, tm)
    if m_pad != M:
        patches = [jnp.pad(p, ((0, m_pad - M), (0, 0))) for p in patches]

    b2 = b.reshape(1, Cout).astype(jnp.float32)

    out = pl.pallas_call(
        _conv_pool_kernel,
        out_shape=jax.ShapeDtypeStruct((m_pad, Cout), out_dtype),
        grid=(m_pad // tm,),
        in_specs=[pl.BlockSpec((tm, K), lambda i: (i, 0))] * 4
        + [pl.BlockSpec((K, Cout), lambda i: (0, 0)),   # weight: resident
           pl.BlockSpec((1, Cout), lambda i: (0, 0))],  # bias:   resident
        out_specs=pl.BlockSpec((tm, Cout), lambda i: (i, 0)),
        compiler_params=pltpu.CompilerParams(dimension_semantics=("parallel",)),
    )(*patches, w.astype(jnp.bfloat16), b2)
    return out[:M].reshape(B, Ho, Wo, Cout)


# ----------------------------------------------------------------------------
# Kernel 2: fused fc1 + ReLU + fc2 (hidden activation never leaves VMEM)
# ----------------------------------------------------------------------------
def _mlp_kernel(x_ref, w1_ref, b1_ref, w2_ref, b2_ref, o_ref):
    h = jnp.dot(x_ref[...], w1_ref[...], preferred_element_type=jnp.float32)
    h = jnp.maximum(h + b1_ref[...], 0.0)
    out = jnp.dot(h.astype(w2_ref.dtype), w2_ref[...],
                  preferred_element_type=jnp.float32)
    o_ref[...] = (out + b2_ref[...]).astype(o_ref.dtype)


def mlp_head(x, w1, b1, w2, b2, *, block_b=128):
    Bn, K1 = x.shape
    _, N1 = w1.shape
    _, N2 = w2.shape
    tb = min(block_b, _round_up(Bn, 8))
    b_pad = _round_up(Bn, tb)
    xb = x.astype(jnp.bfloat16)
    if b_pad != Bn:
        xb = jnp.pad(xb, ((0, b_pad - Bn), (0, 0)))

    out = pl.pallas_call(
        _mlp_kernel,
        out_shape=jax.ShapeDtypeStruct((b_pad, N2), jnp.float32),
        grid=(b_pad // tb,),
        in_specs=[pl.BlockSpec((tb, K1), lambda i: (i, 0)),
                  pl.BlockSpec((K1, N1), lambda i: (0, 0)),
                  pl.BlockSpec((1, N1), lambda i: (0, 0)),
                  pl.BlockSpec((N1, N2), lambda i: (0, 0)),
                  pl.BlockSpec((1, N2), lambda i: (0, 0))],
        out_specs=pl.BlockSpec((tb, N2), lambda i: (i, 0)),
        compiler_params=pltpu.CompilerParams(dimension_semantics=("parallel",)),
    )(xb, w1.astype(jnp.bfloat16), b1.reshape(1, N1).astype(jnp.float32),
      w2.astype(jnp.bfloat16), b2.reshape(1, N2).astype(jnp.float32))
    return out[:Bn]


# ----------------------------------------------------------------------------
# Parameters (stored PyTorch-equivalent) + one-time kernel-layout prep
# ----------------------------------------------------------------------------
def init_params(key):
    ks = jax.random.split(key, 8)
    scale = 0.05
    return {
        # conv weights in im2col layout (kh*kw*cin, cout); fc weights (in, out).
        "w1": scale * jax.random.normal(ks[0], (9 * 1, 32), jnp.float32),
        "b1": scale * jax.random.normal(ks[1], (32,), jnp.float32),
        "w2": scale * jax.random.normal(ks[2], (9 * 32, 64), jnp.float32),
        "b2": scale * jax.random.normal(ks[3], (64,), jnp.float32),
        # fc1 rows are in PyTorch NCHW-flatten order: row = c*49 + i*7 + j
        "wf1": scale * jax.random.normal(ks[4], (64 * 7 * 7, 128), jnp.float32),
        "bf1": scale * jax.random.normal(ks[5], (128,), jnp.float32),
        "wf2": scale * jax.random.normal(ks[6], (128, 10), jnp.float32),
        "bf2": scale * jax.random.normal(ks[7], (10,), jnp.float32),
    }


def prepare_params(params):
    """One-time: permute fc1 rows to NHWC flatten order + cast matmul weights."""
    p = jnp.arange(64 * 7 * 7)
    i, j, c = p // (7 * 64), (p // 64) % 7, p % 64
    torch_row = c * 49 + i * 7 + j          # NHWC position p <- NCHW row
    wf1_nhwc = params["wf1"][torch_row, :]
    return {
        "w1": params["w1"], "b1": params["b1"],
        "w2": params["w2"], "b2": params["b2"],
        "wf1": wf1_nhwc, "bf1": params["bf1"],
        "wf2": params["wf2"], "bf2": params["bf2"],
    }


@jax.jit
def simple_cnn_forward(x_nchw, kp):
    B = x_nchw.shape[0]
    x = jnp.transpose(x_nchw, (0, 2, 3, 1)).astype(jnp.bfloat16)     # NHWC
    y = conv3x3_relu_pool(x, kp["w1"], kp["b1"])                      # (B,14,14,32)
    y = conv3x3_relu_pool(y, kp["w2"], kp["b2"])                      # (B, 7, 7,64)
    flat = y.reshape(B, 7 * 7 * 64)          # NHWC flatten (wf1 pre-permuted)
    return mlp_head(flat, kp["wf1"], kp["bf1"], kp["wf2"], kp["bf2"])  # (B,10)


# ----------------------------------------------------------------------------
# Pure-JAX f32 reference (PyTorch semantics, NCHW flatten order)
# ----------------------------------------------------------------------------
def simple_cnn_reference(x_nchw, params):
    B, _, H, W = x_nchw.shape
    x = jnp.transpose(x_nchw, (0, 2, 3, 1)).astype(jnp.float32)

    def im2col(x):
        B_, H_, W_, C_ = x.shape
        xp = jnp.pad(x, ((0, 0), (1, 1), (1, 1), (0, 0)))
        cols = [xp[:, dh:dh + H_, dw:dw + W_, :] for dh in range(3) for dw in range(3)]
        return jnp.stack(cols, axis=3).reshape(B_ * H_ * W_, 9 * C_)

    def pool(x):
        B_, H_, W_, C_ = x.shape
        return jnp.max(x.reshape(B_, H_ // 2, 2, W_ // 2, 2, C_), axis=(2, 4))

    y = jnp.maximum(im2col(x) @ params["w1"] + params["b1"], 0.).reshape(B, H, W, 32)
    y = pool(y)
    y = jnp.maximum(im2col(y) @ params["w2"] + params["b2"], 0.).reshape(B, H // 2, W // 2, 64)
    y = pool(y)
    flat = jnp.transpose(y, (0, 3, 1, 2)).reshape(B, 64 * 7 * 7)      # NCHW flatten
    h = jnp.maximum(flat @ params["wf1"] + params["bf1"], 0.)
    return h @ params["wf2"] + params["bf2"]


if __name__ == "__main__":
    key = jax.random.PRNGKey(0)
    k_x, k_p = jax.random.split(key)

    # MNIST-like input: batch=2, 1 channel, 28x28 (required by fc1 = 64*7*7)
    x = jax.random.normal(k_x, (2, 1, 28, 28), jnp.float32)
    params = init_params(k_p)
    kparams = prepare_params(params)

    out = jax.block_until_ready(simple_cnn_forward(x, kparams))
    assert out.shape == (2, 10), out.shape

    ref = jax.block_until_ready(simple_cnn_reference(x, params))
    # bf16 matmul operands + bf16 intermediates -> compare at bf16-level tolerance.
    err = float(jnp.max(jnp.abs(out - ref)))
    assert err < 3e-2, f"mismatch vs reference: max abs err={err}"

    print("KERNEL_OK")
</pallas_src>

<mosaic_0001>
module attributes {stable_mosaic.version = 11 : i64} {
  func.func @_conv_pool_kernel(%arg0: i32, %arg1: memref<128x9xbf16, #tpu.memory_space<vmem>>, %arg2: memref<128x9xbf16, #tpu.memory_space<vmem>>, %arg3: memref<128x9xbf16, #tpu.memory_space<vmem>>, %arg4: memref<128x9xbf16, #tpu.memory_space<vmem>>, %arg5: memref<9x32xbf16, #tpu.memory_space<vmem>>, %arg6: memref<1x32xf32, #tpu.memory_space<vmem>>, %arg7: memref<128x32xbf16, #tpu.memory_space<vmem>>) attributes {dimension_semantics = [#tpu.dimension_semantics<parallel>], iteration_bounds = array<i64: 4>, scalar_prefetch = 0 : i64, scratch_operands = 0 : i64, tpu.core_type = #tpu.core_type<tc>, window_params = [{transform_indices = @transform_0, window_bounds = array<i64: 128, 9>}, {transform_indices = @transform_1, window_bounds = array<i64: 128, 9>}, {transform_indices = @transform_2, window_bounds = array<i64: 128, 9>}, {transform_indices = @transform_3, window_bounds = array<i64: 128, 9>}, {pipeline_mode = #tpu.pipeline_mode<synchronous>, transform_indices = @transform_4, window_bounds = array<i64: 9, 32>}, {pipeline_mode = #tpu.pipeline_mode<synchronous>, transform_indices = @transform_5, window_bounds = array<i64: 1, 32>}, {transform_indices = @transform_6, window_bounds = array<i64: 128, 32>}]} {
    %c0 = arith.constant 0 : index
    %c0_0 = arith.constant 0 : index
    %0 = vector.load %arg5[%c0, %c0_0] : memref<9x32xbf16, #tpu.memory_space<vmem>>, vector<9x32xbf16>
    %c0_1 = arith.constant 0 : index
    %c0_2 = arith.constant 0 : index
    %1 = vector.load %arg1[%c0_1, %c0_2] : memref<128x9xbf16, #tpu.memory_space<vmem>>, vector<128x9xbf16>
    %cst = arith.constant dense<0.000000e+00> : vector<128x32xf32>
    %2 = tpu.matmul %1, %0, %cst {dimension_numbers = #tpu.dot_dimension_numbers<[1], [0], [0], [1], [0, 0, 1, 1], [], []>} : vector<128x9xbf16>, vector<9x32xbf16>, vector<128x32xf32> -> vector<128x32xf32>
    %c0_3 = arith.constant 0 : index
    %c0_4 = arith.constant 0 : index
    %3 = vector.load %arg2[%c0_3, %c0_4] : memref<128x9xbf16, #tpu.memory_space<vmem>>, vector<128x9xbf16>
    %cst_5 = arith.constant dense<0.000000e+00> : vector<128x32xf32>
    %4 = tpu.matmul %3, %0, %cst_5 {dimension_numbers = #tpu.dot_dimension_numbers<[1], [0], [0], [1], [0, 0, 1, 1], [], []>} : vector<128x9xbf16>, vector<9x32xbf16>, vector<128x32xf32> -> vector<128x32xf32>
    %5 = arith.maximumf %2, %4 : vector<128x32xf32>
    %c0_6 = arith.constant 0 : index
    %c0_7 = arith.constant 0 : index
    %6 = vector.load %arg3[%c0_6, %c0_7] : memref<128x9xbf16, #tpu.memory_space<vmem>>, vector<128x9xbf16>
    %cst_8 = arith.constant dense<0.000000e+00> : vector<128x32xf32>
    %7 = tpu.matmul %6, %0, %cst_8 {dimension_numbers = #tpu.dot_dimension_numbers<[1], [0], [0], [1], [0, 0, 1, 1], [], []>} : vector<128x9xbf16>, vector<9x32xbf16>, vector<128x32xf32> -> vector<128x32xf32>
    %8 = arith.maximumf %5, %7 : vector<128x32xf32>
    %c0_9 = arith.constant 0 : index
    %c0_10 = arith.constant 0 : index
    %9 = vector.load %arg4[%c0_9, %c0_10] : memref<128x9xbf16, #tpu.memory_space<vmem>>, vector<128x9xbf16>
    %cst_11 = arith.constant dense<0.000000e+00> : vector<128x32xf32>
    %10 = tpu.matmul %9, %0, %cst_11 {dimension_numbers = #tpu.dot_dimension_numbers<[1], [0], [0], [1], [0, 0, 1, 1], [], []>} : vector<128x9xbf16>, vector<9x32xbf16>, vector<128x32xf32> -> vector<128x32xf32>
    %11 = arith.maximumf %8, %10 : vector<128x32xf32>
    %c0_12 = arith.constant 0 : index
    %c0_13 = arith.constant 0 : index
    %12 = vector.load %arg6[%c0_12, %c0_13] : memref<1x32xf32, #tpu.memory_space<vmem>>, vector<1x32xf32>
    %13 = vector.broadcast %12 : vector<1x32xf32> to vector<128x32xf32>
    %14 = arith.addf %11, %13 : vector<128x32xf32>
    %cst_14 = arith.constant 0.000000e+00 : f32
    %15 = vector.broadcast %cst_14 : f32 to vector<128x32xf32>
    %16 = arith.maximumf %14, %15 : vector<128x32xf32>
    %17 = arith.truncf %16 : vector<128x32xf32> to vector<128x32xbf16>
    %c0_15 = arith.constant 0 : index
    %c0_16 = arith.constant 0 : index
    %18 = vector.load %arg7[%c0_15, %c0_16] : memref<128x32xbf16, #tpu.memory_space<vmem>>, vector<128x32xbf16>
    tpu.vector_store %arg7[%c0_15, %c0_16], %17 {strides = array<i32>} : memref<128x32xbf16, #tpu.memory_space<vmem>>, vector<128x32xbf16>,
    return
  }
  func.func @transform_0(%arg0: i32) -> (i32, i32) {
    %c0_i32 = arith.constant 0 : i32
    %c0_i32_0 = arith.constant 0 : i32
    return %arg0, %c0_i32 : i32, i32
  }
  func.func @transform_1(%arg0: i32) -> (i32, i32) {
    %c0_i32 = arith.constant 0 : i32
    %c0_i32_0 = arith.constant 0 : i32
    return %arg0, %c0_i32 : i32, i32
  }
  func.func @transform_2(%arg0: i32) -> (i32, i32) {
    %c0_i32 = arith.constant 0 : i32
    %c0_i32_0 = arith.constant 0 : i32
    return %arg0, %c0_i32 : i32, i32
  }
  func.func @transform_3(%arg0: i32) -> (i32, i32) {
    %c0_i32 = arith.constant 0 : i32
    %c0_i32_0 = arith.constant 0 : i32
    return %arg0, %c0_i32 : i32, i32
  }
  func.func @transform_4(%arg0: i32) -> (i32, i32) {
    %c0_i32 = arith.constant 0 : i32
    %c0_i32_0 = arith.constant 0 : i32
    %c0_i32_1 = arith.constant 0 : i32
    return %c0_i32, %c0_i32_0 : i32, i32
  }
  func.func @transform_5(%arg0: i32) -> (i32, i32) {
    %c0_i32 = arith.constant 0 : i32
    %c0_i32_0 = arith.constant 0 : i32
    %c0_i32_1 = arith.constant 0 : i32
    return %c0_i32, %c0_i32_0 : i32, i32
  }
  func.func @transform_6(%arg0: i32) -> (i32, i32) {
    %c0_i32 = arith.constant 0 : i32
    %c0_i32_0 = arith.constant 0 : i32
    return %arg0, %c0_i32 : i32, i32
  }
}

module attributes {stable_mosaic.version = 11 : i64} {
  func.func @_conv_pool_kernel(%arg0: i32, %arg1: memref<104x288xbf16, #tpu.memory_space<vmem>>, %arg2: memref<104x288xbf16, #tpu.memory_space<vmem>>, %arg3: memref<104x288xbf16, #tpu.memory_space<vmem>>, %arg4: memref<104x288xbf16, #tpu.memory_space<vmem>>, %arg5: memref<288x64xbf16, #tpu.memory_space<vmem>>, %arg6: memref<1x64xf32, #tpu.memory_space<vmem>>, %arg7: memref<104x64xbf16, #tpu.memory_space<vmem>>) attributes {dimension_semantics = [#tpu.dimension_semantics<parallel>], iteration_bounds = array<i64: 1>, scalar_prefetch = 0 : i64, scratch_operands = 0 : i64, tpu.core_type = #tpu.core_type<tc>, window_params = [{transform_indices = @transform_0, window_bounds = array<i64: 104, 288>}, {transform_indices = @transform_1, window_bounds = array<i64: 104, 288>}, {transform_indices = @transform_2, window_bounds = array<i64: 104, 288>}, {transform_indices = @transform_3, window_bounds = array<i64: 104, 288>}, {pipeline_mode = #tpu.pipeline_mode<synchronous>, transform_indices = @transform_4, window_bounds = array<i64: 288, 64>}, {pipeline_mode = #tpu.pipeline_mode<synchronous>, transform_indices = @transform_5, window_bounds = array<i64: 1, 64>}, {transform_indices = @transform_6, window_bounds = array<i64: 104, 64>}]} {
    %c0 = arith.constant 0 : index
    %c0_0 = arith.constant 0 : index
    %0 = vector.load %arg5[%c0, %c0_0] : memref<288x64xbf16, #tpu.memory_space<vmem>>, vector<288x64xbf16>
    %c0_1 = arith.constant 0 : index
    %c0_2 = arith.constant 0 : index
    %1 = vector.load %arg1[%c0_1, %c0_2] : memref<104x288xbf16, #tpu.memory_space<vmem>>, vector<104x288xbf16>
    %cst = arith.constant dense<0.000000e+00> : vector<104x64xf32>
    %2 = tpu.matmul %1, %0, %cst {dimension_numbers = #tpu.dot_dimension_numbers<[1], [0], [0], [1], [0, 0, 1, 1], [], []>} : vector<104x288xbf16>, vector<288x64xbf16>, vector<104x64xf32> -> vector<104x64xf32>
    %c0_3 = arith.constant 0 : index
    %c0_4 = arith.constant 0 : index
    %3 = vector.load %arg2[%c0_3, %c0_4] : memref<104x288xbf16, #tpu.memory_space<vmem>>, vector<104x288xbf16>
    %cst_5 = arith.constant dense<0.000000e+00> : vector<104x64xf32>
    %4 = tpu.matmul %3, %0, %cst_5 {dimension_numbers = #tpu.dot_dimension_numbers<[1], [0], [0], [1], [0, 0, 1, 1], [], []>} : vector<104x288xbf16>, vector<288x64xbf16>, vector<104x64xf32> -> vector<104x64xf32>
    %5 = arith.maximumf %2, %4 : vector<104x64xf32>
    %c0_6 = arith.constant 0 : index
    %c0_7 = arith.constant 0 : index
    %6 = vector.load %arg3[%c0_6, %c0_7] : memref<104x288xbf16, #tpu.memory_space<vmem>>, vector<104x288xbf16>
    %cst_8 = arith.constant dense<0.000000e+00> : vector<104x64xf32>
    %7 = tpu.matmul %6, %0, %cst_8 {dimension_numbers = #tpu.dot_dimension_numbers<[1], [0], [0], [1], [0, 0, 1, 1], [], []>} : vector<104x288xbf16>, vector<288x64xbf16>, vector<104x64xf32> -> vector<104x64xf32>
    %8 = arith.maximumf %5, %7 : vector<104x64xf32>
    %c0_9 = arith.constant 0 : index
    %c0_10 = arith.constant 0 : index
    %9 = vector.load %arg4[%c0_9, %c0_10] : memref<104x288xbf16, #tpu.memory_space<vmem>>, vector<104x288xbf16>
    %cst_11 = arith.constant dense<0.000000e+00> : vector<104x64xf32>
    %10 = tpu.matmul %9, %0, %cst_11 {dimension_numbers = #tpu.dot_dimension_numbers<[1], [0], [0], [1], [0, 0, 1, 1], [], []>} : vector<104x288xbf16>, vector<288x64xbf16>, vector<104x64xf32> -> vector<104x64xf32>
    %11 = arith.maximumf %8, %10 : vector<104x64xf32>
    %c0_12 = arith.constant 0 : index
    %c0_13 = arith.constant 0 : index
    %12 = vector.load %arg6[%c0_12, %c0_13] : memref<1x64xf32, #tpu.memory_space<vmem>>, vector<1x64xf32>
    %13 = vector.broadcast %12 : vector<1x64xf32> to vector<104x64xf32>
    %14 = arith.addf %11, %13 : vector<104x64xf32>
    %cst_14 = arith.constant 0.000000e+00 : f32
    %15 = vector.broadcast %cst_14 : f32 to vector<104x64xf32>
    %16 = arith.maximumf %14, %15 : vector<104x64xf32>
    %17 = arith.truncf %16 : vector<104x64xf32> to vector<104x64xbf16>
    %c0_15 = arith.constant 0 : index
    %c0_16 = arith.constant 0 : index
    %18 = vector.load %arg7[%c0_15, %c0_16] : memref<104x64xbf16, #tpu.memory_space<vmem>>, vector<104x64xbf16>
    tpu.vector_store %arg7[%c0_15, %c0_16], %17 {strides = array<i32>} : memref<104x64xbf16, #tpu.memory_space<vmem>>, vector<104x64xbf16>,
    return
  }
  func.func @transform_0(%arg0: i32) -> (i32, i32) {
    %c0_i32 = arith.constant 0 : i32
    %c0_i32_0 = arith.constant 0 : i32
    return %arg0, %c0_i32 : i32, i32
  }
  func.func @transform_1(%arg0: i32) -> (i32, i32) {
    %c0_i32 = arith.constant 0 : i32
    %c0_i32_0 = arith.constant 0 : i32
    return %arg0, %c0_i32 : i32, i32
  }
  func.func @transform_2(%arg0: i32) -> (i32, i32) {
    %c0_i32 = arith.constant 0 : i32
    %c0_i32_0 = arith.constant 0 : i32
    return %arg0, %c0_i32 : i32, i32
  }
  func.func @transform_3(%arg0: i32) -> (i32, i32) {
    %c0_i32 = arith.constant 0 : i32
    %c0_i32_0 = arith.constant 0 : i32
    return %arg0, %c0_i32 : i32, i32
  }
  func.func @transform_4(%arg0: i32) -> (i32, i32) {
    %c0_i32 = arith.constant 0 : i32
    %c0_i32_0 = arith.constant 0 : i32
    %c0_i32_1 = arith.constant 0 : i32
    return %c0_i32, %c0_i32_0 : i32, i32
  }
  func.func @transform_5(%arg0: i32) -> (i32, i32) {
    %c0_i32 = arith.constant 0 : i32
    %c0_i32_0 = arith.constant 0 : i32
    %c0_i32_1 = arith.constant 0 : i32
    return %c0_i32, %c0_i32_0 : i32, i32
  }
  func.func @transform_6(%arg0: i32) -> (i32, i32) {
    %c0_i32 = arith.constant 0 : i32
    %c0_i32_0 = arith.constant 0 : i32
    return %arg0, %c0_i32 : i32, i32
  }
}

module attributes {stable_mosaic.version = 11 : i64} {
  func.func @_mlp_kernel(%arg0: i32, %arg1: memref<8x3136xbf16, #tpu.memory_space<vmem>>, %arg2: memref<3136x128xbf16, #tpu.memory_space<vmem>>, %arg3: memref<1x128xf32, #tpu.memory_space<vmem>>, %arg4: memref<128x10xbf16, #tpu.memory_space<vmem>>, %arg5: memref<1x10xf32, #tpu.memory_space<vmem>>, %arg6: memref<8x10xf32, #tpu.memory_space<vmem>>) attributes {dimension_semantics = [#tpu.dimension_semantics<parallel>], iteration_bounds = array<i64: 1>, scalar_prefetch = 0 : i64, scratch_operands = 0 : i64, tpu.core_type = #tpu.core_type<tc>, window_params = [{transform_indices = @transform_0, window_bounds = array<i64: 8, 3136>}, {pipeline_mode = #tpu.pipeline_mode<synchronous>, transform_indices = @transform_1, window_bounds = array<i64: 3136, 128>}, {pipeline_mode = #tpu.pipeline_mode<synchronous>, transform_indices = @transform_2, window_bounds = array<i64: 1, 128>}, {pipeline_mode = #tpu.pipeline_mode<synchronous>, transform_indices = @transform_3, window_bounds = array<i64: 128, 10>}, {pipeline_mode = #tpu.pipeline_mode<synchronous>, transform_indices = @transform_4, window_bounds = array<i64: 1, 10>}, {transform_indices = @transform_5, window_bounds = array<i64: 8, 10>}]} {
    %c0 = arith.constant 0 : index
    %c0_0 = arith.constant 0 : index
    %0 = vector.load %arg1[%c0, %c0_0] : memref<8x3136xbf16, #tpu.memory_space<vmem>>, vector<8x3136xbf16>
    %c0_1 = arith.constant 0 : index
    %c0_2 = arith.constant 0 : index
    %1 = vector.load %arg2[%c0_1, %c0_2] : memref<3136x128xbf16, #tpu.memory_space<vmem>>, vector<3136x128xbf16>
    %cst = arith.constant dense<0.000000e+00> : vector<8x128xf32>
    %2 = tpu.matmul %0, %1, %cst {dimension_numbers = #tpu.dot_dimension_numbers<[1], [0], [0], [1], [0, 0, 1, 1], [], []>} : vector<8x3136xbf16>, vector<3136x128xbf16>, vector<8x128xf32> -> vector<8x128xf32>
    %c0_3 = arith.constant 0 : index
    %c0_4 = arith.constant 0 : index
    %3 = vector.load %arg3[%c0_3, %c0_4] : memref<1x128xf32, #tpu.memory_space<vmem>>, vector<1x128xf32>
    %4 = vector.broadcast %3 : vector<1x128xf32> to vector<8x128xf32>
    %5 = arith.addf %2, %4 : vector<8x128xf32>
    %cst_5 = arith.constant 0.000000e+00 : f32
    %6 = vector.broadcast %cst_5 : f32 to vector<8x128xf32>
    %7 = arith.maximumf %5, %6 : vector<8x128xf32>
    %8 = arith.truncf %7 : vector<8x128xf32> to vector<8x128xbf16>
    %c0_6 = arith.constant 0 : index
    %c0_7 = arith.constant 0 : index
    %9 = vector.load %arg4[%c0_6, %c0_7] : memref<128x10xbf16, #tpu.memory_space<vmem>>, vector<128x10xbf16>
    %cst_8 = arith.constant dense<0.000000e+00> : vector<8x10xf32>
    %10 = tpu.matmul %8, %9, %cst_8 {dimension_numbers = #tpu.dot_dimension_numbers<[1], [0], [0], [1], [0, 0, 1, 1], [], []>} : vector<8x128xbf16>, vector<128x10xbf16>, vector<8x10xf32> -> vector<8x10xf32>
    %c0_9 = arith.constant 0 : index
    %c0_10 = arith.constant 0 : index
    %11 = vector.load %arg5[%c0_9, %c0_10] : memref<1x10xf32, #tpu.memory_space<vmem>>, vector<1x10xf32>
    %12 = vector.broadcast %11 : vector<1x10xf32> to vector<8x10xf32>
    %13 = arith.addf %10, %12 : vector<8x10xf32>
    %c0_11 = arith.constant 0 : index
    %c0_12 = arith.constant 0 : index
    %14 = vector.load %arg6[%c0_11, %c0_12] : memref<8x10xf32, #tpu.memory_space<vmem>>, vector<8x10xf32>
    tpu.vector_store %arg6[%c0_11, %c0_12], %13 {strides = array<i32>} : memref<8x10xf32, #tpu.memory_space<vmem>>, vector<8x10xf32>,
    return
  }
  func.func @transform_0(%arg0: i32) -> (i32, i32) {
    %c0_i32 = arith.constant 0 : i32
    %c0_i32_0 = arith.constant 0 : i32
    return %arg0, %c0_i32 : i32, i32
  }
  func.func @transform_1(%arg0: i32) -> (i32, i32) {
    %c0_i32 = arith.constant 0 : i32
    %c0_i32_0 = arith.constant 0 : i32
    %c0_i32_1 = arith.constant 0 : i32
    return %c0_i32, %c0_i32_0 : i32, i32
  }
  func.func @transform_2(%arg0: i32) -> (i32, i32) {
    %c0_i32 = arith.constant 0 : i32
    %c0_i32_0 = arith.constant 0 : i32
    %c0_i32_1 = arith.constant 0 : i32
    return %c0_i32, %c0_i32_0 : i32, i32
  }
  func.func @transform_3(%arg0: i32) -> (i32, i32) {
    %c0_i32 = arith.constant 0 : i32
    %c0_i32_0 = arith.constant 0 : i32
    %c0_i32_1 = arith.constant 0 : i32
    return %c0_i32, %c0_i32_0 : i32, i32
  }
  func.func @transform_4(%arg0: i32) -> (i32, i32) {
    %c0_i32 = arith.constant 0 : i32
    %c0_i32_0 = arith.constant 0 : i32
    %c0_i32_1 = arith.constant 0 : i32
    return %c0_i32, %c0_i32_0 : i32, i32
  }
  func.func @transform_5(%arg0: i32) -> (i32, i32) {
    %c0_i32 = arith.constant 0 : i32
    %c0_i32_0 = arith.constant 0 : i32
    return %arg0, %c0_i32 : i32, i32
  }
}

</mosaic_0001>

<llo_original>
// kernel: simple_cnn_forward.3
$region0: #{simple_cnn_forward.3}
  #allocation0 [shape = 'u32[]', space=smem, size = 0x4, offset = 0x4, fixed_abs, tag = 'smem constant byte address 0x4 - core index']
  #allocation1 [shape = 'u32[72,128]{1,0:T(1,128)}', space=vmem, size = 0x9000, scoped, tag = 'internal scratch']
  %s0 = inlined_call_operand.vmem [shape: bf16[512,9], index: 0, kind: input, shape index: {}]
  %s1 = inlined_call_operand.vmem [shape: bf16[512,9], index: 1, kind: input, shape index: {}]
  %s2 = inlined_call_operand.vmem [shape: bf16[512,9], index: 2, kind: input, shape index: {}]
  %s3 = inlined_call_operand.vmem [shape: bf16[512,9], index: 3, kind: input, shape index: {}]
  %s4 = inlined_call_operand.vmem [shape: bf16[9,32], index: 4, kind: input, shape index: {}]
  %s5 = inlined_call_operand.vmem [shape: f32[1,32], index: 5, kind: input, shape index: {}]
  %s6 = inlined_call_operand.vmem [shape: bf16[512,32], index: 6, kind: output, shape index: {}]
  %s7 = sld [smem:[#allocation0]]
  $region57: #{simple_cnn_forward.3} parent=0
    _
  %s9 = ssub.s32 1, %s7
  %s10 = scalar_select 0, %s9, %s7
  loop: start=0, step=1, limit=6
  $region2: #{simple_cnn_forward.3} parent=0 // loop_pre_header
    _
  $region3: #{simple_cnn_forward.3} parent=0 // loop_header
    %s12 = sphi 0, %s16
    %p13 = scmp.ge.s32.totalorder %s12, 6
    %s22 = sphi 0, %s24
    %s25 = sphi 0, %s22
    %s26 = sphi 0, %s25
    %s42 = sphi 0, %s26
    %s48 = sphi 0, %s50
    %s51 = sphi 0, %s48
    %s52 = sphi 0, %s51
    %s68 = sphi 0, %s52
    %s74 = sphi 0, %s76
    %s77 = sphi 0, %s74
    %s78 = sphi 0, %s77
    %s94 = sphi 0, %s78
    %s100 = sphi 0, %s102
    %s103 = sphi 0, %s100
    %s104 = sphi 0, %s103
    %s120 = sphi 0, %s104
    %s124 = sphi 0, %s124
    %s126 = sphi 0, %s124
    %s127 = sphi 0, %s126
    %s141 = sphi 0, %s127
    %s145 = sphi 0, %s145
    %s147 = sphi 0, %s145
    %s148 = sphi 0, %s147
    %s162 = sphi 0, %s148
    %s168 = sphi 0, %s170
    %s171 = sphi 0, %s168
    %s172 = sphi 0, %s171
    %s188 = sphi 0, %s172
  $region4: #{simple_cnn_forward.3} parent=0 // loop_header_branch
    %15 = sbr.rel (%p13) target = $region8
  $region5: #{simple_cnn_forward.3} parent=0 // loop_body
    %s17 = ssub.s32 %s12, 1
    %s18 = ssub.s32 %s12, 2
    %s19 = sadd.s32 %s12, 1
    %s20 = ssub.s32 %s12, %s19
    %p21 = scmp.eq.s32.totalorder %s20, 0
    %s23 = sadd.s32 %s22, 1
    %s24 = scalar_select %p21, %s22, %s23
    %p27 = pneg %p21
    %p28 = scmp.eq.s32.totalorder %s12, 3
    %p29 = por %p27, %p28
    %p30 = scmp.ne.s32.totalorder %s22, %s25
    %p31 = scmp.eq.s32.totalorder %s12, 0
    %p32 = por %p30, %p31
    %p33 = scmp.ne.s32.totalorder %s22, %s25
    %p34 = scmp.eq.s32.totalorder %s17, 3
    %p35 = por %p33, %p34
    %p36 = scmp.ne.s32.totalorder %s25, %s26
    %p37 = scmp.eq.s32.totalorder %s17, 0
    %p38 = por %p36, %p37
    %p39 = scmp.ne.s32.totalorder %s25, %s26
    %p40 = scmp.eq.s32.totalorder %s18, 3
    %p41 = por %p39, %p40
    %p43 = scmp.ne.s32.totalorder %s26, %s42
    %p44 = scmp.eq.s32.totalorder %s18, 0
    %p45 = por %p43, %p44
    %s46 = ssub.s32 %s12, %s19
    %p47 = scmp.eq.s32.totalorder %s46, 0
    %s49 = sadd.s32 %s48, 1
    %s50 = scalar_select %p47, %s48, %s49
    %p53 = pneg %p47
    %p54 = scmp.eq.s32.totalorder %s12, 3
    %p55 = por %p53, %p54
    %p56 = scmp.ne.s32.totalorder %s48, %s51
    %p57 = scmp.eq.s32.totalorder %s12, 0
    %p58 = por %p56, %p57
    %p59 = scmp.ne.s32.totalorder %s48, %s51
    %p60 = scmp.eq.s32.totalorder %s17, 3
    %p61 = por %p59, %p60
    %p62 = scmp.ne.s32.totalorder %s51, %s52
    %p63 = scmp.eq.s32.totalorder %s17, 0
    %p64 = por %p62, %p63
    %p65 = scmp.ne.s32.totalorder %s51, %s52
    %p66 = scmp.eq.s32.totalorder %s18, 3
    %p67 = por %p65, %p66
    %p69 = scmp.ne.s32.totalorder %s52, %s68
    %p70 = scmp.eq.s32.totalorder %s18, 0
    %p71 = por %p69, %p70
    %s72 = ssub.s32 %s12, %s19
    %p73 = scmp.eq.s32.totalorder %s72, 0
    %s75 = sadd.s32 %s74, 1
    %s76 = scalar_select %p73, %s74, %s75
    %p79 = pneg %p73
    %p80 = scmp.eq.s32.totalorder %s12, 3
    %p81 = por %p79, %p80
    %p82 = scmp.ne.s32.totalorder %s74, %s77
    %p83 = scmp.eq.s32.totalorder %s12, 0
    %p84 = por %p82, %p83
    %p85 = scmp.ne.s32.totalorder %s74, %s77
    %p86 = scmp.eq.s32.totalorder %s17, 3
    %p87 = por %p85, %p86
    %p88 = scmp.ne.s32.totalorder %s77, %s78
    %p89 = scmp.eq.s32.totalorder %s17, 0
    %p90 = por %p88, %p89
    %p91 = scmp.ne.s32.totalorder %s77, %s78
    %p92 = scmp.eq.s32.totalorder %s18, 3
    %p93 = por %p91, %p92
    %p95 = scmp.ne.s32.totalorder %s78, %s94
    %p96 = scmp.eq.s32.totalorder %s18, 0
    %p97 = por %p95, %p96
    %s98 = ssub.s32 %s12, %s19
    %p99 = scmp.eq.s32.totalorder %s98, 0
    %s101 = sadd.s32 %s100, 1
    %s102 = scalar_select %p99, %s100, %s101
    %p105 = pneg %p99
    %p106 = scmp.eq.s32.totalorder %s12, 3
    %p107 = por %p105, %p106
    %p108 = scmp.ne.s32.totalorder %s100, %s103
    %p109 = scmp.eq.s32.totalorder %s12, 0
    %p110 = por %p108, %p109
    %p111 = scmp.ne.s32.totalorder %s100, %s103
    %p112 = scmp.eq.s32.totalorder %s17, 3
    %p113 = por %p111, %p112
    %p114 = scmp.ne.s32.totalorder %s103, %s104
    %p115 = scmp.eq.s32.totalorder %s17, 0
    %p116 = por %p114, %p115
    %p117 = scmp.ne.s32.totalorder %s103, %s104
    %p118 = scmp.eq.s32.totalorder %s18, 3
    %p119 = por %p117, %p118
    %p121 = scmp.ne.s32.totalorder %s104, %s120
    %p122 = scmp.eq.s32.totalorder %s18, 0
    %p123 = por %p121, %p122
    %s125 = sadd.s32 %s124, 1
    %p128 = scmp.eq.s32.totalorder %s12, 3
    %p129 = scmp.ne.s32.totalorder %s124, %s126
    %p130 = scmp.eq.s32.totalorder %s12, 0
    %p131 = por %p129, %p130
    %p132 = scmp.ne.s32.totalorder %s124, %s126
    %p133 = scmp.eq.s32.totalorder %s17, 3
    %p134 = por %p132, %p133
    %p135 = scmp.ne.s32.totalorder %s126, %s127
    %p136 = scmp.eq.s32.totalorder %s17, 0
    %p137 = por %p135, %p136
    %p138 = scmp.ne.s32.totalorder %s126, %s127
    %p139 = scmp.eq.s32.totalorder %s18, 3
    %p140 = por %p138, %p139
    %p142 = scmp.ne.s32.totalorder %s127, %s141
    %p143 = scmp.eq.s32.totalorder %s18, 0
    %p144 = por %p142, %p143
    %s146 = sadd.s32 %s145, 1
    %p149 = scmp.eq.s32.totalorder %s12, 3
    %p150 = scmp.ne.s32.totalorder %s145, %s147
    %p151 = scmp.eq.s32.totalorder %s12, 0
    %p152 = por %p150, %p151
    %p153 = scmp.ne.s32.totalorder %s145, %s147
    %p154 = scmp.eq.s32.totalorder %s17, 3
    %p155 = por %p153, %p154
    %p156 = scmp.ne.s32.totalorder %s147, %s148
    %p157 = scmp.eq.s32.totalorder %s17, 0
    %p158 = por %p156, %p157
    %p159 = scmp.ne.s32.totalorder %s147, %s148
    %p160 = scmp.eq.s32.totalorder %s18, 3
    %p161 = por %p159, %p160
    %p163 = scmp.ne.s32.totalorder %s148, %s162
    %p164 = scmp.eq.s32.totalorder %s18, 0
    %p165 = por %p163, %p164
    %s166 = ssub.s32 %s12, %s19
    %p167 = scmp.eq.s32.totalorder %s166, 0
    %s169 = sadd.s32 %s168, 1
    %s170 = scalar_select %p167, %s168, %s169
    %p173 = pneg %p167
    %p174 = scmp.eq.s32.totalorder %s12, 3
    %p175 = por %p173, %p174
    %p176 = scmp.ne.s32.totalorder %s168, %s171
    %p177 = scmp.eq.s32.totalorder %s12, 0
    %p178 = por %p176, %p177
    %p179 = scmp.ne.s32.totalorder %s168, %s171
    %p180 = scmp.eq.s32.totalorder %s17, 3
    %p181 = por %p179, %p180
    %p182 = scmp.ne.s32.totalorder %s171, %s172
    %p183 = scmp.eq.s32.totalorder %s17, 0
    %p184 = por %p182, %p183
    %p185 = scmp.ne.s32.totalorder %s171, %s172
    %p186 = scmp.eq.s32.totalorder %s18, 3
    %p187 = por %p185, %p186
    %p189 = scmp.ne.s32.totalorder %s172, %s188
    %p190 = scmp.eq.s32.totalorder %s18, 0
    %p191 = por %p189, %p190
    %p192 = scmp.le.s32.totalorder 1, %s12
    %p193 = scmp.lt.s32.totalorder %s12, 5
    %p194 = pnand %p192, %p193
    %p195 = pneg %p194
    // Predicated region
    $region9: #{simple_cnn_forward.3} parent=5 // pred_check
      _
    $region10: #{simple_cnn_forward.3} parent=5 // pred_check_branch
      %197 = sbr.rel (%p194) target = $region12
    $region11: #{simple_cnn_forward.3} parent=5 // pred_region
      %s198 = ssub.s32 %s12, 1
      // Predicated region
      $region13: #{simple_cnn_forward.3} parent=11 // pred_check
        %p199 = pneg %p137
      $region14: #{simple_cnn_forward.3} parent=11 // pred_check_branch
        %201 = sbr.rel (%p199) target = $region16
      $region15: #{simple_cnn_forward.3} parent=11 // pred_region
        _
      $region16: #{simple_cnn_forward.3} parent=11 // pred_fallthru
        _
      // Predicated region
      $region17: #{simple_cnn_forward.3} parent=11 // pred_check
        %p202 = pneg %p158
      $region18: #{simple_cnn_forward.3} parent=11 // pred_check_branch
        %204 = sbr.rel (%p202) target = $region20
      $region19: #{simple_cnn_forward.3} parent=11 // pred_region
        _
      $region20: #{simple_cnn_forward.3} parent=11 // pred_fallthru
        _
    $region12: #{simple_cnn_forward.3} parent=5 // pred_fallthru
      _
    %p205 = scmp.lt.s32.totalorder %s12, 4
    // Predicated region
    $region21: #{simple_cnn_forward.3} parent=5 // pred_check
      %p206 = pneg %p205
    $region22: #{simple_cnn_forward.3} parent=5 // pred_check_branch
      %208 = sbr.rel (%p206) target = $region24
    $region23: #{simple_cnn_forward.3} parent=5 // pred_region
      // Predicated region
      $region25: #{simple_cnn_forward.3} parent=23 // pred_check
        %p209 = pneg %p32
      $region26: #{simple_cnn_forward.3} parent=23 // pred_check_branch
        %211 = sbr.rel (%p209) target = $region28
      $region27: #{simple_cnn_forward.3} parent=23 // pred_region
        %s212 = smul.u32 16, %s12
        %p213 = scmp.lt.s32.totalorder %s212, 63
        %s214 = scalar_select %p213, %s212, 63
        %s215 = smul.addr %s214, 4
        %s216 = scalar_lea.vmem %s0, %s215
        %s217 = smul.u32 16, %s12
      $region28: #{simple_cnn_forward.3} parent=23 // pred_fallthru
        _
      // Predicated region
      $region29: #{simple_cnn_forward.3} parent=23 // pred_check
        %p218 = pneg %p58
      $region30: #{simple_cnn_forward.3} parent=23 // pred_check_branch
        %220 = sbr.rel (%p218) target = $region32
      $region31: #{simple_cnn_forward.3} parent=23 // pred_region
        %s221 = smul.u32 16, %s12
        %p222 = scmp.lt.s32.totalorder %s221, 63
        %s223 = scalar_select %p222, %s221, 63
        %s224 = smul.addr %s223, 4
        %s225 = scalar_lea.vmem %s1, %s224
        %s226 = smul.u32 16, %s12
      $region32: #{simple_cnn_forward.3} parent=23 // pred_fallthru
        _
      // Predicated region
      $region33: #{simple_cnn_forward.3} parent=23 // pred_check
        %p227 = pneg %p84
      $region34: #{simple_cnn_forward.3} parent=23 // pred_check_branch
        %229 = sbr.rel (%p227) target = $region36
      $region35: #{simple_cnn_forward.3} parent=23 // pred_region
        %s230 = smul.u32 16, %s12
        %p231 = scmp.lt.s32.totalorder %s230, 63
        %s232 = scalar_select %p231, %s230, 63
        %s233 = smul.addr %s232, 4
        %s234 = scalar_lea.vmem %s2, %s233
        %s235 = smul.u32 16, %s12
      $region36: #{simple_cnn_forward.3} parent=23 // pred_fallthru
        _
      // Predicated region
      $region37: #{simple_cnn_forward.3} parent=23 // pred_check
        %p236 = pneg %p110
      $region38: #{simple_cnn_forward.3} parent=23 // pred_check_branch
        %238 = sbr.rel (%p236) target = $region40
      $region39: #{simple_cnn_forward.3} parent=23 // pred_region
        %s239 = smul.u32 16, %s12
        %p240 = scmp.lt.s32.totalorder %s239, 63
        %s241 = scalar_select %p240, %s239, 63
        %s242 = smul.addr %s241, 4
        %s243 = scalar_lea.vmem %s3, %s242
        %s244 = smul.u32 16, %s12
      $region40: #{simple_cnn_forward.3} parent=23 // pred_fallthru
        _
    $region24: #{simple_cnn_forward.3} parent=5 // pred_fallthru
      _
    %p245 = scmp.le.s32.totalorder 1, %s12
    %p246 = scmp.lt.s32.totalorder %s12, 5
    %p247 = pnand %p245, %p246
    %p248 = pneg %p247
    // Predicated region
    $region41: #{simple_cnn_forward.3} parent=5 // pred_check
      _
    $region42: #{simple_cnn_forward.3} parent=5 // pred_check_branch
      %250 = sbr.rel (%p247) target = $region44
    $region43: #{simple_cnn_forward.3} parent=5 // pred_region
      %s251 = ssub.s32 %s12, 1
      %s252 = smul.u32 16, %s17
      %p253 = scmp.lt.s32.totalorder %s252, 63
      %s254 = scalar_select %p253, %s252, 63
      %s255 = smul.addr %s254, 4
      %s256 = scalar_lea.vmem %s0, %s255
      %p257 = pneg %p38
      %p258 = pneg %p35
      %s259 = smul.u32 16, %s17
      %p260 = scmp.lt.s32.totalorder %s259, 63
      %s261 = scalar_select %p260, %s259, 63
      %s262 = smul.addr %s261, 4
      %s263 = scalar_lea.vmem %s1, %s262
      %p264 = pneg %p64
      %p265 = pneg %p61
      %s266 = smul.u32 16, %s17
      %p267 = scmp.lt.s32.totalorder %s266, 63
      %s268 = scalar_select %p267, %s266, 63
      %s269 = smul.addr %s268, 4
      %s270 = scalar_lea.vmem %s2, %s269
      %p271 = pneg %p90
      %p272 = pneg %p87
      %s273 = smul.u32 16, %s17
      %p274 = scmp.lt.s32.totalorder %s273, 63
      %s275 = scalar_select %p274, %s273, 63
      %s276 = smul.addr %s275, 4
      %s277 = scalar_lea.vmem %s3, %s276
      %p278 = pneg %p116
      %p279 = pneg %p113
      %p280 = pneg %p137
      %p281 = pneg %p134
      %p282 = pneg %p158
      %p283 = pneg %p155
      %p284 = pneg %p184
      %p285 = pneg %p181
      %s286 = smul.u32 16, %s17
      %p287 = scmp.lt.s32.totalorder %s286, 63
      %s288 = scalar_select %p287, %s286, 63
      %s289 = smul.addr %s288, 4
      %s290 = scalar_lea.vmem %s6, %s289
      %s291 = smul.u32 16, %s17
      %p292 = scmp.lt.s32.totalorder %s291, 63
      %s293 = scalar_select %p292, %s291, 63
      %s294 = smul.addr %s293, 4
      %s295 = scalar_lea.vmem %s0, %s294
      %s296 = smul.u32 16, %s17
      %s297 = smul.u32 16, %s17
      %p298 = scmp.lt.s32.totalorder %s297, 63
      %s299 = scalar_select %p298, %s297, 63
      %s300 = smul.addr %s299, 4
      %s301 = scalar_lea.vmem %s1, %s300
      %s302 = smul.u32 16, %s17
      %s303 = smul.u32 16, %s17
      %p304 = scmp.lt.s32.totalorder %s303, 63
      %s305 = scalar_select %p304, %s303, 63
      %s306 = smul.addr %s305, 4
      %s307 = scalar_lea.vmem %s2, %s306
      %s308 = smul.u32 16, %s17
      %s309 = smul.u32 16, %s17
      %p310 = scmp.lt.s32.totalorder %s309, 63
      %s311 = scalar_select %p310, %s309, 63
      %s312 = smul.addr %s311, 4
      %s313 = scalar_lea.vmem %s3, %s312
      %s314 = smul.u32 16, %s17
      %s315 = smul.u32 16, %s17
      %p316 = scmp.lt.s32.totalorder %s315, 63
      %s317 = scalar_select %p316, %s315, 63
      %s318 = smul.addr %s317, 4
      %s319 = scalar_lea.vmem %s6, %s318
      %s320 = smul.u32 16, %s17
      %v322 = vld [vmem:[%s4] sm:$0xf]
      %v323 = vld [vmem:[%s4 + $0x4] sm:$0x1]
      %v324 = vld [vmem:[%s295] sm:$0xf]
      %v325 = vld [vmem:[%s295 + $0x4] sm:$0xf]
      %v326 = vld [vmem:[%s295 + $0x8] sm:$0xf]
      %v327 = vld [vmem:[%s295 + $0xc] sm:$0xf]
      %v328 = vld [vmem:[%s295 + $0x10] sm:$0xf]
      %v329 = vld [vmem:[%s295 + $0x14] sm:$0xf]
      %v330 = vld [vmem:[%s295 + $0x18] sm:$0xf]
      %v331 = vld [vmem:[%s295 + $0x1c] sm:$0xf]
      %v332 = vld [vmem:[%s295 + $0x20] sm:$0xf]
      %v333 = vld [vmem:[%s295 + $0x24] sm:$0xf]
      %v334 = vld [vmem:[%s295 + $0x28] sm:$0xf]
      %v335 = vld [vmem:[%s295 + $0x2c] sm:$0xf]
      %v336 = vld [vmem:[%s295 + $0x30] sm:$0xf]
      %v337 = vld [vmem:[%s295 + $0x34] sm:$0xf]
      %v338 = vld [vmem:[%s295 + $0x38] sm:$0xf]
      %v339 = vld [vmem:[%s295 + $0x3c] sm:$0xf]
      %v356 = vunpack.c.l.b16 %v324
      %v357 = vunpack.c.l.b16 %v325
      %v358 = vunpack.c.l.b16 %v326
      %v359 = vunpack.c.l.b16 %v327
      %v360 = vunpack.c.l.b16 %v328
      %v361 = vunpack.c.l.b16 %v329
      %v362 = vunpack.c.l.b16 %v330
      %v363 = vunpack.c.l.b16 %v331
      %v364 = vunpack.c.l.b16 %v332
      %v365 = vunpack.c.l.b16 %v333
      %v366 = vunpack.c.l.b16 %v334
      %v367 = vunpack.c.l.b16 %v335
      %v368 = vunpack.c.l.b16 %v336
      %v369 = vunpack.c.l.b16 %v337
      %v370 = vunpack.c.l.b16 %v338
      %v371 = vunpack.c.l.b16 %v339
      %v372 = vpack.c.b16 %v357, %v356
      %v373 = vpack.c.b16 %v359, %v358
      %v374 = vpack.c.b16 %v361, %v360
      %v375 = vpack.c.b16 %v363, %v362
      %v376 = vpack.c.b16 %v365, %v364
      %v377 = vpack.c.b16 %v367, %v366
      %v378 = vpack.c.b16 %v369, %v368
      %v379 = vpack.c.b16 %v371, %v370
      %v382 = vunpack.c.l.b16 %v322
      %v383 = vunpack.c.l.b16 %v323
      %v384 = vpack.c.b16 %v383, %v382
      %vm385 = vcmask 72704
      %v387 = vsel %vm385, %v372, 0
      %v390 = vsel %vm385, %v373, 0
      %v393 = vsel %vm385, %v374, 0
      %v396 = vsel %vm385, %v375, 0
      %v399 = vsel %vm385, %v376, 0
      %v402 = vsel %vm385, %v377, 0
      %v405 = vsel %vm385, %v378, 0
      %v408 = vsel %vm385, %v379, 0
      %vm410 = vcmask 1043456
      %vm411 = vcmask 1044480
      %v412 = vsel %vm410, 4294967295, 65535
      %v413 = vsel %vm411, %v412, 0
      %v415 = vand.u32 %v384, %v413
      %417 = vmatpush.bf16.msra.mxu0 0
      %418 = vmatpush.bf16.msra.mxu0 0
      %419 = vmatpush.bf16.msra.mxu0 0
      %420 = vmatpush.bf16.msra.mxu0 0
      %421 = vmatpush.bf16.msra.mxu0 0
      %422 = vmatpush.bf16.msra.mxu0 0
      %423 = vmatpush.bf16.msra.mxu0 0
      %424 = vmatpush.bf16.msra.mxu0 %v415
      %425 = vmatmul.bf16.gmra.mxu0 %v387
      %v426 = vpop.f32.mrf.mxu0
      %v427 = vadd.f32 0.0, %v426
      %v428 = vpop.f32.mrf.mxu0
      %v429 = vadd.f32 0.0, %v428
      %430 = vmatmul.bf16.gmra.mxu0 %v390
      %v431 = vpop.f32.mrf.mxu0
      %v432 = vadd.f32 0.0, %v431
      %v433 = vpop.f32.mrf.mxu0
      %v434 = vadd.f32 0.0, %v433
      %435 = vmatmul.bf16.gmra.mxu0 %v393
      %v436 = vpop.f32.mrf.mxu0
      %v437 = vadd.f32 0.0, %v436
      %v438 = vpop.f32.mrf.mxu0
      %v439 = vadd.f32 0.0, %v438
      %440 = vmatmul.bf16.gmra.mxu0 %v396
      %v441 = vpop.f32.mrf.mxu0
      %v442 = vadd.f32 0.0, %v441
      %v443 = vpop.f32.mrf.mxu0
      %v444 = vadd.f32 0.0, %v443
      %445 = vmatmul.bf16.gmra.mxu0 %v399
      %v446 = vpop.f32.mrf.mxu0
      %v447 = vadd.f32 0.0, %v446
      %v448 = vpop.f32.mrf.mxu0
      %v449 = vadd.f32 0.0, %v448
      %450 = vmatmul.bf16.gmra.mxu0 %v402
      %v451 = vpop.f32.mrf.mxu0
      %v452 = vadd.f32 0.0, %v451
      %v453 = vpop.f32.mrf.mxu0
      %v454 = vadd.f32 0.0, %v453
      %455 = vmatmul.bf16.gmra.mxu0 %v405
      %v456 = vpop.f32.mrf.mxu0
      %v457 = vadd.f32 0.0, %v456
      %v458 = vpop.f32.mrf.mxu0
      %v459 = vadd.f32 0.0, %v458
      %460 = vmatmul.bf16.gmra.mxu0 %v408
      %v461 = vpop.f32.mrf.mxu0
      %v462 = vadd.f32 0.0, %v461
      %v463 = vpop.f32.mrf.mxu0
      %v464 = vadd.f32 0.0, %v463
      %465 = vdwg.mxu0
      %v466 = vld [vmem:[%s301] sm:$0xf]
      %v467 = vld [vmem:[%s301 + $0x4] sm:$0xf]
      %v468 = vld [vmem:[%s301 + $0x8] sm:$0xf]
      %v469 = vld [vmem:[%s301 + $0xc] sm:$0xf]
      %v470 = vld [vmem:[%s301 + $0x10] sm:$0xf]
      %v471 = vld [vmem:[%s301 + $0x14] sm:$0xf]
      %v472 = vld [vmem:[%s301 + $0x18] sm:$0xf]
      %v473 = vld [vmem:[%s301 + $0x1c] sm:$0xf]
      %v474 = vld [vmem:[%s301 + $0x20] sm:$0xf]
      %v475 = vld [vmem:[%s301 + $0x24] sm:$0xf]
      %v476 = vld [vmem:[%s301 + $0x28] sm:$0xf]
      %v477 = vld [vmem:[%s301 + $0x2c] sm:$0xf]
      %v478 = vld [vmem:[%s301 + $0x30] sm:$0xf]
      %v479 = vld [vmem:[%s301 + $0x34] sm:$0xf]
      %v480 = vld [vmem:[%s301 + $0x38] sm:$0xf]
      %v481 = vld [vmem:[%s301 + $0x3c] sm:$0xf]
      %v498 = vunpack.c.l.b16 %v466
      %v499 = vunpack.c.l.b16 %v467
      %v500 = vunpack.c.l.b16 %v468
      %v501 = vunpack.c.l.b16 %v469
      %v502 = vunpack.c.l.b16 %v470
      %v503 = vunpack.c.l.b16 %v471
      %v504 = vunpack.c.l.b16 %v472
      %v505 = vunpack.c.l.b16 %v473
      %v506 = vunpack.c.l.b16 %v474
      %v507 = vunpack.c.l.b16 %v475
      %v508 = vunpack.c.l.b16 %v476
      %v509 = vunpack.c.l.b16 %v477
      %v510 = vunpack.c.l.b16 %v478
      %v511 = vunpack.c.l.b16 %v479
      %v512 = vunpack.c.l.b16 %v480
      %v513 = vunpack.c.l.b16 %v481
      %v514 = vpack.c.b16 %v499, %v498
      %v515 = vpack.c.b16 %v501, %v500
      %v516 = vpack.c.b16 %v503, %v502
      %v517 = vpack.c.b16 %v505, %v504
      %v518 = vpack.c.b16 %v507, %v506
      %v519 = vpack.c.b16 %v509, %v508
      %v520 = vpack.c.b16 %v511, %v510
      %v521 = vpack.c.b16 %v513, %v512
      %v523 = vsel %vm385, %v514, 0
      %v526 = vsel %vm385, %v515, 0
      %v529 = vsel %vm385, %v516, 0
      %v532 = vsel %vm385, %v517, 0
      %v535 = vsel %vm385, %v518, 0
      %v538 = vsel %vm385, %v519, 0
      %v541 = vsel %vm385, %v520, 0
      %v544 = vsel %vm385, %v521, 0
      %546 = vmatpush.bf16.msra.mxu0 0
      %547 = vmatpush.bf16.msra.mxu0 0
      %548 = vmatpush.bf16.msra.mxu0 0
      %549 = vmatpush.bf16.msra.mxu0 0
      %550 = vmatpush.bf16.msra.mxu0 0
      %551 = vmatpush.bf16.msra.mxu0 0
      %552 = vmatpush.bf16.msra.mxu0 0
      %553 = vmatpush.bf16.msra.mxu0 %v415
      %554 = vmatmul.bf16.gmra.mxu0 %v523
      %v555 = vpop.f32.mrf.mxu0
      %v556 = vadd.f32 0.0, %v555
      %v557 = vpop.f32.mrf.mxu0
      %v558 = vadd.f32 0.0, %v557
      %559 = vmatmul.bf16.gmra.mxu0 %v526
      %v560 = vpop.f32.mrf.mxu0
      %v561 = vadd.f32 0.0, %v560
      %v562 = vpop.f32.mrf.mxu0
      %v563 = vadd.f32 0.0, %v562
      %564 = vmatmul.bf16.gmra.mxu0 %v529
      %v565 = vpop.f32.mrf.mxu0
      %v566 = vadd.f32 0.0, %v565
      %v567 = vpop.f32.mrf.mxu0
      %v568 = vadd.f32 0.0, %v567
      %569 = vmatmul.bf16.gmra.mxu0 %v532
      %v570 = vpop.f32.mrf.mxu0
      %v571 = vadd.f32 0.0, %v570
      %v572 = vpop.f32.mrf.mxu0
      %v573 = vadd.f32 0.0, %v572
      %574 = vmatmul.bf16.gmra.mxu0 %v535
      %v575 = vpop.f32.mrf.mxu0
      %v576 = vadd.f32 0.0, %v575
      %v577 = vpop.f32.mrf.mxu0
      %v578 = vadd.f32 0.0, %v577
      %579 = vmatmul.bf16.gmra.mxu0 %v538
      %v580 = vpop.f32.mrf.mxu0
      %v581 = vadd.f32 0.0, %v580
      %v582 = vpop.f32.mrf.mxu0
      %v583 = vadd.f32 0.0, %v582
      %584 = vmatmul.bf16.gmra.mxu0 %v541
      %v585 = vpop.f32.mrf.mxu0
      %v586 = vadd.f32 0.0, %v585
      %v587 = vpop.f32.mrf.mxu0
      %v588 = vadd.f32 0.0, %v587
      %589 = vmatmul.bf16.gmra.mxu0 %v544
      %v590 = vpop.f32.mrf.mxu0
      %v591 = vadd.f32 0.0, %v590
      %v592 = vpop.f32.mrf.mxu0
      %v593 = vadd.f32 0.0, %v592
      %594 = vdwg.mxu0
      %v595 = vmax.f32 %v427, %v556
      %v596 = vmax.f32 %v429, %v558
      %v597 = vmax.f32 %v432, %v561
      %v598 = vmax.f32 %v434, %v563
      %v599 = vmax.f32 %v437, %v566
      %v600 = vmax.f32 %v439, %v568
      %v601 = vmax.f32 %v442, %v571
      %v602 = vmax.f32 %v444, %v573
      %v603 = vmax.f32 %v447, %v576
      %v604 = vmax.f32 %v449, %v578
      %v605 = vmax.f32 %v452, %v581
      %v606 = vmax.f32 %v454, %v583
      %v607 = vmax.f32 %v457, %v586
      %v608 = vmax.f32 %v459, %v588
      %v609 = vmax.f32 %v462, %v591
      %v610 = vmax.f32 %v464, %v593
      %v611 = vld [vmem:[%s307] sm:$0xf]
      %v612 = vld [vmem:[%s307 + $0x4] sm:$0xf]
      %v613 = vld [vmem:[%s307 + $0x8] sm:$0xf]
      %v614 = vld [vmem:[%s307 + $0xc] sm:$0xf]
      %v615 = vld [vmem:[%s307 + $0x10] sm:$0xf]
      %v616 = vld [vmem:[%s307 + $0x14] sm:$0xf]
      %v617 = vld [vmem:[%s307 + $0x18] sm:$0xf]
      %v618 = vld [vmem:[%s307 + $0x1c] sm:$0xf]
      %v619 = vld [vmem:[%s307 + $0x20] sm:$0xf]
      %v620 = vld [vmem:[%s307 + $0x24] sm:$0xf]
      %v621 = vld [vmem:[%s307 + $0x28] sm:$0xf]
      %v622 = vld [vmem:[%s307 + $0x2c] sm:$0xf]
      %v623 = vld [vmem:[%s307 + $0x30] sm:$0xf]
      %v624 = vld [vmem:[%s307 + $0x34] sm:$0xf]
      %v625 = vld [vmem:[%s307 + $0x38] sm:$0xf]
      %v626 = vld [vmem:[%s307 + $0x3c] sm:$0xf]
      %v643 = vunpack.c.l.b16 %v611
      %v644 = vunpack.c.l.b16 %v612
      %v645 = vunpack.c.l.b16 %v613
      %v646 = vunpack.c.l.b16 %v614
      %v647 = vunpack.c.l.b16 %v615
      %v648 = vunpack.c.l.b16 %v616
      %v649 = vunpack.c.l.b16 %v617
      %v650 = vunpack.c.l.b16 %v618
      %v651 = vunpack.c.l.b16 %v619
      %v652 = vunpack.c.l.b16 %v620
      %v653 = vunpack.c.l.b16 %v621
      %v654 = vunpack.c.l.b16 %v622
      %v655 = vunpack.c.l.b16 %v623
      %v656 = vunpack.c.l.b16 %v624
      %v657 = vunpack.c.l.b16 %v625
      %v658 = vunpack.c.l.b16 %v626
      %v659 = vpack.c.b16 %v644, %v643
      %v660 = vpack.c.b16 %v646, %v645
      %v661 = vpack.c.b16 %v648, %v647
      %v662 = vpack.c.b16 %v650, %v649
      %v663 = vpack.c.b16 %v652, %v651
      %v664 = vpack.c.b16 %v654, %v653
      %v665 = vpack.c.b16 %v656, %v655
      %v666 = vpack.c.b16 %v658, %v657
      %v668 = vsel %vm385, %v659, 0
      %v671 = vsel %vm385, %v660, 0
      %v674 = vsel %vm385, %v661, 0
      %v677 = vsel %vm385, %v662, 0
      %v680 = vsel %vm385, %v663, 0
      %v683 = vsel %vm385, %v664, 0
      %v686 = vsel %vm385, %v665, 0
      %v689 = vsel %vm385, %v666, 0
      %691 = vmatpush.bf16.msra.mxu0 0
      %692 = vmatpush.bf16.msra.mxu0 0
      %693 = vmatpush.bf16.msra.mxu0 0
      %694 = vmatpush.bf16.msra.mxu0 0
      %695 = vmatpush.bf16.msra.mxu0 0
      %696 = vmatpush.bf16.msra.mxu0 0
      %697 = vmatpush.bf16.msra.mxu0 0
      %698 = vmatpush.bf16.msra.mxu0 %v415
      %699 = vmatmul.bf16.gmra.mxu0 %v668
      %v700 = vpop.f32.mrf.mxu0
      %v701 = vadd.f32 0.0, %v700
      %v702 = vpop.f32.mrf.mxu0
      %v703 = vadd.f32 0.0, %v702
      %704 = vmatmul.bf16.gmra.mxu0 %v671
      %v705 = vpop.f32.mrf.mxu0
      %v706 = vadd.f32 0.0, %v705
      %v707 = vpop.f32.mrf.mxu0
      %v708 = vadd.f32 0.0, %v707
      %709 = vmatmul.bf16.gmra.mxu0 %v674
      %v710 = vpop.f32.mrf.mxu0
      %v711 = vadd.f32 0.0, %v710
      %v712 = vpop.f32.mrf.mxu0
      %v713 = vadd.f32 0.0, %v712
      %714 = vmatmul.bf16.gmra.mxu0 %v677
      %v715 = vpop.f32.mrf.mxu0
      %v716 = vadd.f32 0.0, %v715
      %v717 = vpop.f32.mrf.mxu0
      %v718 = vadd.f32 0.0, %v717
      %719 = vmatmul.bf16.gmra.mxu0 %v680
      %v720 = vpop.f32.mrf.mxu0
      %v721 = vadd.f32 0.0, %v720
      %v722 = vpop.f32.mrf.mxu0
      %v723 = vadd.f32 0.0, %v722
      %724 = vmatmul.bf16.gmra.mxu0 %v683
      %v725 = vpop.f32.mrf.mxu0
      %v726 = vadd.f32 0.0, %v725
      %v727 = vpop.f32.mrf.mxu0
      %v728 = vadd.f32 0.0, %v727
      %729 = vmatmul.bf16.gmra.mxu0 %v686
      %v730 = vpop.f32.mrf.mxu0
      %v731 = vadd.f32 0.0, %v730
      %v732 = vpop.f32.mrf.mxu0
      %v733 = vadd.f32 0.0, %v732
      %734 = vmatmul.bf16.gmra.mxu0 %v689
      %v735 = vpop.f32.mrf.mxu0
      %v736 = vadd.f32 0.0, %v735
      %v737 = vpop.f32.mrf.mxu0
      %v738 = vadd.f32 0.0, %v737
      %739 = vdwg.mxu0
      %v740 = vmax.f32 %v595, %v701
      %v741 = vmax.f32 %v596, %v703
      %v742 = vmax.f32 %v597, %v706
      %v743 = vmax.f32 %v598, %v708
      %v744 = vmax.f32 %v599, %v711
      %v745 = vmax.f32 %v600, %v713
      %v746 = vmax.f32 %v601, %v716
      %v747 = vmax.f32 %v602, %v718
      %v748 = vmax.f32 %v603, %v721
      %v749 = vmax.f32 %v604, %v723
      %v750 = vmax.f32 %v605, %v726
      %v751 = vmax.f32 %v606, %v728
      %v752 = vmax.f32 %v607, %v731
      %v753 = vmax.f32 %v608, %v733
      %v754 = vmax.f32 %v609, %v736
      %v755 = vmax.f32 %v610, %v738
      %v756 = vld [vmem:[%s313] sm:$0xf]
      %v757 = vld [vmem:[%s313 + $0x4] sm:$0xf]
      %v758 = vld [vmem:[%s313 + $0x8] sm:$0xf]
      %v759 = vld [vmem:[%s313 + $0xc] sm:$0xf]
      %v760 = vld [vmem:[%s313 + $0x10] sm:$0xf]
      %v761 = vld [vmem:[%s313 + $0x14] sm:$0xf]
      %v762 = vld [vmem:[%s313 + $0x18] sm:$0xf]
      %v763 = vld [vmem:[%s313 + $0x1c] sm:$0xf]
      %v764 = vld [vmem:[%s313 + $0x20] sm:$0xf]
      %v765 = vld [vmem:[%s313 + $0x24] sm:$0xf]
      %v766 = vld [vmem:[%s313 + $0x28] sm:$0xf]
      %v767 = vld [vmem:[%s313 + $0x2c] sm:$0xf]
      %v768 = vld [vmem:[%s313 + $0x30] sm:$0xf]
      %v769 = vld [vmem:[%s313 + $0x34] sm:$0xf]
      %v770 = vld [vmem:[%s313 + $0x38] sm:$0xf]
      %v771 = vld [vmem:[%s313 + $0x3c] sm:$0xf]
      %v788 = vunpack.c.l.b16 %v756
      %v789 = vunpack.c.l.b16 %v757
      %v790 = vunpack.c.l.b16 %v758
      %v791 = vunpack.c.l.b16 %v759
      %v792 = vunpack.c.l.b16 %v760
      %v793 = vunpack.c.l.b16 %v761
      %v794 = vunpack.c.l.b16 %v762
      %v795 = vunpack.c.l.b16 %v763
      %v796 = vunpack.c.l.b16 %v764
      %v797 = vunpack.c.l.b16 %v765
      %v798 = vunpack.c.l.b16 %v766
      %v799 = vunpack.c.l.b16 %v767
      %v800 = vunpack.c.l.b16 %v768
      %v801 = vunpack.c.l.b16 %v769
      %v802 = vunpack.c.l.b16 %v770
      %v803 = vunpack.c.l.b16 %v771
      %v804 = vpack.c.b16 %v789, %v788
      %v805 = vpack.c.b16 %v791, %v790
      %v806 = vpack.c.b16 %v793, %v792
      %v807 = vpack.c.b16 %v795, %v794
      %v808 = vpack.c.b16 %v797, %v796
      %v809 = vpack.c.b16 %v799, %v798
      %v810 = vpack.c.b16 %v801, %v800
      %v811 = vpack.c.b16 %v803, %v802
      %v813 = vsel %vm385, %v804, 0
      %v816 = vsel %vm385, %v805, 0
      %v819 = vsel %vm385, %v806, 0
      %v822 = vsel %vm385, %v807, 0
      %v825 = vsel %vm385, %v808, 0
      %v828 = vsel %vm385, %v809, 0
      %v831 = vsel %vm385, %v810, 0
      %v834 = vsel %vm385, %v811, 0
      %836 = vmatpush.bf16.msra.mxu0 0
      %837 = vmatpush.bf16.msra.mxu0 0
      %838 = vmatpush.bf16.msra.mxu0 0
      %839 = vmatpush.bf16.msra.mxu0 0
      %840 = vmatpush.bf16.msra.mxu0 0
      %841 = vmatpush.bf16.msra.mxu0 0
      %842 = vmatpush.bf16.msra.mxu0 0
      %843 = vmatpush.bf16.msra.mxu0 %v415
      %844 = vmatmul.bf16.gmra.mxu0 %v813
      %v845 = vpop.f32.mrf.mxu0
      %v846 = vadd.f32 0.0, %v845
      %v847 = vpop.f32.mrf.mxu0
      %v848 = vadd.f32 0.0, %v847
      %849 = vmatmul.bf16.gmra.mxu0 %v816
      %v850 = vpop.f32.mrf.mxu0
      %v851 = vadd.f32 0.0, %v850
      %v852 = vpop.f32.mrf.mxu0
      %v853 = vadd.f32 0.0, %v852
      %854 = vmatmul.bf16.gmra.mxu0 %v819
      %v855 = vpop.f32.mrf.mxu0
      %v856 = vadd.f32 0.0, %v855
      %v857 = vpop.f32.mrf.mxu0
      %v858 = vadd.f32 0.0, %v857
      %859 = vmatmul.bf16.gmra.mxu0 %v822
      %v860 = vpop.f32.mrf.mxu0
      %v861 = vadd.f32 0.0, %v860
      %v862 = vpop.f32.mrf.mxu0
      %v863 = vadd.f32 0.0, %v862
      %864 = vmatmul.bf16.gmra.mxu0 %v825
      %v865 = vpop.f32.mrf.mxu0
      %v866 = vadd.f32 0.0, %v865
      %v867 = vpop.f32.mrf.mxu0
      %v868 = vadd.f32 0.0, %v867
      %869 = vmatmul.bf16.gmra.mxu0 %v828
      %v870 = vpop.f32.mrf.mxu0
      %v871 = vadd.f32 0.0, %v870
      %v872 = vpop.f32.mrf.mxu0
      %v873 = vadd.f32 0.0, %v872
      %874 = vmatmul.bf16.gmra.mxu0 %v831
      %v875 = vpop.f32.mrf.mxu0
      %v876 = vadd.f32 0.0, %v875
      %v877 = vpop.f32.mrf.mxu0
      %v878 = vadd.f32 0.0, %v877
      %879 = vmatmul.bf16.gmra.mxu0 %v834
      %v880 = vpop.f32.mrf.mxu0
      %v881 = vadd.f32 0.0, %v880
      %v882 = vpop.f32.mrf.mxu0
      %v883 = vadd.f32 0.0, %v882
      %884 = vdwg.mxu0
      %v885 = vmax.f32 %v740, %v846
      %v886 = vmax.f32 %v741, %v848
      %v887 = vmax.f32 %v742, %v851
      %v888 = vmax.f32 %v743, %v853
      %v889 = vmax.f32 %v744, %v856
      %v890 = vmax.f32 %v745, %v858
      %v891 = vmax.f32 %v746, %v861
      %v892 = vmax.f32 %v747, %v863
      %v893 = vmax.f32 %v748, %v866
      %v894 = vmax.f32 %v749, %v868
      %v895 = vmax.f32 %v750, %v871
      %v896 = vmax.f32 %v751, %v873
      %v897 = vmax.f32 %v752, %v876
      %v898 = vmax.f32 %v753, %v878
      %v899 = vmax.f32 %v754, %v881
      %v900 = vmax.f32 %v755, %v883
      %v901 = vld [vmem:[%s5] sm:$0x1]
      %v903 = vperm.slane %v901, 0
      %v905 = vadd.f32 %v885, %v903
      %v906 = vadd.f32 %v886, %v903
      %v907 = vadd.f32 %v887, %v903
      %v908 = vadd.f32 %v888, %v903
      %v909 = vadd.f32 %v889, %v903
      %v910 = vadd.f32 %v890, %v903
      %v911 = vadd.f32 %v891, %v903
      %v912 = vadd.f32 %v892, %v903
      %v913 = vadd.f32 %v893, %v903
      %v914 = vadd.f32 %v894, %v903
      %v915 = vadd.f32 %v895, %v903
      %v916 = vadd.f32 %v896, %v903
      %v917 = vadd.f32 %v897, %v903
      %v918 = vadd.f32 %v898, %v903
      %v919 = vadd.f32 %v899, %v903
      %v920 = vadd.f32 %v900, %v903
      %v921 = vmax.f32 %v905, 0.0
      %v922 = vmax.f32 %v906, 0.0
      %v923 = vmax.f32 %v907, 0.0
      %v924 = vmax.f32 %v908, 0.0
      %v925 = vmax.f32 %v909, 0.0
      %v926 = vmax.f32 %v910, 0.0
      %v927 = vmax.f32 %v911, 0.0
      %v928 = vmax.f32 %v912, 0.0
      %v929 = vmax.f32 %v913, 0.0
      %v930 = vmax.f32 %v914, 0.0
      %v931 = vmax.f32 %v915, 0.0
      %v932 = vmax.f32 %v916, 0.0
      %v933 = vmax.f32 %v917, 0.0
      %v934 = vmax.f32 %v918, 0.0
      %v935 = vmax.f32 %v919, 0.0
      %v936 = vmax.f32 %v920, 0.0
      %v937 = vpack.c.bf16 %v921, %v921
      %v938 = vpack.c.bf16 %v922, %v922
      %v939 = vpack.c.bf16 %v923, %v923
      %v940 = vpack.c.bf16 %v924, %v924
      %v941 = vpack.c.bf16 %v925, %v925
      %v942 = vpack.c.bf16 %v926, %v926
      %v943 = vpack.c.bf16 %v927, %v927
      %v944 = vpack.c.bf16 %v928, %v928
      %v945 = vpack.c.bf16 %v929, %v929
      %v946 = vpack.c.bf16 %v930, %v930
      %v947 = vpack.c.bf16 %v931, %v931
      %v948 = vpack.c.bf16 %v932, %v932
      %v949 = vpack.c.bf16 %v933, %v933
      %v950 = vpack.c.bf16 %v934, %v934
      %v951 = vpack.c.bf16 %v935, %v935
      %v952 = vpack.c.bf16 %v936, %v936
      %vm953 = vcmask 257024
      %954 = vst.msk [vmem:[%s319] sm:$0xf] %vm953, %v937
      %955 = vst.msk [vmem:[%s319 + $0x4] sm:$0xf] %vm953, %v938
      %956 = vst.msk [vmem:[%s319 + $0x8] sm:$0xf] %vm953, %v939
      %957 = vst.msk [vmem:[%s319 + $0xc] sm:$0xf] %vm953, %v940
      %958 = vst.msk [vmem:[%s319 + $0x10] sm:$0xf] %vm953, %v941
      %959 = vst.msk [vmem:[%s319 + $0x14] sm:$0xf] %vm953, %v942
      %960 = vst.msk [vmem:[%s319 + $0x18] sm:$0xf] %vm953, %v943
      %961 = vst.msk [vmem:[%s319 + $0x1c] sm:$0xf] %vm953, %v944
      %962 = vst.msk [vmem:[%s319 + $0x20] sm:$0xf] %vm953, %v945
      %963 = vst.msk [vmem:[%s319 + $0x24] sm:$0xf] %vm953, %v946
      %964 = vst.msk [vmem:[%s319 + $0x28] sm:$0xf] %vm953, %v947
      %965 = vst.msk [vmem:[%s319 + $0x2c] sm:$0xf] %vm953, %v948
      %966 = vst.msk [vmem:[%s319 + $0x30] sm:$0xf] %vm953, %v949
      %967 = vst.msk [vmem:[%s319 + $0x34] sm:$0xf] %vm953, %v950
      %968 = vst.msk [vmem:[%s319 + $0x38] sm:$0xf] %vm953, %v951
      %969 = vst.msk [vmem:[%s319 + $0x3c] sm:$0xf] %vm953, %v952
      %s970 = smul.u32 16, %s17
      %p971 = scmp.lt.s32.totalorder %s970, 63
      %s972 = scalar_select %p971, %s970, 63
      %s973 = smul.addr %s972, 4
      %s974 = scalar_lea.vmem %s6, %s973
      // Predicated region
      $region45: #{simple_cnn_forward.3} parent=43 // pred_check
        %p975 = pneg %p181
      $region46: #{simple_cnn_forward.3} parent=43 // pred_check_branch
        %977 = sbr.rel (%p975) target = $region48
      $region47: #{simple_cnn_forward.3} parent=43 // pred_region
        %s978 = smul.u32 16, %s17
      $region48: #{simple_cnn_forward.3} parent=43 // pred_fallthru
        _
    $region44: #{simple_cnn_forward.3} parent=5 // pred_fallthru
      _
    %p979 = scmp.le.s32.totalorder 2, %s12
    // Predicated region
    $region49: #{simple_cnn_forward.3} parent=5 // pred_check
      %p980 = pneg %p979
    $region50: #{simple_cnn_forward.3} parent=5 // pred_check_branch
      %982 = sbr.rel (%p980) target = $region52
    $region51: #{simple_cnn_forward.3} parent=5 // pred_region
      %s983 = ssub.s32 %s12, 2
      // Predicated region
      $region53: #{simple_cnn_forward.3} parent=51 // pred_check
        %p984 = pneg %p187
      $region54: #{simple_cnn_forward.3} parent=51 // pred_check_branch
        %986 = sbr.rel (%p984) target = $region56
      $region55: #{simple_cnn_forward.3} parent=51 // pred_region
        %s987 = smul.u32 16, %s18
        %p988 = scmp.lt.s32.totalorder %s987, 63
        %s989 = scalar_select %p988, %s987, 63
        %s990 = smul.addr %s989, 4
        %s991 = scalar_lea.vmem %s6, %s990
      $region56: #{simple_cnn_forward.3} parent=51 // pred_fallthru
        _
    $region52: #{simple_cnn_forward.3} parent=5 // pred_fallthru
      _
  $region6: #{simple_cnn_forward.3} parent=0 // loop_footer
    %s16 = sadd.s32 1, %s12
  $region7: #{simple_cnn_forward.3} parent=0 // loop_footer_branch
    %11 = sbr.rel target = $region3
  $region8: #{simple_cnn_forward.3} parent=0 // loop_exit
    _

// kernel: simple_cnn_forward.4
$region0: #{simple_cnn_forward.4}
  #allocation0 [shape = 'u32[]', space=smem, size = 0x4, offset = 0x4, fixed_abs, tag = 'smem constant byte address 0x4 - core index']
  #allocation1 [shape = 'u32[72,128]{1,0:T(1,128)}', space=vmem, size = 0x9000, scoped, tag = 'internal scratch']
  %s0 = inlined_call_operand.vmem [shape: bf16[104,288], index: 0, kind: input, shape index: {}]
  %s1 = inlined_call_operand.vmem [shape: bf16[104,288], index: 1, kind: input, shape index: {}]
  %s2 = inlined_call_operand.vmem [shape: bf16[104,288], index: 2, kind: input, shape index: {}]
  %s3 = inlined_call_operand.vmem [shape: bf16[104,288], index: 3, kind: input, shape index: {}]
  %s4 = inlined_call_operand.vmem [shape: bf16[288,64], index: 4, kind: input, shape index: {}]
  %s5 = inlined_call_operand.vmem [shape: f32[1,64], index: 5, kind: input, shape index: {}]
  %s6 = inlined_call_operand.vmem [shape: bf16[104,64], index: 6, kind: output, shape index: {}]
  %s7 = sld [smem:[#allocation0]]
  $region34: #{simple_cnn_forward.4} parent=0
    _
  %s9 = ssub.s32 1, %s7
  %s10 = scalar_select 0, %s9, %s7
  // Predicated region
  $region2: #{simple_cnn_forward.4} parent=0 // pred_check
    _
  $region3: #{simple_cnn_forward.4} parent=0 // pred_check_branch
    %12 = sbr.rel (0) target = $region5
  $region4: #{simple_cnn_forward.4} parent=0 // pred_region
    _
  $region5: #{simple_cnn_forward.4} parent=0 // pred_fallthru
    _
  // Predicated region
  $region6: #{simple_cnn_forward.4} parent=0 // pred_check
    _
  $region7: #{simple_cnn_forward.4} parent=0 // pred_check_branch
    %14 = sbr.rel (0) target = $region9
  $region8: #{simple_cnn_forward.4} parent=0 // pred_region
    _
  $region9: #{simple_cnn_forward.4} parent=0 // pred_fallthru
    _
  // Predicated region
  $region10: #{simple_cnn_forward.4} parent=0 // pred_check
    _
  $region11: #{simple_cnn_forward.4} parent=0 // pred_check_branch
    %16 = sbr.rel (0) target = $region13
  $region12: #{simple_cnn_forward.4} parent=0 // pred_region
    _
  $region13: #{simple_cnn_forward.4} parent=0 // pred_fallthru
    _
  // Predicated region
  $region14: #{simple_cnn_forward.4} parent=0 // pred_check
    _
  $region15: #{simple_cnn_forward.4} parent=0 // pred_check_branch
    %18 = sbr.rel (0) target = $region17
  $region16: #{simple_cnn_forward.4} parent=0 // pred_region
    _
  $region17: #{simple_cnn_forward.4} parent=0 // pred_fallthru
    _
  // Predicated region
  $region18: #{simple_cnn_forward.4} parent=0 // pred_check
    _
  $region19: #{simple_cnn_forward.4} parent=0 // pred_check_branch
    %20 = sbr.rel (0) target = $region21
  $region20: #{simple_cnn_forward.4} parent=0 // pred_region
    _
  $region21: #{simple_cnn_forward.4} parent=0 // pred_fallthru
    _
  // Predicated region
  $region22: #{simple_cnn_forward.4} parent=0 // pred_check
    _
  $region23: #{simple_cnn_forward.4} parent=0 // pred_check_branch
    %22 = sbr.rel (0) target = $region25
  $region24: #{simple_cnn_forward.4} parent=0 // pred_region
    _
  $region25: #{simple_cnn_forward.4} parent=0 // pred_fallthru
    _
  %v24 = vld [vmem:[%s4] sm:$0xf]
  %v25 = vld [vmem:[%s4 + $0x4] sm:$0xf]
  %v26 = vld [vmem:[%s4 + $0x8] sm:$0xf]
  %v27 = vld [vmem:[%s4 + $0xc] sm:$0xf]
  %v28 = vld [vmem:[%s4 + $0x10] sm:$0xf]
  %v29 = vld [vmem:[%s4 + $0x14] sm:$0xf]
  %v30 = vld [vmem:[%s4 + $0x18] sm:$0xf]
  %v31 = vld [vmem:[%s4 + $0x1c] sm:$0xf]
  %v32 = vld [vmem:[%s4 + $0x20] sm:$0xf]
  %v33 = vld [vmem:[%s4 + $0x24] sm:$0xf]
  %v34 = vld [vmem:[%s4 + $0x28] sm:$0xf]
  %v35 = vld [vmem:[%s4 + $0x2c] sm:$0xf]
  %v36 = vld [vmem:[%s4 + $0x30] sm:$0xf]
  %v37 = vld [vmem:[%s4 + $0x34] sm:$0xf]
  %v38 = vld [vmem:[%s4 + $0x38] sm:$0xf]
  %v39 = vld [vmem:[%s4 + $0x3c] sm:$0xf]
  %v40 = vld [vmem:[%s4 + $0x40] sm:$0xf]
  %v41 = vld [vmem:[%s4 + $0x44] sm:$0xf]
  %v42 = vld [vmem:[%s4 + $0x48] sm:$0xf]
  %v43 = vld [vmem:[%s4 + $0x4c] sm:$0xf]
  %v44 = vld [vmem:[%s4 + $0x50] sm:$0xf]
  %v45 = vld [vmem:[%s4 + $0x54] sm:$0xf]
  %v46 = vld [vmem:[%s4 + $0x58] sm:$0xf]
  %v47 = vld [vmem:[%s4 + $0x5c] sm:$0xf]
  %v48 = vld [vmem:[%s4 + $0x60] sm:$0xf]
  %v49 = vld [vmem:[%s4 + $0x64] sm:$0xf]
  %v50 = vld [vmem:[%s4 + $0x68] sm:$0xf]
  %v51 = vld [vmem:[%s4 + $0x6c] sm:$0xf]
  %v52 = vld [vmem:[%s4 + $0x70] sm:$0xf]
  %v53 = vld [vmem:[%s4 + $0x74] sm:$0xf]
  %v54 = vld [vmem:[%s4 + $0x78] sm:$0xf]
  %v55 = vld [vmem:[%s4 + $0x7c] sm:$0xf]
  %v56 = vld [vmem:[%s4 + $0x80] sm:$0xf]
  %v57 = vld [vmem:[%s4 + $0x84] sm:$0xf]
  %v58 = vld [vmem:[%s4 + $0x88] sm:$0xf]
  %v59 = vld [vmem:[%s4 + $0x8c] sm:$0xf]
  %v60 = vld [vmem:[%s0] sm:$0xff]
  %v61 = vld [vmem:[%s0 + $0x8] sm:$0xf]
  %v62 = vld [vmem:[%s0 + $0xc] sm:$0xff]
  %v63 = vld [vmem:[%s0 + $0x14] sm:$0xf]
  %v64 = vld [vmem:[%s0 + $0x18] sm:$0xff]
  %v65 = vld [vmem:[%s0 + $0x20] sm:$0xf]
  %v66 = vld [vmem:[%s0 + $0x24] sm:$0xff]
  %v67 = vld [vmem:[%s0 + $0x2c] sm:$0xf]
  %v68 = vld [vmem:[%s0 + $0x30] sm:$0xff]
  %v69 = vld [vmem:[%s0 + $0x38] sm:$0xf]
  %v70 = vld [vmem:[%s0 + $0x3c] sm:$0xff]
  %v71 = vld [vmem:[%s0 + $0x44] sm:$0xf]
  %v72 = vld [vmem:[%s0 + $0x48] sm:$0xff]
  %v73 = vld [vmem:[%s0 + $0x50] sm:$0xf]
  %v74 = vld [vmem:[%s0 + $0x54] sm:$0xff]
  %v75 = vld [vmem:[%s0 + $0x5c] sm:$0xf]
  %v76 = vld [vmem:[%s0 + $0x60] sm:$0xff]
  %v77 = vld [vmem:[%s0 + $0x68] sm:$0xf]
  %v78 = vld [vmem:[%s0 + $0x6c] sm:$0xff]
  %v79 = vld [vmem:[%s0 + $0x74] sm:$0xf]
  %v80 = vld [vmem:[%s0 + $0x78] sm:$0xff]
  %v81 = vld [vmem:[%s0 + $0x80] sm:$0xf]
  %v82 = vld [vmem:[%s0 + $0x84] sm:$0xff]
  %v83 = vld [vmem:[%s0 + $0x8c] sm:$0xf]
  %v84 = vld [vmem:[%s0 + $0x90] sm:$0xff]
  %v85 = vld [vmem:[%s0 + $0x98] sm:$0xf]
  %v112 = vunpack.c.l.b16 %v60
  %v113 = vunpack.c.h.b16 %v60
  %v114 = vunpack.c.l.b16 %v61
  %v115 = vunpack.c.l.b16 %v62
  %v116 = vunpack.c.h.b16 %v62
  %v117 = vunpack.c.l.b16 %v63
  %v118 = vunpack.c.l.b16 %v64
  %v119 = vunpack.c.h.b16 %v64
  %v120 = vunpack.c.l.b16 %v65
  %v121 = vunpack.c.l.b16 %v66
  %v122 = vunpack.c.h.b16 %v66
  %v123 = vunpack.c.l.b16 %v67
  %v124 = vunpack.c.l.b16 %v68
  %v125 = vunpack.c.h.b16 %v68
  %v126 = vunpack.c.l.b16 %v69
  %v127 = vunpack.c.l.b16 %v70
  %v128 = vunpack.c.h.b16 %v70
  %v129 = vunpack.c.l.b16 %v71
  %v130 = vunpack.c.l.b16 %v72
  %v131 = vunpack.c.h.b16 %v72
  %v132 = vunpack.c.l.b16 %v73
  %v133 = vunpack.c.l.b16 %v74
  %v134 = vunpack.c.h.b16 %v74
  %v135 = vunpack.c.l.b16 %v75
  %v136 = vunpack.c.l.b16 %v76
  %v137 = vunpack.c.h.b16 %v76
  %v138 = vunpack.c.l.b16 %v77
  %v139 = vunpack.c.l.b16 %v78
  %v140 = vunpack.c.h.b16 %v78
  %v141 = vunpack.c.l.b16 %v79
  %v142 = vunpack.c.l.b16 %v80
  %v143 = vunpack.c.h.b16 %v80
  %v144 = vunpack.c.l.b16 %v81
  %v145 = vunpack.c.l.b16 %v82
  %v146 = vunpack.c.h.b16 %v82
  %v147 = vunpack.c.l.b16 %v83
  %v148 = vunpack.c.l.b16 %v84
  %v149 = vunpack.c.h.b16 %v84
  %v150 = vunpack.c.l.b16 %v85
  %v151 = vpack.c.b16 %v115, %v112
  %v152 = vpack.c.b16 %v116, %v113
  %v153 = vpack.c.b16 %v117, %v114
  %v154 = vpack.c.b16 %v121, %v118
  %v155 = vpack.c.b16 %v122, %v119
  %v156 = vpack.c.b16 %v123, %v120
  %v157 = vpack.c.b16 %v127, %v124
  %v158 = vpack.c.b16 %v128, %v125
  %v159 = vpack.c.b16 %v129, %v126
  %v160 = vpack.c.b16 %v133, %v130
  %v161 = vpack.c.b16 %v134, %v131
  %v162 = vpack.c.b16 %v135, %v132
  %v163 = vpack.c.b16 %v139, %v136
  %v164 = vpack.c.b16 %v140, %v137
  %v165 = vpack.c.b16 %v141, %v138
  %v166 = vpack.c.b16 %v145, %v142
  %v167 = vpack.c.b16 %v146, %v143
  %v168 = vpack.c.b16 %v147, %v144
  %v169 = vpack.c.b16 %v148, %v148
  %v170 = vpack.c.b16 %v149, %v149
  %v171 = vpack.c.b16 %v150, %v150
  %v222 = vunpack.c.l.b16 %v24
  %v223 = vunpack.c.l.b16 %v25
  %v224 = vunpack.c.l.b16 %v26
  %v225 = vunpack.c.l.b16 %v27
  %v226 = vunpack.c.l.b16 %v28
  %v227 = vunpack.c.l.b16 %v29
  %v228 = vunpack.c.l.b16 %v30
  %v229 = vunpack.c.l.b16 %v31
  %v230 = vunpack.c.l.b16 %v32
  %v231 = vunpack.c.l.b16 %v33
  %v232 = vunpack.c.l.b16 %v34
  %v233 = vunpack.c.l.b16 %v35
  %v234 = vunpack.c.l.b16 %v36
  %v235 = vunpack.c.l.b16 %v37
  %v236 = vunpack.c.l.b16 %v38
  %v237 = vunpack.c.l.b16 %v39
  %v238 = vunpack.c.l.b16 %v40
  %v239 = vunpack.c.l.b16 %v41
  %v240 = vunpack.c.l.b16 %v42
  %v241 = vunpack.c.l.b16 %v43
  %v242 = vunpack.c.l.b16 %v44
  %v243 = vunpack.c.l.b16 %v45
  %v244 = vunpack.c.l.b16 %v46
  %v245 = vunpack.c.l.b16 %v47
  %v246 = vunpack.c.l.b16 %v48
  %v247 = vunpack.c.l.b16 %v49
  %v248 = vunpack.c.l.b16 %v50
  %v249 = vunpack.c.l.b16 %v51
  %v250 = vunpack.c.l.b16 %v52
  %v251 = vunpack.c.l.b16 %v53
  %v252 = vunpack.c.l.b16 %v54
  %v253 = vunpack.c.l.b16 %v55
  %v254 = vunpack.c.l.b16 %v56
  %v255 = vunpack.c.l.b16 %v57
  %v256 = vunpack.c.l.b16 %v58
  %v257 = vunpack.c.l.b16 %v59
  %v258 = vpack.c.b16 %v223, %v222
  %v259 = vpack.c.b16 %v225, %v224
  %v260 = vpack.c.b16 %v227, %v226
  %v261 = vpack.c.b16 %v229, %v228
  %v262 = vpack.c.b16 %v231, %v230
  %v263 = vpack.c.b16 %v233, %v232
  %v264 = vpack.c.b16 %v235, %v234
  %v265 = vpack.c.b16 %v237, %v236
  %v266 = vpack.c.b16 %v239, %v238
  %v267 = vpack.c.b16 %v241, %v240
  %v268 = vpack.c.b16 %v243, %v242
  %v269 = vpack.c.b16 %v245, %v244
  %v270 = vpack.c.b16 %v247, %v246
  %v271 = vpack.c.b16 %v249, %v248
  %v272 = vpack.c.b16 %v251, %v250
  %v273 = vpack.c.b16 %v253, %v252
  %v274 = vpack.c.b16 %v255, %v254
  %v275 = vpack.c.b16 %v257, %v256
  %vm294 = vcmask 261120
  %v296 = vsel %vm294, %v153, 0
  %v299 = vsel %vm294, %v156, 0
  %v302 = vsel %vm294, %v159, 0
  %v305 = vsel %vm294, %v162, 0
  %v308 = vsel %vm294, %v165, 0
  %v311 = vsel %vm294, %v168, 0
  %v314 = vsel %vm294, %v171, 0
  %316 = vmatpush.bf16.msra.mxu0 %v265
  %317 = vmatpush.bf16.msra.mxu0 %v264
  %318 = vmatpush.bf16.msra.mxu0 %v263
  %319 = vmatpush.bf16.msra.mxu0 %v262
  %320 = vmatpush.bf16.msra.mxu0 %v261
  %321 = vmatpush.bf16.msra.mxu0 %v260
  %322 = vmatpush.bf16.msra.mxu0 %v259
  %323 = vmatpush.bf16.msra.mxu0 %v258
  %324 = vmatmul.bf16.gmra.mxu0 %v151
  %v325 = vpop.f32.mrf.mxu0
  %v326 = vadd.f32 0.0, %v325
  %v327 = vpop.f32.mrf.mxu0
  %v328 = vadd.f32 0.0, %v327
  %329 = vmatmul.bf16.gmra.mxu0 %v154
  %v330 = vpop.f32.mrf.mxu0
  %v331 = vadd.f32 0.0, %v330
  %v332 = vpop.f32.mrf.mxu0
  %v333 = vadd.f32 0.0, %v332
  %334 = vmatmul.bf16.gmra.mxu0 %v157
  %v335 = vpop.f32.mrf.mxu0
  %v336 = vadd.f32 0.0, %v335
  %v337 = vpop.f32.mrf.mxu0
  %v338 = vadd.f32 0.0, %v337
  %339 = vmatmul.bf16.gmra.mxu0 %v160
  %v340 = vpop.f32.mrf.mxu0
  %v341 = vadd.f32 0.0, %v340
  %v342 = vpop.f32.mrf.mxu0
  %v343 = vadd.f32 0.0, %v342
  %344 = vmatmul.bf16.gmra.mxu0 %v163
  %v345 = vpop.f32.mrf.mxu0
  %v346 = vadd.f32 0.0, %v345
  %v347 = vpop.f32.mrf.mxu0
  %v348 = vadd.f32 0.0, %v347
  %349 = vmatmul.bf16.gmra.mxu0 %v166
  %v350 = vpop.f32.mrf.mxu0
  %v351 = vadd.f32 0.0, %v350
  %v352 = vpop.f32.mrf.mxu0
  %v353 = vadd.f32 0.0, %v352
  %354 = vmatmul.bf16.gmra.mxu0 %v169
  %v355 = vpop.f32.mrf.mxu0
  %v356 = vadd.f32 0.0, %v355
  %v357 = vpop.f32.mrf.mxu0
  %358 = vdwg.mxu0
  %359 = vmatpush.bf16.msra.mxu0 %v273
  %360 = vmatpush.bf16.msra.mxu0 %v272
  %361 = vmatpush.bf16.msra.mxu0 %v271
  %362 = vmatpush.bf16.msra.mxu0 %v270
  %363 = vmatpush.bf16.msra.mxu0 %v269
  %364 = vmatpush.bf16.msra.mxu0 %v268
  %365 = vmatpush.bf16.msra.mxu0 %v267
  %366 = vmatpush.bf16.msra.mxu0 %v266
  %367 = vmatmul.bf16.gmra.mxu0 %v152
  %v368 = vpop.f32.mrf.mxu0
  %v369 = vadd.f32 %v326, %v368
  %v370 = vpop.f32.mrf.mxu0
  %v371 = vadd.f32 %v328, %v370
  %372 = vmatmul.bf16.gmra.mxu0 %v155
  %v373 = vpop.f32.mrf.mxu0
  %v374 = vadd.f32 %v331, %v373
  %v375 = vpop.f32.mrf.mxu0
  %v376 = vadd.f32 %v333, %v375
  %377 = vmatmul.bf16.gmra.mxu0 %v158
  %v378 = vpop.f32.mrf.mxu0
  %v379 = vadd.f32 %v336, %v378
  %v380 = vpop.f32.mrf.mxu0
  %v381 = vadd.f32 %v338, %v380
  %382 = vmatmul.bf16.gmra.mxu0 %v161
  %v383 = vpop.f32.mrf.mxu0
  %v384 = vadd.f32 %v341, %v383
  %v385 = vpop.f32.mrf.mxu0
  %v386 = vadd.f32 %v343, %v385
  %387 = vmatmul.bf16.gmra.mxu0 %v164
  %v388 = vpop.f32.mrf.mxu0
  %v389 = vadd.f32 %v346, %v388
  %v390 = vpop.f32.mrf.mxu0
  %v391 = vadd.f32 %v348, %v390
  %392 = vmatmul.bf16.gmra.mxu0 %v167
  %v393 = vpop.f32.mrf.mxu0
  %v394 = vadd.f32 %v351, %v393
  %v395 = vpop.f32.mrf.mxu0
  %v396 = vadd.f32 %v353, %v395
  %397 = vmatmul.bf16.gmra.mxu0 %v170
  %v398 = vpop.f32.mrf.mxu0
  %v399 = vadd.f32 %v356, %v398
  %v400 = vpop.f32.mrf.mxu0
  %401 = vdwg.mxu0
  %402 = vmatpush.bf16.msra.mxu0 0
  %403 = vmatpush.bf16.msra.mxu0 0
  %404 = vmatpush.bf16.msra.mxu0 0
  %405 = vmatpush.bf16.msra.mxu0 0
  %406 = vmatpush.bf16.msra.mxu0 0
  %407 = vmatpush.bf16.msra.mxu0 0
  %408 = vmatpush.bf16.msra.mxu0 %v275
  %409 = vmatpush.bf16.msra.mxu0 %v274
  %410 = vmatmul.bf16.gmra.mxu0 %v296
  %v411 = vpop.f32.mrf.mxu0
  %v412 = vadd.f32 %v369, %v411
  %v413 = vpop.f32.mrf.mxu0
  %v414 = vadd.f32 %v371, %v413
  %415 = vmatmul.bf16.gmra.mxu0 %v299
  %v416 = vpop.f32.mrf.mxu0
  %v417 = vadd.f32 %v374, %v416
  %v418 = vpop.f32.mrf.mxu0
  %v419 = vadd.f32 %v376, %v418
  %420 = vmatmul.bf16.gmra.mxu0 %v302
  %v421 = vpop.f32.mrf.mxu0
  %v422 = vadd.f32 %v379, %v421
  %v423 = vpop.f32.mrf.mxu0
  %v424 = vadd.f32 %v381, %v423
  %425 = vmatmul.bf16.gmra.mxu0 %v305
  %v426 = vpop.f32.mrf.mxu0
  %v427 = vadd.f32 %v384, %v426
  %v428 = vpop.f32.mrf.mxu0
  %v429 = vadd.f32 %v386, %v428
  %430 = vmatmul.bf16.gmra.mxu0 %v308
  %v431 = vpop.f32.mrf.mxu0
  %v432 = vadd.f32 %v389, %v431
  %v433 = vpop.f32.mrf.mxu0
  %v434 = vadd.f32 %v391, %v433
  %435 = vmatmul.bf16.gmra.mxu0 %v311
  %v436 = vpop.f32.mrf.mxu0
  %v437 = vadd.f32 %v394, %v436
  %v438 = vpop.f32.mrf.mxu0
  %v439 = vadd.f32 %v396, %v438
  %440 = vmatmul.bf16.gmra.mxu0 %v314
  %v441 = vpop.f32.mrf.mxu0
  %v442 = vadd.f32 %v399, %v441
  %v443 = vpop.f32.mrf.mxu0
  %444 = vdwg.mxu0
  %v445 = vld [vmem:[%s1] sm:$0xff]
  %v446 = vld [vmem:[%s1 + $0x8] sm:$0xf]
  %v447 = vld [vmem:[%s1 + $0xc] sm:$0xff]
  %v448 = vld [vmem:[%s1 + $0x14] sm:$0xf]
  %v449 = vld [vmem:[%s1 + $0x18] sm:$0xff]
  %v450 = vld [vmem:[%s1 + $0x20] sm:$0xf]
  %v451 = vld [vmem:[%s1 + $0x24] sm:$0xff]
  %v452 = vld [vmem:[%s1 + $0x2c] sm:$0xf]
  %v453 = vld [vmem:[%s1 + $0x30] sm:$0xff]
  %v454 = vld [vmem:[%s1 + $0x38] sm:$0xf]
  %v455 = vld [vmem:[%s1 + $0x3c] sm:$0xff]
  %v456 = vld [vmem:[%s1 + $0x44] sm:$0xf]
  %v457 = vld [vmem:[%s1 + $0x48] sm:$0xff]
  %v458 = vld [vmem:[%s1 + $0x50] sm:$0xf]
  %v459 = vld [vmem:[%s1 + $0x54] sm:$0xff]
  %v460 = vld [vmem:[%s1 + $0x5c] sm:$0xf]
  %v461 = vld [vmem:[%s1 + $0x60] sm:$0xff]
  %v462 = vld [vmem:[%s1 + $0x68] sm:$0xf]
  %v463 = vld [vmem:[%s1 + $0x6c] sm:$0xff]
  %v464 = vld [vmem:[%s1 + $0x74] sm:$0xf]
  %v465 = vld [vmem:[%s1 + $0x78] sm:$0xff]
  %v466 = vld [vmem:[%s1 + $0x80] sm:$0xf]
  %v467 = vld [vmem:[%s1 + $0x84] sm:$0xff]
  %v468 = vld [vmem:[%s1 + $0x8c] sm:$0xf]
  %v469 = vld [vmem:[%s1 + $0x90] sm:$0xff]
  %v470 = vld [vmem:[%s1 + $0x98] sm:$0xf]
  %v497 = vunpack.c.l.b16 %v445
  %v498 = vunpack.c.h.b16 %v445
  %v499 = vunpack.c.l.b16 %v446
  %v500 = vunpack.c.l.b16 %v447
  %v501 = vunpack.c.h.b16 %v447
  %v502 = vunpack.c.l.b16 %v448
  %v503 = vunpack.c.l.b16 %v449
  %v504 = vunpack.c.h.b16 %v449
  %v505 = vunpack.c.l.b16 %v450
  %v506 = vunpack.c.l.b16 %v451
  %v507 = vunpack.c.h.b16 %v451
  %v508 = vunpack.c.l.b16 %v452
  %v509 = vunpack.c.l.b16 %v453
  %v510 = vunpack.c.h.b16 %v453
  %v511 = vunpack.c.l.b16 %v454
  %v512 = vunpack.c.l.b16 %v455
  %v513 = vunpack.c.h.b16 %v455
  %v514 = vunpack.c.l.b16 %v456
  %v515 = vunpack.c.l.b16 %v457
  %v516 = vunpack.c.h.b16 %v457
  %v517 = vunpack.c.l.b16 %v458
  %v518 = vunpack.c.l.b16 %v459
  %v519 = vunpack.c.h.b16 %v459
  %v520 = vunpack.c.l.b16 %v460
  %v521 = vunpack.c.l.b16 %v461
  %v522 = vunpack.c.h.b16 %v461
  %v523 = vunpack.c.l.b16 %v462
  %v524 = vunpack.c.l.b16 %v463
  %v525 = vunpack.c.h.b16 %v463
  %v526 = vunpack.c.l.b16 %v464
  %v527 = vunpack.c.l.b16 %v465
  %v528 = vunpack.c.h.b16 %v465
  %v529 = vunpack.c.l.b16 %v466
  %v530 = vunpack.c.l.b16 %v467
  %v531 = vunpack.c.h.b16 %v467
  %v532 = vunpack.c.l.b16 %v468
  %v533 = vunpack.c.l.b16 %v469
  %v534 = vunpack.c.h.b16 %v469
  %v535 = vunpack.c.l.b16 %v470
  %v536 = vpack.c.b16 %v500, %v497
  %v537 = vpack.c.b16 %v501, %v498
  %v538 = vpack.c.b16 %v502, %v499
  %v539 = vpack.c.b16 %v506, %v503
  %v540 = vpack.c.b16 %v507, %v504
  %v541 = vpack.c.b16 %v508, %v505
  %v542 = vpack.c.b16 %v512, %v509
  %v543 = vpack.c.b16 %v513, %v510
  %v544 = vpack.c.b16 %v514, %v511
  %v545 = vpack.c.b16 %v518, %v515
  %v546 = vpack.c.b16 %v519, %v516
  %v547 = vpack.c.b16 %v520, %v517
  %v548 = vpack.c.b16 %v524, %v521
  %v549 = vpack.c.b16 %v525, %v522
  %v550 = vpack.c.b16 %v526, %v523
  %v551 = vpack.c.b16 %v530, %v527
  %v552 = vpack.c.b16 %v531, %v528
  %v553 = vpack.c.b16 %v532, %v529
  %v554 = vpack.c.b16 %v533, %v533
  %v555 = vpack.c.b16 %v534, %v534
  %v556 = vpack.c.b16 %v535, %v535
  %v572 = vsel %vm294, %v538, 0
  %v575 = vsel %vm294, %v541, 0
  %v578 = vsel %vm294, %v544, 0
  %v581 = vsel %vm294, %v547, 0
  %v584 = vsel %vm294, %v550, 0
  %v587 = vsel %vm294, %v553, 0
  %v590 = vsel %vm294, %v556, 0
  %592 = vmatpush.bf16.msra.mxu0 %v265
  %593 = vmatpush.bf16.msra.mxu0 %v264
  %594 = vmatpush.bf16.msra.mxu0 %v263
  %595 = vmatpush.bf16.msra.mxu0 %v262
  %596 = vmatpush.bf16.msra.mxu0 %v261
  %597 = vmatpush.bf16.msra.mxu0 %v260
  %598 = vmatpush.bf16.msra.mxu0 %v259
  %599 = vmatpush.bf16.msra.mxu0 %v258
  %600 = vmatmul.bf16.gmra.mxu0 %v536
  %v601 = vpop.f32.mrf.mxu0
  %v602 = vadd.f32 0.0, %v601
  %v603 = vpop.f32.mrf.mxu0
  %v604 = vadd.f32 0.0, %v603
  %605 = vmatmul.bf16.gmra.mxu0 %v539
  %v606 = vpop.f32.mrf.mxu0
  %v607 = vadd.f32 0.0, %v606
  %v608 = vpop.f32.mrf.mxu0
  %v609 = vadd.f32 0.0, %v608
  %610 = vmatmul.bf16.gmra.mxu0 %v542
  %v611 = vpop.f32.mrf.mxu0
  %v612 = vadd.f32 0.0, %v611
  %v613 = vpop.f32.mrf.mxu0
  %v614 = vadd.f32 0.0, %v613
  %615 = vmatmul.bf16.gmra.mxu0 %v545
  %v616 = vpop.f32.mrf.mxu0
  %v617 = vadd.f32 0.0, %v616
  %v618 = vpop.f32.mrf.mxu0
  %v619 = vadd.f32 0.0, %v618
  %620 = vmatmul.bf16.gmra.mxu0 %v548
  %v621 = vpop.f32.mrf.mxu0
  %v622 = vadd.f32 0.0, %v621
  %v623 = vpop.f32.mrf.mxu0
  %v624 = vadd.f32 0.0, %v623
  %625 = vmatmul.bf16.gmra.mxu0 %v551
  %v626 = vpop.f32.mrf.mxu0
  %v627 = vadd.f32 0.0, %v626
  %v628 = vpop.f32.mrf.mxu0
  %v629 = vadd.f32 0.0, %v628
  %630 = vmatmul.bf16.gmra.mxu0 %v554
  %v631 = vpop.f32.mrf.mxu0
  %v632 = vadd.f32 0.0, %v631
  %v633 = vpop.f32.mrf.mxu0
  %634 = vdwg.mxu0
  %635 = vmatpush.bf16.msra.mxu0 %v273
  %636 = vmatpush.bf16.msra.mxu0 %v272
  %637 = vmatpush.bf16.msra.mxu0 %v271
  %638 = vmatpush.bf16.msra.mxu0 %v270
  %639 = vmatpush.bf16.msra.mxu0 %v269
  %640 = vmatpush.bf16.msra.mxu0 %v268
  %641 = vmatpush.bf16.msra.mxu0 %v267
  %642 = vmatpush.bf16.msra.mxu0 %v266
  %643 = vmatmul.bf16.gmra.mxu0 %v537
  %v644 = vpop.f32.mrf.mxu0
  %v645 = vadd.f32 %v602, %v644
  %v646 = vpop.f32.mrf.mxu0
  %v647 = vadd.f32 %v604, %v646
  %648 = vmatmul.bf16.gmra.mxu0 %v540
  %v649 = vpop.f32.mrf.mxu0
  %v650 = vadd.f32 %v607, %v649
  %v651 = vpop.f32.mrf.mxu0
  %v652 = vadd.f32 %v609, %v651
  %653 = vmatmul.bf16.gmra.mxu0 %v543
  %v654 = vpop.f32.mrf.mxu0
  %v655 = vadd.f32 %v612, %v654
  %v656 = vpop.f32.mrf.mxu0
  %v657 = vadd.f32 %v614, %v656
  %658 = vmatmul.bf16.gmra.mxu0 %v546
  %v659 = vpop.f32.mrf.mxu0
  %v660 = vadd.f32 %v617, %v659
  %v661 = vpop.f32.mrf.mxu0
  %v662 = vadd.f32 %v619, %v661
  %663 = vmatmul.bf16.gmra.mxu0 %v549
  %v664 = vpop.f32.mrf.mxu0
  %v665 = vadd.f32 %v622, %v664
  %v666 = vpop.f32.mrf.mxu0
  %v667 = vadd.f32 %v624, %v666
  %668 = vmatmul.bf16.gmra.mxu0 %v552
  %v669 = vpop.f32.mrf.mxu0
  %v670 = vadd.f32 %v627, %v669
  %v671 = vpop.f32.mrf.mxu0
  %v672 = vadd.f32 %v629, %v671
  %673 = vmatmul.bf16.gmra.mxu0 %v555
  %v674 = vpop.f32.mrf.mxu0
  %v675 = vadd.f32 %v632, %v674
  %v676 = vpop.f32.mrf.mxu0
  %677 = vdwg.mxu0
  %678 = vmatpush.bf16.msra.mxu0 0
  %679 = vmatpush.bf16.msra.mxu0 0
  %680 = vmatpush.bf16.msra.mxu0 0
  %681 = vmatpush.bf16.msra.mxu0 0
  %682 = vmatpush.bf16.msra.mxu0 0
  %683 = vmatpush.bf16.msra.mxu0 0
  %684 = vmatpush.bf16.msra.mxu0 %v275
  %685 = vmatpush.bf16.msra.mxu0 %v274
  %686 = vmatmul.bf16.gmra.mxu0 %v572
  %v687 = vpop.f32.mrf.mxu0
  %v688 = vadd.f32 %v645, %v687
  %v689 = vpop.f32.mrf.mxu0
  %v690 = vadd.f32 %v647, %v689
  %691 = vmatmul.bf16.gmra.mxu0 %v575
  %v692 = vpop.f32.mrf.mxu0
  %v693 = vadd.f32 %v650, %v692
  %v694 = vpop.f32.mrf.mxu0
  %v695 = vadd.f32 %v652, %v694
  %696 = vmatmul.bf16.gmra.mxu0 %v578
  %v697 = vpop.f32.mrf.mxu0
  %v698 = vadd.f32 %v655, %v697
  %v699 = vpop.f32.mrf.mxu0
  %v700 = vadd.f32 %v657, %v699
  %701 = vmatmul.bf16.gmra.mxu0 %v581
  %v702 = vpop.f32.mrf.mxu0
  %v703 = vadd.f32 %v660, %v702
  %v704 = vpop.f32.mrf.mxu0
  %v705 = vadd.f32 %v662, %v704
  %706 = vmatmul.bf16.gmra.mxu0 %v584
  %v707 = vpop.f32.mrf.mxu0
  %v708 = vadd.f32 %v665, %v707
  %v709 = vpop.f32.mrf.mxu0
  %v710 = vadd.f32 %v667, %v709
  %711 = vmatmul.bf16.gmra.mxu0 %v587
  %v712 = vpop.f32.mrf.mxu0
  %v713 = vadd.f32 %v670, %v712
  %v714 = vpop.f32.mrf.mxu0
  %v715 = vadd.f32 %v672, %v714
  %716 = vmatmul.bf16.gmra.mxu0 %v590
  %v717 = vpop.f32.mrf.mxu0
  %v718 = vadd.f32 %v675, %v717
  %v719 = vpop.f32.mrf.mxu0
  %720 = vdwg.mxu0
  %v721 = vmax.f32 %v412, %v688
  %v722 = vmax.f32 %v414, %v690
  %v723 = vmax.f32 %v417, %v693
  %v724 = vmax.f32 %v419, %v695
  %v725 = vmax.f32 %v422, %v698
  %v726 = vmax.f32 %v424, %v700
  %v727 = vmax.f32 %v427, %v703
  %v728 = vmax.f32 %v429, %v705
  %v729 = vmax.f32 %v432, %v708
  %v730 = vmax.f32 %v434, %v710
  %v731 = vmax.f32 %v437, %v713
  %v732 = vmax.f32 %v439, %v715
  %v733 = vmax.f32 %v442, %v718
  %v734 = vld [vmem:[%s2] sm:$0xff]
  %v735 = vld [vmem:[%s2 + $0x8] sm:$0xf]
  %v736 = vld [vmem:[%s2 + $0xc] sm:$0xff]
  %v737 = vld [vmem:[%s2 + $0x14] sm:$0xf]
  %v738 = vld [vmem:[%s2 + $0x18] sm:$0xff]
  %v739 = vld [vmem:[%s2 + $0x20] sm:$0xf]
  %v740 = vld [vmem:[%s2 + $0x24] sm:$0xff]
  %v741 = vld [vmem:[%s2 + $0x2c] sm:$0xf]
  %v742 = vld [vmem:[%s2 + $0x30] sm:$0xff]
  %v743 = vld [vmem:[%s2 + $0x38] sm:$0xf]
  %v744 = vld [vmem:[%s2 + $0x3c] sm:$0xff]
  %v745 = vld [vmem:[%s2 + $0x44] sm:$0xf]
  %v746 = vld [vmem:[%s2 + $0x48] sm:$0xff]
  %v747 = vld [vmem:[%s2 + $0x50] sm:$0xf]
  %v748 = vld [vmem:[%s2 + $0x54] sm:$0xff]
  %v749 = vld [vmem:[%s2 + $0x5c] sm:$0xf]
  %v750 = vld [vmem:[%s2 + $0x60] sm:$0xff]
  %v751 = vld [vmem:[%s2 + $0x68] sm:$0xf]
  %v752 = vld [vmem:[%s2 + $0x6c] sm:$0xff]
  %v753 = vld [vmem:[%s2 + $0x74] sm:$0xf]
  %v754 = vld [vmem:[%s2 + $0x78] sm:$0xff]
  %v755 = vld [vmem:[%s2 + $0x80] sm:$0xf]
  %v756 = vld [vmem:[%s2 + $0x84] sm:$0xff]
  %v757 = vld [vmem:[%s2 + $0x8c] sm:$0xf]
  %v758 = vld [vmem:[%s2 + $0x90] sm:$0xff]
  %v759 = vld [vmem:[%s2 + $0x98] sm:$0xf]
  %v786 = vunpack.c.l.b16 %v734
  %v787 = vunpack.c.h.b16 %v734
  %v788 = vunpack.c.l.b16 %v735
  %v789 = vunpack.c.l.b16 %v736
  %v790 = vunpack.c.h.b16 %v736
  %v791 = vunpack.c.l.b16 %v737
  %v792 = vunpack.c.l.b16 %v738
  %v793 = vunpack.c.h.b16 %v738
  %v794 = vunpack.c.l.b16 %v739
  %v795 = vunpack.c.l.b16 %v740
  %v796 = vunpack.c.h.b16 %v740
  %v797 = vunpack.c.l.b16 %v741
  %v798 = vunpack.c.l.b16 %v742
  %v799 = vunpack.c.h.b16 %v742
  %v800 = vunpack.c.l.b16 %v743
  %v801 = vunpack.c.l.b16 %v744
  %v802 = vunpack.c.h.b16 %v744
  %v803 = vunpack.c.l.b16 %v745
  %v804 = vunpack.c.l.b16 %v746
  %v805 = vunpack.c.h.b16 %v746
  %v806 = vunpack.c.l.b16 %v747
  %v807 = vunpack.c.l.b16 %v748
  %v808 = vunpack.c.h.b16 %v748
  %v809 = vunpack.c.l.b16 %v749
  %v810 = vunpack.c.l.b16 %v750
  %v811 = vunpack.c.h.b16 %v750
  %v812 = vunpack.c.l.b16 %v751
  %v813 = vunpack.c.l.b16 %v752
  %v814 = vunpack.c.h.b16 %v752
  %v815 = vunpack.c.l.b16 %v753
  %v816 = vunpack.c.l.b16 %v754
  %v817 = vunpack.c.h.b16 %v754
  %v818 = vunpack.c.l.b16 %v755
  %v819 = vunpack.c.l.b16 %v756
  %v820 = vunpack.c.h.b16 %v756
  %v821 = vunpack.c.l.b16 %v757
  %v822 = vunpack.c.l.b16 %v758
  %v823 = vunpack.c.h.b16 %v758
  %v824 = vunpack.c.l.b16 %v759
  %v825 = vpack.c.b16 %v789, %v786
  %v826 = vpack.c.b16 %v790, %v787
  %v827 = vpack.c.b16 %v791, %v788
  %v828 = vpack.c.b16 %v795, %v792
  %v829 = vpack.c.b16 %v796, %v793
  %v830 = vpack.c.b16 %v797, %v794
  %v831 = vpack.c.b16 %v801, %v798
  %v832 = vpack.c.b16 %v802, %v799
  %v833 = vpack.c.b16 %v803, %v800
  %v834 = vpack.c.b16 %v807, %v804
  %v835 = vpack.c.b16 %v808, %v805
  %v836 = vpack.c.b16 %v809, %v806
  %v837 = vpack.c.b16 %v813, %v810
  %v838 = vpack.c.b16 %v814, %v811
  %v839 = vpack.c.b16 %v815, %v812
  %v840 = vpack.c.b16 %v819, %v816
  %v841 = vpack.c.b16 %v820, %v817
  %v842 = vpack.c.b16 %v821, %v818
  %v843 = vpack.c.b16 %v822, %v822
  %v844 = vpack.c.b16 %v823, %v823
  %v845 = vpack.c.b16 %v824, %v824
  %v861 = vsel %vm294, %v827, 0
  %v864 = vsel %vm294, %v830, 0
  %v867 = vsel %vm294, %v833, 0
  %v870 = vsel %vm294, %v836, 0
  %v873 = vsel %vm294, %v839, 0
  %v876 = vsel %vm294, %v842, 0
  %v879 = vsel %vm294, %v845, 0
  %881 = vmatpush.bf16.msra.mxu0 %v265
  %882 = vmatpush.bf16.msra.mxu0 %v264
  %883 = vmatpush.bf16.msra.mxu0 %v263
  %884 = vmatpush.bf16.msra.mxu0 %v262
  %885 = vmatpush.bf16.msra.mxu0 %v261
  %886 = vmatpush.bf16.msra.mxu0 %v260
  %887 = vmatpush.bf16.msra.mxu0 %v259
  %888 = vmatpush.bf16.msra.mxu0 %v258
  %889 = vmatmul.bf16.gmra.mxu0 %v825
  %v890 = vpop.f32.mrf.mxu0
  %v891 = vadd.f32 0.0, %v890
  %v892 = vpop.f32.mrf.mxu0
  %v893 = vadd.f32 0.0, %v892
  %894 = vmatmul.bf16.gmra.mxu0 %v828
  %v895 = vpop.f32.mrf.mxu0
  %v896 = vadd.f32 0.0, %v895
  %v897 = vpop.f32.mrf.mxu0
  %v898 = vadd.f32 0.0, %v897
  %899 = vmatmul.bf16.gmra.mxu0 %v831
  %v900 = vpop.f32.mrf.mxu0
  %v901 = vadd.f32 0.0, %v900
  %v902 = vpop.f32.mrf.mxu0
  %v903 = vadd.f32 0.0, %v902
  %904 = vmatmul.bf16.gmra.mxu0 %v834
  %v905 = vpop.f32.mrf.mxu0
  %v906 = vadd.f32 0.0, %v905
  %v907 = vpop.f32.mrf.mxu0
  %v908 = vadd.f32 0.0, %v907
  %909 = vmatmul.bf16.gmra.mxu0 %v837
  %v910 = vpop.f32.mrf.mxu0
  %v911 = vadd.f32 0.0, %v910
  %v912 = vpop.f32.mrf.mxu0
  %v913 = vadd.f32 0.0, %v912
  %914 = vmatmul.bf16.gmra.mxu0 %v840
  %v915 = vpop.f32.mrf.mxu0
  %v916 = vadd.f32 0.0, %v915
  %v917 = vpop.f32.mrf.mxu0
  %v918 = vadd.f32 0.0, %v917
  %919 = vmatmul.bf16.gmra.mxu0 %v843
  %v920 = vpop.f32.mrf.mxu0
  %v921 = vadd.f32 0.0, %v920
  %v922 = vpop.f32.mrf.mxu0
  %923 = vdwg.mxu0
  %924 = vmatpush.bf16.msra.mxu0 %v273
  %925 = vmatpush.bf16.msra.mxu0 %v272
  %926 = vmatpush.bf16.msra.mxu0 %v271
  %927 = vmatpush.bf16.msra.mxu0 %v270
  %928 = vmatpush.bf16.msra.mxu0 %v269
  %929 = vmatpush.bf16.msra.mxu0 %v268
  %930 = vmatpush.bf16.msra.mxu0 %v267
  %931 = vmatpush.bf16.msra.mxu0 %v266
  %932 = vmatmul.bf16.gmra.mxu0 %v826
  %v933 = vpop.f32.mrf.mxu0
  %v934 = vadd.f32 %v891, %v933
  %v935 = vpop.f32.mrf.mxu0
  %v936 = vadd.f32 %v893, %v935
  %937 = vmatmul.bf16.gmra.mxu0 %v829
  %v938 = vpop.f32.mrf.mxu0
  %v939 = vadd.f32 %v896, %v938
  %v940 = vpop.f32.mrf.mxu0
  %v941 = vadd.f32 %v898, %v940
  %942 = vmatmul.bf16.gmra.mxu0 %v832
  %v943 = vpop.f32.mrf.mxu0
  %v944 = vadd.f32 %v901, %v943
  %v945 = vpop.f32.mrf.mxu0
  %v946 = vadd.f32 %v903, %v945
  %947 = vmatmul.bf16.gmra.mxu0 %v835
  %v948 = vpop.f32.mrf.mxu0
  %v949 = vadd.f32 %v906, %v948
  %v950 = vpop.f32.mrf.mxu0
  %v951 = vadd.f32 %v908, %v950
  %952 = vmatmul.bf16.gmra.mxu0 %v838
  %v953 = vpop.f32.mrf.mxu0
  %v954 = vadd.f32 %v911, %v953
  %v955 = vpop.f32.mrf.mxu0
  %v956 = vadd.f32 %v913, %v955
  %957 = vmatmul.bf16.gmra.mxu0 %v841
  %v958 = vpop.f32.mrf.mxu0
  %v959 = vadd.f32 %v916, %v958
  %v960 = vpop.f32.mrf.mxu0
  %v961 = vadd.f32 %v918, %v960
  %962 = vmatmul.bf16.gmra.mxu0 %v844
  %v963 = vpop.f32.mrf.mxu0
  %v964 = vadd.f32 %v921, %v963
  %v965 = vpop.f32.mrf.mxu0
  %966 = vdwg.mxu0
  %967 = vmatpush.bf16.msra.mxu0 0
  %968 = vmatpush.bf16.msra.mxu0 0
  %969 = vmatpush.bf16.msra.mxu0 0
  %970 = vmatpush.bf16.msra.mxu0 0
  %971 = vmatpush.bf16.msra.mxu0 0
  %972 = vmatpush.bf16.msra.mxu0 0
  %973 = vmatpush.bf16.msra.mxu0 %v275
  %974 = vmatpush.bf16.msra.mxu0 %v274
  %975 = vmatmul.bf16.gmra.mxu0 %v861
  %v976 = vpop.f32.mrf.mxu0
  %v977 = vadd.f32 %v934, %v976
  %v978 = vpop.f32.mrf.mxu0
  %v979 = vadd.f32 %v936, %v978
  %980 = vmatmul.bf16.gmra.mxu0 %v864
  %v981 = vpop.f32.mrf.mxu0
  %v982 = vadd.f32 %v939, %v981
  %v983 = vpop.f32.mrf.mxu0
  %v984 = vadd.f32 %v941, %v983
  %985 = vmatmul.bf16.gmra.mxu0 %v867
  %v986 = vpop.f32.mrf.mxu0
  %v987 = vadd.f32 %v944, %v986
  %v988 = vpop.f32.mrf.mxu0
  %v989 = vadd.f32 %v946, %v988
  %990 = vmatmul.bf16.gmra.mxu0 %v870
  %v991 = vpop.f32.mrf.mxu0
  %v992 = vadd.f32 %v949, %v991
  %v993 = vpop.f32.mrf.mxu0
  %v994 = vadd.f32 %v951, %v993
  %995 = vmatmul.bf16.gmra.mxu0 %v873
  %v996 = vpop.f32.mrf.mxu0
  %v997 = vadd.f32 %v954, %v996
  %v998 = vpop.f32.mrf.mxu0
  %v999 = vadd.f32 %v956, %v998
  %1000 = vmatmul.bf16.gmra.mxu0 %v876
  %v1001 = vpop.f32.mrf.mxu0
  %v1002 = vadd.f32 %v959, %v1001
  %v1003 = vpop.f32.mrf.mxu0
  %v1004 = vadd.f32 %v961, %v1003
  %1005 = vmatmul.bf16.gmra.mxu0 %v879
  %v1006 = vpop.f32.mrf.mxu0
  %v1007 = vadd.f32 %v964, %v1006
  %v1008 = vpop.f32.mrf.mxu0
  %1009 = vdwg.mxu0
  %v1010 = vmax.f32 %v721, %v977
  %v1011 = vmax.f32 %v722, %v979
  %v1012 = vmax.f32 %v723, %v982
  %v1013 = vmax.f32 %v724, %v984
  %v1014 = vmax.f32 %v725, %v987
  %v1015 = vmax.f32 %v726, %v989
  %v1016 = vmax.f32 %v727, %v992
  %v1017 = vmax.f32 %v728, %v994
  %v1018 = vmax.f32 %v729, %v997
  %v1019 = vmax.f32 %v730, %v999
  %v1020 = vmax.f32 %v731, %v1002
  %v1021 = vmax.f32 %v732, %v1004
  %v1022 = vmax.f32 %v733, %v1007
  %v1023 = vld [vmem:[%s3] sm:$0xff]
  %v1024 = vld [vmem:[%s3 + $0x8] sm:$0xf]
  %v1025 = vld [vmem:[%s3 + $0xc] sm:$0xff]
  %v1026 = vld [vmem:[%s3 + $0x14] sm:$0xf]
  %v1027 = vld [vmem:[%s3 + $0x18] sm:$0xff]
  %v1028 = vld [vmem:[%s3 + $0x20] sm:$0xf]
  %v1029 = vld [vmem:[%s3 + $0x24] sm:$0xff]
  %v1030 = vld [vmem:[%s3 + $0x2c] sm:$0xf]
  %v1031 = vld [vmem:[%s3 + $0x30] sm:$0xff]
  %v1032 = vld [vmem:[%s3 + $0x38] sm:$0xf]
  %v1033 = vld [vmem:[%s3 + $0x3c] sm:$0xff]
  %v1034 = vld [vmem:[%s3 + $0x44] sm:$0xf]
  %v1035 = vld [vmem:[%s3 + $0x48] sm:$0xff]
  %v1036 = vld [vmem:[%s3 + $0x50] sm:$0xf]
  %v1037 = vld [vmem:[%s3 + $0x54] sm:$0xff]
  %v1038 = vld [vmem:[%s3 + $0x5c] sm:$0xf]
  %v1039 = vld [vmem:[%s3 + $0x60] sm:$0xff]
  %v1040 = vld [vmem:[%s3 + $0x68] sm:$0xf]
  %v1041 = vld [vmem:[%s3 + $0x6c] sm:$0xff]
  %v1042 = vld [vmem:[%s3 + $0x74] sm:$0xf]
  %v1043 = vld [vmem:[%s3 + $0x78] sm:$0xff]
  %v1044 = vld [vmem:[%s3 + $0x80] sm:$0xf]
  %v1045 = vld [vmem:[%s3 + $0x84] sm:$0xff]
  %v1046 = vld [vmem:[%s3 + $0x8c] sm:$0xf]
  %v1047 = vld [vmem:[%s3 + $0x90] sm:$0xff]
  %v1048 = vld [vmem:[%s3 + $0x98] sm:$0xf]
  %v1075 = vunpack.c.l.b16 %v1023
  %v1076 = vunpack.c.h.b16 %v1023
  %v1077 = vunpack.c.l.b16 %v1024
  %v1078 = vunpack.c.l.b16 %v1025
  %v1079 = vunpack.c.h.b16 %v1025
  %v1080 = vunpack.c.l.b16 %v1026
  %v1081 = vunpack.c.l.b16 %v1027
  %v1082 = vunpack.c.h.b16 %v1027
  %v1083 = vunpack.c.l.b16 %v1028
  %v1084 = vunpack.c.l.b16 %v1029
  %v1085 = vunpack.c.h.b16 %v1029
  %v1086 = vunpack.c.l.b16 %v1030
  %v1087 = vunpack.c.l.b16 %v1031
  %v1088 = vunpack.c.h.b16 %v1031
  %v1089 = vunpack.c.l.b16 %v1032
  %v1090 = vunpack.c.l.b16 %v1033
  %v1091 = vunpack.c.h.b16 %v1033
  %v1092 = vunpack.c.l.b16 %v1034
  %v1093 = vunpack.c.l.b16 %v1035
  %v1094 = vunpack.c.h.b16 %v1035
  %v1095 = vunpack.c.l.b16 %v1036
  %v1096 = vunpack.c.l.b16 %v1037
  %v1097 = vunpack.c.h.b16 %v1037
  %v1098 = vunpack.c.l.b16 %v1038
  %v1099 = vunpack.c.l.b16 %v1039
  %v1100 = vunpack.c.h.b16 %v1039
  %v1101 = vunpack.c.l.b16 %v1040
  %v1102 = vunpack.c.l.b16 %v1041
  %v1103 = vunpack.c.h.b16 %v1041
  %v1104 = vunpack.c.l.b16 %v1042
  %v1105 = vunpack.c.l.b16 %v1043
  %v1106 = vunpack.c.h.b16 %v1043
  %v1107 = vunpack.c.l.b16 %v1044
  %v1108 = vunpack.c.l.b16 %v1045
  %v1109 = vunpack.c.h.b16 %v1045
  %v1110 = vunpack.c.l.b16 %v1046
  %v1111 = vunpack.c.l.b16 %v1047
  %v1112 = vunpack.c.h.b16 %v1047
  %v1113 = vunpack.c.l.b16 %v1048
  %v1114 = vpack.c.b16 %v1078, %v1075
  %v1115 = vpack.c.b16 %v1079, %v1076
  %v1116 = vpack.c.b16 %v1080, %v1077
  %v1117 = vpack.c.b16 %v1084, %v1081
  %v1118 = vpack.c.b16 %v1085, %v1082
  %v1119 = vpack.c.b16 %v1086, %v1083
  %v1120 = vpack.c.b16 %v1090, %v1087
  %v1121 = vpack.c.b16 %v1091, %v1088
  %v1122 = vpack.c.b16 %v1092, %v1089
  %v1123 = vpack.c.b16 %v1096, %v1093
  %v1124 = vpack.c.b16 %v1097, %v1094
  %v1125 = vpack.c.b16 %v1098, %v1095
  %v1126 = vpack.c.b16 %v1102, %v1099
  %v1127 = vpack.c.b16 %v1103, %v1100
  %v1128 = vpack.c.b16 %v1104, %v1101
  %v1129 = vpack.c.b16 %v1108, %v1105
  %v1130 = vpack.c.b16 %v1109, %v1106
  %v1131 = vpack.c.b16 %v1110, %v1107
  %v1132 = vpack.c.b16 %v1111, %v1111
  %v1133 = vpack.c.b16 %v1112, %v1112
  %v1134 = vpack.c.b16 %v1113, %v1113
  %v1150 = vsel %vm294, %v1116, 0
  %v1153 = vsel %vm294, %v1119, 0
  %v1156 = vsel %vm294, %v1122, 0
  %v1159 = vsel %vm294, %v1125, 0
  %v1162 = vsel %vm294, %v1128, 0
  %v1165 = vsel %vm294, %v1131, 0
  %v1168 = vsel %vm294, %v1134, 0
  %1170 = vmatpush.bf16.msra.mxu0 %v265
  %1171 = vmatpush.bf16.msra.mxu0 %v264
  %1172 = vmatpush.bf16.msra.mxu0 %v263
  %1173 = vmatpush.bf16.msra.mxu0 %v262
  %1174 = vmatpush.bf16.msra.mxu0 %v261
  %1175 = vmatpush.bf16.msra.mxu0 %v260
  %1176 = vmatpush.bf16.msra.mxu0 %v259
  %1177 = vmatpush.bf16.msra.mxu0 %v258
  %1178 = vmatmul.bf16.gmra.mxu0 %v1114
  %v1179 = vpop.f32.mrf.mxu0
  %v1180 = vadd.f32 0.0, %v1179
  %v1181 = vpop.f32.mrf.mxu0
  %v1182 = vadd.f32 0.0, %v1181
  %1183 = vmatmul.bf16.gmra.mxu0 %v1117
  %v1184 = vpop.f32.mrf.mxu0
  %v1185 = vadd.f32 0.0, %v1184
  %v1186 = vpop.f32.mrf.mxu0
  %v1187 = vadd.f32 0.0, %v1186
  %1188 = vmatmul.bf16.gmra.mxu0 %v1120
  %v1189 = vpop.f32.mrf.mxu0
  %v1190 = vadd.f32 0.0, %v1189
  %v1191 = vpop.f32.mrf.mxu0
  %v1192 = vadd.f32 0.0, %v1191
  %1193 = vmatmul.bf16.gmra.mxu0 %v1123
  %v1194 = vpop.f32.mrf.mxu0
  %v1195 = vadd.f32 0.0, %v1194
  %v1196 = vpop.f32.mrf.mxu0
  %v1197 = vadd.f32 0.0, %v1196
  %1198 = vmatmul.bf16.gmra.mxu0 %v1126
  %v1199 = vpop.f32.mrf.mxu0
  %v1200 = vadd.f32 0.0, %v1199
  %v1201 = vpop.f32.mrf.mxu0
  %v1202 = vadd.f32 0.0, %v1201
  %1203 = vmatmul.bf16.gmra.mxu0 %v1129
  %v1204 = vpop.f32.mrf.mxu0
  %v1205 = vadd.f32 0.0, %v1204
  %v1206 = vpop.f32.mrf.mxu0
  %v1207 = vadd.f32 0.0, %v1206
  %1208 = vmatmul.bf16.gmra.mxu0 %v1132
  %v1209 = vpop.f32.mrf.mxu0
  %v1210 = vadd.f32 0.0, %v1209
  %v1211 = vpop.f32.mrf.mxu0
  %1212 = vdwg.mxu0
  %1213 = vmatpush.bf16.msra.mxu0 %v273
  %1214 = vmatpush.bf16.msra.mxu0 %v272
  %1215 = vmatpush.bf16.msra.mxu0 %v271
  %1216 = vmatpush.bf16.msra.mxu0 %v270
  %1217 = vmatpush.bf16.msra.mxu0 %v269
  %1218 = vmatpush.bf16.msra.mxu0 %v268
  %1219 = vmatpush.bf16.msra.mxu0 %v267
  %1220 = vmatpush.bf16.msra.mxu0 %v266
  %1221 = vmatmul.bf16.gmra.mxu0 %v1115
  %v1222 = vpop.f32.mrf.mxu0
  %v1223 = vadd.f32 %v1180, %v1222
  %v1224 = vpop.f32.mrf.mxu0
  %v1225 = vadd.f32 %v1182, %v1224
  %1226 = vmatmul.bf16.gmra.mxu0 %v1118
  %v1227 = vpop.f32.mrf.mxu0
  %v1228 = vadd.f32 %v1185, %v1227
  %v1229 = vpop.f32.mrf.mxu0
  %v1230 = vadd.f32 %v1187, %v1229
  %1231 = vmatmul.bf16.gmra.mxu0 %v1121
  %v1232 = vpop.f32.mrf.mxu0
  %v1233 = vadd.f32 %v1190, %v1232
  %v1234 = vpop.f32.mrf.mxu0
  %v1235 = vadd.f32 %v1192, %v1234
  %1236 = vmatmul.bf16.gmra.mxu0 %v1124
  %v1237 = vpop.f32.mrf.mxu0
  %v1238 = vadd.f32 %v1195, %v1237
  %v1239 = vpop.f32.mrf.mxu0
  %v1240 = vadd.f32 %v1197, %v1239
  %1241 = vmatmul.bf16.gmra.mxu0 %v1127
  %v1242 = vpop.f32.mrf.mxu0
  %v1243 = vadd.f32 %v1200, %v1242
  %v1244 = vpop.f32.mrf.mxu0
  %v1245 = vadd.f32 %v1202, %v1244
  %1246 = vmatmul.bf16.gmra.mxu0 %v1130
  %v1247 = vpop.f32.mrf.mxu0
  %v1248 = vadd.f32 %v1205, %v1247
  %v1249 = vpop.f32.mrf.mxu0
  %v1250 = vadd.f32 %v1207, %v1249
  %1251 = vmatmul.bf16.gmra.mxu0 %v1133
  %v1252 = vpop.f32.mrf.mxu0
  %v1253 = vadd.f32 %v1210, %v1252
  %v1254 = vpop.f32.mrf.mxu0
  %1255 = vdwg.mxu0
  %1256 = vmatpush.bf16.msra.mxu0 0
  %1257 = vmatpush.bf16.msra.mxu0 0
  %1258 = vmatpush.bf16.msra.mxu0 0
  %1259 = vmatpush.bf16.msra.mxu0 0
  %1260 = vmatpush.bf16.msra.mxu0 0
  %1261 = vmatpush.bf16.msra.mxu0 0
  %1262 = vmatpush.bf16.msra.mxu0 %v275
  %1263 = vmatpush.bf16.msra.mxu0 %v274
  %1264 = vmatmul.bf16.gmra.mxu0 %v1150
  %v1265 = vpop.f32.mrf.mxu0
  %v1266 = vadd.f32 %v1223, %v1265
  %v1267 = vpop.f32.mrf.mxu0
  %v1268 = vadd.f32 %v1225, %v1267
  %1269 = vmatmul.bf16.gmra.mxu0 %v1153
  %v1270 = vpop.f32.mrf.mxu0
  %v1271 = vadd.f32 %v1228, %v1270
  %v1272 = vpop.f32.mrf.mxu0
  %v1273 = vadd.f32 %v1230, %v1272
  %1274 = vmatmul.bf16.gmra.mxu0 %v1156
  %v1275 = vpop.f32.mrf.mxu0
  %v1276 = vadd.f32 %v1233, %v1275
  %v1277 = vpop.f32.mrf.mxu0
  %v1278 = vadd.f32 %v1235, %v1277
  %1279 = vmatmul.bf16.gmra.mxu0 %v1159
  %v1280 = vpop.f32.mrf.mxu0
  %v1281 = vadd.f32 %v1238, %v1280
  %v1282 = vpop.f32.mrf.mxu0
  %v1283 = vadd.f32 %v1240, %v1282
  %1284 = vmatmul.bf16.gmra.mxu0 %v1162
  %v1285 = vpop.f32.mrf.mxu0
  %v1286 = vadd.f32 %v1243, %v1285
  %v1287 = vpop.f32.mrf.mxu0
  %v1288 = vadd.f32 %v1245, %v1287
  %1289 = vmatmul.bf16.gmra.mxu0 %v1165
  %v1290 = vpop.f32.mrf.mxu0
  %v1291 = vadd.f32 %v1248, %v1290
  %v1292 = vpop.f32.mrf.mxu0
  %v1293 = vadd.f32 %v1250, %v1292
  %1294 = vmatmul.bf16.gmra.mxu0 %v1168
  %v1295 = vpop.f32.mrf.mxu0
  %v1296 = vadd.f32 %v1253, %v1295
  %v1297 = vpop.f32.mrf.mxu0
  %1298 = vdwg.mxu0
  %v1299 = vmax.f32 %v1010, %v1266
  %v1300 = vmax.f32 %v1011, %v1268
  %v1301 = vmax.f32 %v1012, %v1271
  %v1302 = vmax.f32 %v1013, %v1273
  %v1303 = vmax.f32 %v1014, %v1276
  %v1304 = vmax.f32 %v1015, %v1278
  %v1305 = vmax.f32 %v1016, %v1281
  %v1306 = vmax.f32 %v1017, %v1283
  %v1307 = vmax.f32 %v1018, %v1286
  %v1308 = vmax.f32 %v1019, %v1288
  %v1309 = vmax.f32 %v1020, %v1291
  %v1310 = vmax.f32 %v1021, %v1293
  %v1311 = vmax.f32 %v1022, %v1296
  %v1312 = vld [vmem:[%s5] sm:$0x1]
  %v1314 = vperm.slane %v1312, 0
  %v1316 = vadd.f32 %v1299, %v1314
  %v1317 = vadd.f32 %v1300, %v1314
  %v1318 = vadd.f32 %v1301, %v1314
  %v1319 = vadd.f32 %v1302, %v1314
  %v1320 = vadd.f32 %v1303, %v1314
  %v1321 = vadd.f32 %v1304, %v1314
  %v1322 = vadd.f32 %v1305, %v1314
  %v1323 = vadd.f32 %v1306, %v1314
  %v1324 = vadd.f32 %v1307, %v1314
  %v1325 = vadd.f32 %v1308, %v1314
  %v1326 = vadd.f32 %v1309, %v1314
  %v1327 = vadd.f32 %v1310, %v1314
  %v1328 = vadd.f32 %v1311, %v1314
  %v1329 = vmax.f32 %v1316, 0.0
  %v1330 = vmax.f32 %v1317, 0.0
  %v1331 = vmax.f32 %v1318, 0.0
  %v1332 = vmax.f32 %v1319, 0.0
  %v1333 = vmax.f32 %v1320, 0.0
  %v1334 = vmax.f32 %v1321, 0.0
  %v1335 = vmax.f32 %v1322, 0.0
  %v1336 = vmax.f32 %v1323, 0.0
  %v1337 = vmax.f32 %v1324, 0.0
  %v1338 = vmax.f32 %v1325, 0.0
  %v1339 = vmax.f32 %v1326, 0.0
  %v1340 = vmax.f32 %v1327, 0.0
  %v1341 = vmax.f32 %v1328, 0.0
  %v1342 = vpack.c.bf16 %v1329, %v1329
  %v1343 = vpack.c.bf16 %v1330, %v1330
  %v1344 = vpack.c.bf16 %v1331, %v1331
  %v1345 = vpack.c.bf16 %v1332, %v1332
  %v1346 = vpack.c.bf16 %v1333, %v1333
  %v1347 = vpack.c.bf16 %v1334, %v1334
  %v1348 = vpack.c.bf16 %v1335, %v1335
  %v1349 = vpack.c.bf16 %v1336, %v1336
  %v1350 = vpack.c.bf16 %v1337, %v1337
  %v1351 = vpack.c.bf16 %v1338, %v1338
  %v1352 = vpack.c.bf16 %v1339, %v1339
  %v1353 = vpack.c.bf16 %v1340, %v1340
  %v1354 = vpack.c.bf16 %v1341, %v1341
  %vm1355 = vcmask 519168
  %1356 = vst.msk [vmem:[%s6] sm:$0xf] %vm1355, %v1342
  %1357 = vst.msk [vmem:[%s6 + $0x4] sm:$0xf] %vm1355, %v1343
  %1358 = vst.msk [vmem:[%s6 + $0x8] sm:$0xf] %vm1355, %v1344
  %1359 = vst.msk [vmem:[%s6 + $0xc] sm:$0xf] %vm1355, %v1345
  %1360 = vst.msk [vmem:[%s6 + $0x10] sm:$0xf] %vm1355, %v1346
  %1361 = vst.msk [vmem:[%s6 + $0x14] sm:$0xf] %vm1355, %v1347
  %1362 = vst.msk [vmem:[%s6 + $0x18] sm:$0xf] %vm1355, %v1348
  %1363 = vst.msk [vmem:[%s6 + $0x1c] sm:$0xf] %vm1355, %v1349
  %1364 = vst.msk [vmem:[%s6 + $0x20] sm:$0xf] %vm1355, %v1350
  %1365 = vst.msk [vmem:[%s6 + $0x24] sm:$0xf] %vm1355, %v1351
  %1366 = vst.msk [vmem:[%s6 + $0x28] sm:$0xf] %vm1355, %v1352
  %1367 = vst.msk [vmem:[%s6 + $0x2c] sm:$0xf] %vm1355, %v1353
  %1368 = vst.msk [vmem:[%s6 + $0x30] sm:$0xf] %vm1355, %v1354
  // Predicated region
  $region26: #{simple_cnn_forward.4} parent=0 // pred_check
    _
  $region27: #{simple_cnn_forward.4} parent=0 // pred_check_branch
    %1370 = sbr.rel (0) target = $region29
  $region28: #{simple_cnn_forward.4} parent=0 // pred_region
    _
  $region29: #{simple_cnn_forward.4} parent=0 // pred_fallthru
    _
  // Predicated region
  $region30: #{simple_cnn_forward.4} parent=0 // pred_check
    _
  $region31: #{simple_cnn_forward.4} parent=0 // pred_check_branch
    %1372 = sbr.rel (0) target = $region33
  $region32: #{simple_cnn_forward.4} parent=0 // pred_region
    _
  $region33: #{simple_cnn_forward.4} parent=0 // pred_fallthru
    _

// kernel: simple_cnn_forward.5
$region0: #{simple_cnn_forward.5}
  #allocation0 [shape = 'u32[]', space=smem, size = 0x4, offset = 0x4, fixed_abs, tag = 'smem constant byte address 0x4 - core index']
  #allocation1 [shape = 'u32[72,128]{1,0:T(1,128)}', space=vmem, size = 0x9000, scoped, tag = 'internal scratch']
  %s0 = inlined_call_operand.vmem [shape: bf16[8,3136], index: 0, kind: input, shape index: {}]
  %s1 = inlined_call_operand.vmem [shape: bf16[3136,128], index: 1, kind: input, shape index: {}]
  %s2 = inlined_call_operand.vmem [shape: f32[1,128], index: 2, kind: input, shape index: {}]
  %s3 = inlined_call_operand.vmem [shape: bf16[128,10], index: 3, kind: input, shape index: {}]
  %s4 = inlined_call_operand.vmem [shape: f32[1,10], index: 4, kind: input, shape index: {}]
  %s5 = inlined_call_operand.vmem [shape: f32[8,10], index: 5, kind: output, shape index: {}]
  %s6 = sld [smem:[#allocation0]]
  $region30: #{simple_cnn_forward.5} parent=0
    _
  %s8 = ssub.s32 1, %s6
  %s9 = scalar_select 0, %s8, %s6
  // Predicated region
  $region2: #{simple_cnn_forward.5} parent=0 // pred_check
    _
  $region3: #{simple_cnn_forward.5} parent=0 // pred_check_branch
    %11 = sbr.rel (0) target = $region5
  $region4: #{simple_cnn_forward.5} parent=0 // pred_region
    _
  $region5: #{simple_cnn_forward.5} parent=0 // pred_fallthru
    _
  // Predicated region
  $region6: #{simple_cnn_forward.5} parent=0 // pred_check
    _
  $region7: #{simple_cnn_forward.5} parent=0 // pred_check_branch
    %13 = sbr.rel (0) target = $region9
  $region8: #{simple_cnn_forward.5} parent=0 // pred_region
    _
  $region9: #{simple_cnn_forward.5} parent=0 // pred_fallthru
    _
  // Predicated region
  $region10: #{simple_cnn_forward.5} parent=0 // pred_check
    _
  $region11: #{simple_cnn_forward.5} parent=0 // pred_check_branch
    %15 = sbr.rel (0) target = $region13
  $region12: #{simple_cnn_forward.5} parent=0 // pred_region
    _
  $region13: #{simple_cnn_forward.5} parent=0 // pred_fallthru
    _
  // Predicated region
  $region14: #{simple_cnn_forward.5} parent=0 // pred_check
    _
  $region15: #{simple_cnn_forward.5} parent=0 // pred_check_branch
    %17 = sbr.rel (0) target = $region17
  $region16: #{simple_cnn_forward.5} parent=0 // pred_region
    _
  $region17: #{simple_cnn_forward.5} parent=0 // pred_fallthru
    _
  // Predicated region
  $region18: #{simple_cnn_forward.5} parent=0 // pred_check
    _
  $region19: #{simple_cnn_forward.5} parent=0 // pred_check_branch
    %19 = sbr.rel (0) target = $region21
  $region20: #{simple_cnn_forward.5} parent=0 // pred_region
    _
  $region21: #{simple_cnn_forward.5} parent=0 // pred_fallthru
    _
  %v21 = vld [vmem:[%s0] sm:$0xff]
  %v22 = vld [vmem:[%s0 + $0x8] sm:$0xff]
  %v23 = vld [vmem:[%s0 + $0x10] sm:$0xff]
  %v24 = vld [vmem:[%s0 + $0x18] sm:$0xff]
  %v25 = vld [vmem:[%s0 + $0x20] sm:$0xff]
  %v26 = vld [vmem:[%s0 + $0x28] sm:$0xff]
  %v27 = vld [vmem:[%s0 + $0x30] sm:$0xff]
  %v28 = vld [vmem:[%s0 + $0x38] sm:$0xff]
  %v29 = vld [vmem:[%s0 + $0x40] sm:$0xff]
  %v30 = vld [vmem:[%s0 + $0x48] sm:$0xff]
  %v31 = vld [vmem:[%s0 + $0x50] sm:$0xff]
  %v32 = vld [vmem:[%s0 + $0x58] sm:$0xff]
  %v33 = vld [vmem:[%s0 + $0x60] sm:$0xf]
  %v34 = vld [vmem:[%s1] sm:$0xf]
  %v35 = vld [vmem:[%s1 + $0x4] sm:$0xf]
  %v36 = vld [vmem:[%s1 + $0x8] sm:$0xf]
  %v37 = vld [vmem:[%s1 + $0xc] sm:$0xf]
  %v38 = vld [vmem:[%s1 + $0x10] sm:$0xf]
  %v39 = vld [vmem:[%s1 + $0x14] sm:$0xf]
  %v40 = vld [vmem:[%s1 + $0x18] sm:$0xf]
  %v41 = vld [vmem:[%s1 + $0x1c] sm:$0xf]
  %v42 = vld [vmem:[%s1 + $0x20] sm:$0xf]
  %v43 = vld [vmem:[%s1 + $0x24] sm:$0xf]
  %v44 = vld [vmem:[%s1 + $0x28] sm:$0xf]
  %v45 = vld [vmem:[%s1 + $0x2c] sm:$0xf]
  %v46 = vld [vmem:[%s1 + $0x30] sm:$0xf]
  %v47 = vld [vmem:[%s1 + $0x34] sm:$0xf]
  %v48 = vld [vmem:[%s1 + $0x38] sm:$0xf]
  %v49 = vld [vmem:[%s1 + $0x3c] sm:$0xf]
  %v50 = vld [vmem:[%s1 + $0x40] sm:$0xf]
  %v51 = vld [vmem:[%s1 + $0x44] sm:$0xf]
  %v52 = vld [vmem:[%s1 + $0x48] sm:$0xf]
  %v53 = vld [vmem:[%s1 + $0x4c] sm:$0xf]
  %v54 = vld [vmem:[%s1 + $0x50] sm:$0xf]
  %v55 = vld [vmem:[%s1 + $0x54] sm:$0xf]
  %v56 = vld [vmem:[%s1 + $0x58] sm:$0xf]
  %v57 = vld [vmem:[%s1 + $0x5c] sm:$0xf]
  %v58 = vld [vmem:[%s1 + $0x60] sm:$0xf]
  %v59 = vld [vmem:[%s1 + $0x64] sm:$0xf]
  %v60 = vld [vmem:[%s1 + $0x68] sm:$0xf]
  %v61 = vld [vmem:[%s1 + $0x6c] sm:$0xf]
  %v62 = vld [vmem:[%s1 + $0x70] sm:$0xf]
  %v63 = vld [vmem:[%s1 + $0x74] sm:$0xf]
  %v64 = vld [vmem:[%s1 + $0x78] sm:$0xf]
  %v65 = vld [vmem:[%s1 + $0x7c] sm:$0xf]
  %v66 = vld [vmem:[%s1 + $0x80] sm:$0xf]
  %v67 = vld [vmem:[%s1 + $0x84] sm:$0xf]
  %v68 = vld [vmem:[%s1 + $0x88] sm:$0xf]
  %v69 = vld [vmem:[%s1 + $0x8c] sm:$0xf]
  %v70 = vld [vmem:[%s1 + $0x90] sm:$0xf]
  %v71 = vld [vmem:[%s1 + $0x94] sm:$0xf]
  %v72 = vld [vmem:[%s1 + $0x98] sm:$0xf]
  %v73 = vld [vmem:[%s1 + $0x9c] sm:$0xf]
  %v74 = vld [vmem:[%s1 + $0xa0] sm:$0xf]
  %v75 = vld [vmem:[%s1 + $0xa4] sm:$0xf]
  %v76 = vld [vmem:[%s1 + $0xa8] sm:$0xf]
  %v77 = vld [vmem:[%s1 + $0xac] sm:$0xf]
  %v78 = vld [vmem:[%s1 + $0xb0] sm:$0xf]
  %v79 = vld [vmem:[%s1 + $0xb4] sm:$0xf]
  %v80 = vld [vmem:[%s1 + $0xb8] sm:$0xf]
  %v81 = vld [vmem:[%s1 + $0xbc] sm:$0xf]
  %v82 = vld [vmem:[%s1 + $0xc0] sm:$0xf]
  %v83 = vld [vmem:[%s1 + $0xc4] sm:$0xf]
  %v84 = vld [vmem:[%s1 + $0xc8] sm:$0xf]
  %v85 = vld [vmem:[%s1 + $0xcc] sm:$0xf]
  %v86 = vld [vmem:[%s1 + $0xd0] sm:$0xf]
  %v87 = vld [vmem:[%s1 + $0xd4] sm:$0xf]
  %v88 = vld [vmem:[%s1 + $0xd8] sm:$0xf]
  %v89 = vld [vmem:[%s1 + $0xdc] sm:$0xf]
  %v90 = vld [vmem:[%s1 + $0xe0] sm:$0xf]
  %v91 = vld [vmem:[%s1 + $0xe4] sm:$0xf]
  %v92 = vld [vmem:[%s1 + $0xe8] sm:$0xf]
  %v93 = vld [vmem:[%s1 + $0xec] sm:$0xf]
  %v94 = vld [vmem:[%s1 + $0xf0] sm:$0xf]
  %v95 = vld [vmem:[%s1 + $0xf4] sm:$0xf]
  %v96 = vld [vmem:[%s1 + $0xf8] sm:$0xf]
  %v97 = vld [vmem:[%s1 + $0xfc] sm:$0xf]
  %v98 = vld [vmem:[%s1 + $0x100] sm:$0xf]
  %v99 = vld [vmem:[%s1 + $0x104] sm:$0xf]
  %v100 = vld [vmem:[%s1 + $0x108] sm:$0xf]
  %v101 = vld [vmem:[%s1 + $0x10c] sm:$0xf]
  %v102 = vld [vmem:[%s1 + $0x110] sm:$0xf]
  %v103 = vld [vmem:[%s1 + $0x114] sm:$0xf]
  %v104 = vld [vmem:[%s1 + $0x118] sm:$0xf]
  %v105 = vld [vmem:[%s1 + $0x11c] sm:$0xf]
  %v106 = vld [vmem:[%s1 + $0x120] sm:$0xf]
  %v107 = vld [vmem:[%s1 + $0x124] sm:$0xf]
  %v108 = vld [vmem:[%s1 + $0x128] sm:$0xf]
  %v109 = vld [vmem:[%s1 + $0x12c] sm:$0xf]
  %v110 = vld [vmem:[%s1 + $0x130] sm:$0xf]
  %v111 = vld [vmem:[%s1 + $0x134] sm:$0xf]
  %v112 = vld [vmem:[%s1 + $0x138] sm:$0xf]
  %v113 = vld [vmem:[%s1 + $0x13c] sm:$0xf]
  %v114 = vld [vmem:[%s1 + $0x140] sm:$0xf]
  %v115 = vld [vmem:[%s1 + $0x144] sm:$0xf]
  %v116 = vld [vmem:[%s1 + $0x148] sm:$0xf]
  %v117 = vld [vmem:[%s1 + $0x14c] sm:$0xf]
  %v118 = vld [vmem:[%s1 + $0x150] sm:$0xf]
  %v119 = vld [vmem:[%s1 + $0x154] sm:$0xf]
  %v120 = vld [vmem:[%s1 + $0x158] sm:$0xf]
  %v121 = vld [vmem:[%s1 + $0x15c] sm:$0xf]
  %v122 = vld [vmem:[%s1 + $0x160] sm:$0xf]
  %v123 = vld [vmem:[%s1 + $0x164] sm:$0xf]
  %v124 = vld [vmem:[%s1 + $0x168] sm:$0xf]
  %v125 = vld [vmem:[%s1 + $0x16c] sm:$0xf]
  %v126 = vld [vmem:[%s1 + $0x170] sm:$0xf]
  %v127 = vld [vmem:[%s1 + $0x174] sm:$0xf]
  %v128 = vld [vmem:[%s1 + $0x178] sm:$0xf]
  %v129 = vld [vmem:[%s1 + $0x17c] sm:$0xf]
  %v130 = vld [vmem:[%s1 + $0x180] sm:$0xf]
  %v131 = vld [vmem:[%s1 + $0x184] sm:$0xf]
  %v132 = vld [vmem:[%s1 + $0x188] sm:$0xf]
  %v133 = vld [vmem:[%s1 + $0x18c] sm:$0xf]
  %v134 = vld [vmem:[%s1 + $0x190] sm:$0xf]
  %v135 = vld [vmem:[%s1 + $0x194] sm:$0xf]
  %v136 = vld [vmem:[%s1 + $0x198] sm:$0xf]
  %v137 = vld [vmem:[%s1 + $0x19c] sm:$0xf]
  %v138 = vld [vmem:[%s1 + $0x1a0] sm:$0xf]
  %v139 = vld [vmem:[%s1 + $0x1a4] sm:$0xf]
  %v140 = vld [vmem:[%s1 + $0x1a8] sm:$0xf]
  %v141 = vld [vmem:[%s1 + $0x1ac] sm:$0xf]
  %v142 = vld [vmem:[%s1 + $0x1b0] sm:$0xf]
  %v143 = vld [vmem:[%s1 + $0x1b4] sm:$0xf]
  %v144 = vld [vmem:[%s1 + $0x1b8] sm:$0xf]
  %v145 = vld [vmem:[%s1 + $0x1bc] sm:$0xf]
  %v146 = vld [vmem:[%s1 + $0x1c0] sm:$0xf]
  %v147 = vld [vmem:[%s1 + $0x1c4] sm:$0xf]
  %v148 = vld [vmem:[%s1 + $0x1c8] sm:$0xf]
  %v149 = vld [vmem:[%s1 + $0x1cc] sm:$0xf]
  %v150 = vld [vmem:[%s1 + $0x1d0] sm:$0xf]
  %v151 = vld [vmem:[%s1 + $0x1d4] sm:$0xf]
  %v152 = vld [vmem:[%s1 + $0x1d8] sm:$0xf]
  %v153 = vld [vmem:[%s1 + $0x1dc] sm:$0xf]
  %v154 = vld [vmem:[%s1 + $0x1e0] sm:$0xf]
  %v155 = vld [vmem:[%s1 + $0x1e4] sm:$0xf]
  %v156 = vld [vmem:[%s1 + $0x1e8] sm:$0xf]
  %v157 = vld [vmem:[%s1 + $0x1ec] sm:$0xf]
  %v158 = vld [vmem:[%s1 + $0x1f0] sm:$0xf]
  %v159 = vld [vmem:[%s1 + $0x1f4] sm:$0xf]
  %v160 = vld [vmem:[%s1 + $0x1f8] sm:$0xf]
  %v161 = vld [vmem:[%s1 + $0x1fc] sm:$0xf]
  %v162 = vld [vmem:[%s1 + $0x200] sm:$0xf]
  %v163 = vld [vmem:[%s1 + $0x204] sm:$0xf]
  %v164 = vld [vmem:[%s1 + $0x208] sm:$0xf]
  %v165 = vld [vmem:[%s1 + $0x20c] sm:$0xf]
  %v166 = vld [vmem:[%s1 + $0x210] sm:$0xf]
  %v167 = vld [vmem:[%s1 + $0x214] sm:$0xf]
  %v168 = vld [vmem:[%s1 + $0x218] sm:$0xf]
  %v169 = vld [vmem:[%s1 + $0x21c] sm:$0xf]
  %v170 = vld [vmem:[%s1 + $0x220] sm:$0xf]
  %v171 = vld [vmem:[%s1 + $0x224] sm:$0xf]
  %v172 = vld [vmem:[%s1 + $0x228] sm:$0xf]
  %v173 = vld [vmem:[%s1 + $0x22c] sm:$0xf]
  %v174 = vld [vmem:[%s1 + $0x230] sm:$0xf]
  %v175 = vld [vmem:[%s1 + $0x234] sm:$0xf]
  %v176 = vld [vmem:[%s1 + $0x238] sm:$0xf]
  %v177 = vld [vmem:[%s1 + $0x23c] sm:$0xf]
  %v178 = vld [vmem:[%s1 + $0x240] sm:$0xf]
  %v179 = vld [vmem:[%s1 + $0x244] sm:$0xf]
  %v180 = vld [vmem:[%s1 + $0x248] sm:$0xf]
  %v181 = vld [vmem:[%s1 + $0x24c] sm:$0xf]
  %v182 = vld [vmem:[%s1 + $0x250] sm:$0xf]
  %v183 = vld [vmem:[%s1 + $0x254] sm:$0xf]
  %v184 = vld [vmem:[%s1 + $0x258] sm:$0xf]
  %v185 = vld [vmem:[%s1 + $0x25c] sm:$0xf]
  %v186 = vld [vmem:[%s1 + $0x260] sm:$0xf]
  %v187 = vld [vmem:[%s1 + $0x264] sm:$0xf]
  %v188 = vld [vmem:[%s1 + $0x268] sm:$0xf]
  %v189 = vld [vmem:[%s1 + $0x26c] sm:$0xf]
  %v190 = vld [vmem:[%s1 + $0x270] sm:$0xf]
  %v191 = vld [vmem:[%s1 + $0x274] sm:$0xf]
  %v192 = vld [vmem:[%s1 + $0x278] sm:$0xf]
  %v193 = vld [vmem:[%s1 + $0x27c] sm:$0xf]
  %v194 = vld [vmem:[%s1 + $0x280] sm:$0xf]
  %v195 = vld [vmem:[%s1 + $0x284] sm:$0xf]
  %v196 = vld [vmem:[%s1 + $0x288] sm:$0xf]
  %v197 = vld [vmem:[%s1 + $0x28c] sm:$0xf]
  %v198 = vld [vmem:[%s1 + $0x290] sm:$0xf]
  %v199 = vld [vmem:[%s1 + $0x294] sm:$0xf]
  %v200 = vld [vmem:[%s1 + $0x298] sm:$0xf]
  %v201 = vld [vmem:[%s1 + $0x29c] sm:$0xf]
  %v202 = vld [vmem:[%s1 + $0x2a0] sm:$0xf]
  %v203 = vld [vmem:[%s1 + $0x2a4] sm:$0xf]
  %v204 = vld [vmem:[%s1 + $0x2a8] sm:$0xf]
  %v205 = vld [vmem:[%s1 + $0x2ac] sm:$0xf]
  %v206 = vld [vmem:[%s1 + $0x2b0] sm:$0xf]
  %v207 = vld [vmem:[%s1 + $0x2b4] sm:$0xf]
  %v208 = vld [vmem:[%s1 + $0x2b8] sm:$0xf]
  %v209 = vld [vmem:[%s1 + $0x2bc] sm:$0xf]
  %v210 = vld [vmem:[%s1 + $0x2c0] sm:$0xf]
  %v211 = vld [vmem:[%s1 + $0x2c4] sm:$0xf]
  %v212 = vld [vmem:[%s1 + $0x2c8] sm:$0xf]
  %v213 = vld [vmem:[%s1 + $0x2cc] sm:$0xf]
  %v214 = vld [vmem:[%s1 + $0x2d0] sm:$0xf]
  %v215 = vld [vmem:[%s1 + $0x2d4] sm:$0xf]
  %v216 = vld [vmem:[%s1 + $0x2d8] sm:$0xf]
  %v217 = vld [vmem:[%s1 + $0x2dc] sm:$0xf]
  %v218 = vld [vmem:[%s1 + $0x2e0] sm:$0xf]
  %v219 = vld [vmem:[%s1 + $0x2e4] sm:$0xf]
  %v220 = vld [vmem:[%s1 + $0x2e8] sm:$0xf]
  %v221 = vld [vmem:[%s1 + $0x2ec] sm:$0xf]
  %v222 = vld [vmem:[%s1 + $0x2f0] sm:$0xf]
  %v223 = vld [vmem:[%s1 + $0x2f4] sm:$0xf]
  %v224 = vld [vmem:[%s1 + $0x2f8] sm:$0xf]
  %v225 = vld [vmem:[%s1 + $0x2fc] sm:$0xf]
  %v226 = vld [vmem:[%s1 + $0x300] sm:$0xf]
  %v227 = vld [vmem:[%s1 + $0x304] sm:$0xf]
  %v228 = vld [vmem:[%s1 + $0x308] sm:$0xf]
  %v229 = vld [vmem:[%s1 + $0x30c] sm:$0xf]
  %v230 = vld [vmem:[%s1 + $0x310] sm:$0xf]
  %v231 = vld [vmem:[%s1 + $0x314] sm:$0xf]
  %v232 = vld [vmem:[%s1 + $0x318] sm:$0xf]
  %v233 = vld [vmem:[%s1 + $0x31c] sm:$0xf]
  %v234 = vld [vmem:[%s1 + $0x320] sm:$0xf]
  %v235 = vld [vmem:[%s1 + $0x324] sm:$0xf]
  %v236 = vld [vmem:[%s1 + $0x328] sm:$0xf]
  %v237 = vld [vmem:[%s1 + $0x32c] sm:$0xf]
  %v238 = vld [vmem:[%s1 + $0x330] sm:$0xf]
  %v239 = vld [vmem:[%s1 + $0x334] sm:$0xf]
  %v240 = vld [vmem:[%s1 + $0x338] sm:$0xf]
  %v241 = vld [vmem:[%s1 + $0x33c] sm:$0xf]
  %v242 = vld [vmem:[%s1 + $0x340] sm:$0xf]
  %v243 = vld [vmem:[%s1 + $0x344] sm:$0xf]
  %v244 = vld [vmem:[%s1 + $0x348] sm:$0xf]
  %v245 = vld [vmem:[%s1 + $0x34c] sm:$0xf]
  %v246 = vld [vmem:[%s1 + $0x350] sm:$0xf]
  %v247 = vld [vmem:[%s1 + $0x354] sm:$0xf]
  %v248 = vld [vmem:[%s1 + $0x358] sm:$0xf]
  %v249 = vld [vmem:[%s1 + $0x35c] sm:$0xf]
  %v250 = vld [vmem:[%s1 + $0x360] sm:$0xf]
  %v251 = vld [vmem:[%s1 + $0x364] sm:$0xf]
  %v252 = vld [vmem:[%s1 + $0x368] sm:$0xf]
  %v253 = vld [vmem:[%s1 + $0x36c] sm:$0xf]
  %v254 = vld [vmem:[%s1 + $0x370] sm:$0xf]
  %v255 = vld [vmem:[%s1 + $0x374] sm:$0xf]
  %v256 = vld [vmem:[%s1 + $0x378] sm:$0xf]
  %v257 = vld [vmem:[%s1 + $0x37c] sm:$0xf]
  %v258 = vld [vmem:[%s1 + $0x380] sm:$0xf]
  %v259 = vld [vmem:[%s1 + $0x384] sm:$0xf]
  %v260 = vld [vmem:[%s1 + $0x388] sm:$0xf]
  %v261 = vld [vmem:[%s1 + $0x38c] sm:$0xf]
  %v262 = vld [vmem:[%s1 + $0x390] sm:$0xf]
  %v263 = vld [vmem:[%s1 + $0x394] sm:$0xf]
  %v264 = vld [vmem:[%s1 + $0x398] sm:$0xf]
  %v265 = vld [vmem:[%s1 + $0x39c] sm:$0xf]
  %v266 = vld [vmem:[%s1 + $0x3a0] sm:$0xf]
  %v267 = vld [vmem:[%s1 + $0x3a4] sm:$0xf]
  %v268 = vld [vmem:[%s1 + $0x3a8] sm:$0xf]
  %v269 = vld [vmem:[%s1 + $0x3ac] sm:$0xf]
  %v270 = vld [vmem:[%s1 + $0x3b0] sm:$0xf]
  %v271 = vld [vmem:[%s1 + $0x3b4] sm:$0xf]
  %v272 = vld [vmem:[%s1 + $0x3b8] sm:$0xf]
  %v273 = vld [vmem:[%s1 + $0x3bc] sm:$0xf]
  %v274 = vld [vmem:[%s1 + $0x3c0] sm:$0xf]
  %v275 = vld [vmem:[%s1 + $0x3c4] sm:$0xf]
  %v276 = vld [vmem:[%s1 + $0x3c8] sm:$0xf]
  %v277 = vld [vmem:[%s1 + $0x3cc] sm:$0xf]
  %v278 = vld [vmem:[%s1 + $0x3d0] sm:$0xf]
  %v279 = vld [vmem:[%s1 + $0x3d4] sm:$0xf]
  %v280 = vld [vmem:[%s1 + $0x3d8] sm:$0xf]
  %v281 = vld [vmem:[%s1 + $0x3dc] sm:$0xf]
  %v282 = vld [vmem:[%s1 + $0x3e0] sm:$0xf]
  %v283 = vld [vmem:[%s1 + $0x3e4] sm:$0xf]
  %v284 = vld [vmem:[%s1 + $0x3e8] sm:$0xf]
  %v285 = vld [vmem:[%s1 + $0x3ec] sm:$0xf]
  %v286 = vld [vmem:[%s1 + $0x3f0] sm:$0xf]
  %v287 = vld [vmem:[%s1 + $0x3f4] sm:$0xf]
  %v288 = vld [vmem:[%s1 + $0x3f8] sm:$0xf]
  %v289 = vld [vmem:[%s1 + $0x3fc] sm:$0xf]
  %v290 = vld [vmem:[%s1 + $0x400] sm:$0xf]
  %v291 = vld [vmem:[%s1 + $0x404] sm:$0xf]
  %v292 = vld [vmem:[%s1 + $0x408] sm:$0xf]
  %v293 = vld [vmem:[%s1 + $0x40c] sm:$0xf]
  %v294 = vld [vmem:[%s1 + $0x410] sm:$0xf]
  %v295 = vld [vmem:[%s1 + $0x414] sm:$0xf]
  %v296 = vld [vmem:[%s1 + $0x418] sm:$0xf]
  %v297 = vld [vmem:[%s1 + $0x41c] sm:$0xf]
  %v298 = vld [vmem:[%s1 + $0x420] sm:$0xf]
  %v299 = vld [vmem:[%s1 + $0x424] sm:$0xf]
  %v300 = vld [vmem:[%s1 + $0x428] sm:$0xf]
  %v301 = vld [vmem:[%s1 + $0x42c] sm:$0xf]
  %v302 = vld [vmem:[%s1 + $0x430] sm:$0xf]
  %v303 = vld [vmem:[%s1 + $0x434] sm:$0xf]
  %v304 = vld [vmem:[%s1 + $0x438] sm:$0xf]
  %v305 = vld [vmem:[%s1 + $0x43c] sm:$0xf]
  %v306 = vld [vmem:[%s1 + $0x440] sm:$0xf]
  %v307 = vld [vmem:[%s1 + $0x444] sm:$0xf]
  %v308 = vld [vmem:[%s1 + $0x448] sm:$0xf]
  %v309 = vld [vmem:[%s1 + $0x44c] sm:$0xf]
  %v310 = vld [vmem:[%s1 + $0x450] sm:$0xf]
  %v311 = vld [vmem:[%s1 + $0x454] sm:$0xf]
  %v312 = vld [vmem:[%s1 + $0x458] sm:$0xf]
  %v313 = vld [vmem:[%s1 + $0x45c] sm:$0xf]
  %v314 = vld [vmem:[%s1 + $0x460] sm:$0xf]
  %v315 = vld [vmem:[%s1 + $0x464] sm:$0xf]
  %v316 = vld [vmem:[%s1 + $0x468] sm:$0xf]
  %v317 = vld [vmem:[%s1 + $0x46c] sm:$0xf]
  %v318 = vld [vmem:[%s1 + $0x470] sm:$0xf]
  %v319 = vld [vmem:[%s1 + $0x474] sm:$0xf]
  %v320 = vld [vmem:[%s1 + $0x478] sm:$0xf]
  %v321 = vld [vmem:[%s1 + $0x47c] sm:$0xf]
  %v322 = vld [vmem:[%s1 + $0x480] sm:$0xf]
  %v323 = vld [vmem:[%s1 + $0x484] sm:$0xf]
  %v324 = vld [vmem:[%s1 + $0x488] sm:$0xf]
  %v325 = vld [vmem:[%s1 + $0x48c] sm:$0xf]
  %v326 = vld [vmem:[%s1 + $0x490] sm:$0xf]
  %v327 = vld [vmem:[%s1 + $0x494] sm:$0xf]
  %v328 = vld [vmem:[%s1 + $0x498] sm:$0xf]
  %v329 = vld [vmem:[%s1 + $0x49c] sm:$0xf]
  %v330 = vld [vmem:[%s1 + $0x4a0] sm:$0xf]
  %v331 = vld [vmem:[%s1 + $0x4a4] sm:$0xf]
  %v332 = vld [vmem:[%s1 + $0x4a8] sm:$0xf]
  %v333 = vld [vmem:[%s1 + $0x4ac] sm:$0xf]
  %v334 = vld [vmem:[%s1 + $0x4b0] sm:$0xf]
  %v335 = vld [vmem:[%s1 + $0x4b4] sm:$0xf]
  %v336 = vld [vmem:[%s1 + $0x4b8] sm:$0xf]
  %v337 = vld [vmem:[%s1 + $0x4bc] sm:$0xf]
  %v338 = vld [vmem:[%s1 + $0x4c0] sm:$0xf]
  %v339 = vld [vmem:[%s1 + $0x4c4] sm:$0xf]
  %v340 = vld [vmem:[%s1 + $0x4c8] sm:$0xf]
  %v341 = vld [vmem:[%s1 + $0x4cc] sm:$0xf]
  %v342 = vld [vmem:[%s1 + $0x4d0] sm:$0xf]
  %v343 = vld [vmem:[%s1 + $0x4d4] sm:$0xf]
  %v344 = vld [vmem:[%s1 + $0x4d8] sm:$0xf]
  %v345 = vld [vmem:[%s1 + $0x4dc] sm:$0xf]
  %v346 = vld [vmem:[%s1 + $0x4e0] sm:$0xf]
  %v347 = vld [vmem:[%s1 + $0x4e4] sm:$0xf]
  %v348 = vld [vmem:[%s1 + $0x4e8] sm:$0xf]
  %v349 = vld [vmem:[%s1 + $0x4ec] sm:$0xf]
  %v350 = vld [vmem:[%s1 + $0x4f0] sm:$0xf]
  %v351 = vld [vmem:[%s1 + $0x4f4] sm:$0xf]
  %v352 = vld [vmem:[%s1 + $0x4f8] sm:$0xf]
  %v353 = vld [vmem:[%s1 + $0x4fc] sm:$0xf]
  %v354 = vld [vmem:[%s1 + $0x500] sm:$0xf]
  %v355 = vld [vmem:[%s1 + $0x504] sm:$0xf]
  %v356 = vld [vmem:[%s1 + $0x508] sm:$0xf]
  %v357 = vld [vmem:[%s1 + $0x50c] sm:$0xf]
  %v358 = vld [vmem:[%s1 + $0x510] sm:$0xf]
  %v359 = vld [vmem:[%s1 + $0x514] sm:$0xf]
  %v360 = vld [vmem:[%s1 + $0x518] sm:$0xf]
  %v361 = vld [vmem:[%s1 + $0x51c] sm:$0xf]
  %v362 = vld [vmem:[%s1 + $0x520] sm:$0xf]
  %v363 = vld [vmem:[%s1 + $0x524] sm:$0xf]
  %v364 = vld [vmem:[%s1 + $0x528] sm:$0xf]
  %v365 = vld [vmem:[%s1 + $0x52c] sm:$0xf]
  %v366 = vld [vmem:[%s1 + $0x530] sm:$0xf]
  %v367 = vld [vmem:[%s1 + $0x534] sm:$0xf]
  %v368 = vld [vmem:[%s1 + $0x538] sm:$0xf]
  %v369 = vld [vmem:[%s1 + $0x53c] sm:$0xf]
  %v370 = vld [vmem:[%s1 + $0x540] sm:$0xf]
  %v371 = vld [vmem:[%s1 + $0x544] sm:$0xf]
  %v372 = vld [vmem:[%s1 + $0x548] sm:$0xf]
  %v373 = vld [vmem:[%s1 + $0x54c] sm:$0xf]
  %v374 = vld [vmem:[%s1 + $0x550] sm:$0xf]
  %v375 = vld [vmem:[%s1 + $0x554] sm:$0xf]
  %v376 = vld [vmem:[%s1 + $0x558] sm:$0xf]
  %v377 = vld [vmem:[%s1 + $0x55c] sm:$0xf]
  %v378 = vld [vmem:[%s1 + $0x560] sm:$0xf]
  %v379 = vld [vmem:[%s1 + $0x564] sm:$0xf]
  %v380 = vld [vmem:[%s1 + $0x568] sm:$0xf]
  %v381 = vld [vmem:[%s1 + $0x56c] sm:$0xf]
  %v382 = vld [vmem:[%s1 + $0x570] sm:$0xf]
  %v383 = vld [vmem:[%s1 + $0x574] sm:$0xf]
  %v384 = vld [vmem:[%s1 + $0x578] sm:$0xf]
  %v385 = vld [vmem:[%s1 + $0x57c] sm:$0xf]
  %v386 = vld [vmem:[%s1 + $0x580] sm:$0xf]
  %v387 = vld [vmem:[%s1 + $0x584] sm:$0xf]
  %v388 = vld [vmem:[%s1 + $0x588] sm:$0xf]
  %v389 = vld [vmem:[%s1 + $0x58c] sm:$0xf]
  %v390 = vld [vmem:[%s1 + $0x590] sm:$0xf]
  %v391 = vld [vmem:[%s1 + $0x594] sm:$0xf]
  %v392 = vld [vmem:[%s1 + $0x598] sm:$0xf]
  %v393 = vld [vmem:[%s1 + $0x59c] sm:$0xf]
  %v394 = vld [vmem:[%s1 + $0x5a0] sm:$0xf]
  %v395 = vld [vmem:[%s1 + $0x5a4] sm:$0xf]
  %v396 = vld [vmem:[%s1 + $0x5a8] sm:$0xf]
  %v397 = vld [vmem:[%s1 + $0x5ac] sm:$0xf]
  %v398 = vld [vmem:[%s1 + $0x5b0] sm:$0xf]
  %v399 = vld [vmem:[%s1 + $0x5b4] sm:$0xf]
  %v400 = vld [vmem:[%s1 + $0x5b8] sm:$0xf]
  %v401 = vld [vmem:[%s1 + $0x5bc] sm:$0xf]
  %v402 = vld [vmem:[%s1 + $0x5c0] sm:$0xf]
  %v403 = vld [vmem:[%s1 + $0x5c4] sm:$0xf]
  %v404 = vld [vmem:[%s1 + $0x5c8] sm:$0xf]
  %v405 = vld [vmem:[%s1 + $0x5cc] sm:$0xf]
  %v406 = vld [vmem:[%s1 + $0x5d0] sm:$0xf]
  %v407 = vld [vmem:[%s1 + $0x5d4] sm:$0xf]
  %v408 = vld [vmem:[%s1 + $0x5d8] sm:$0xf]
  %v409 = vld [vmem:[%s1 + $0x5dc] sm:$0xf]
  %v410 = vld [vmem:[%s1 + $0x5e0] sm:$0xf]
  %v411 = vld [vmem:[%s1 + $0x5e4] sm:$0xf]
  %v412 = vld [vmem:[%s1 + $0x5e8] sm:$0xf]
  %v413 = vld [vmem:[%s1 + $0x5ec] sm:$0xf]
  %v414 = vld [vmem:[%s1 + $0x5f0] sm:$0xf]
  %v415 = vld [vmem:[%s1 + $0x5f4] sm:$0xf]
  %v416 = vld [vmem:[%s1 + $0x5f8] sm:$0xf]
  %v417 = vld [vmem:[%s1 + $0x5fc] sm:$0xf]
  %v418 = vld [vmem:[%s1 + $0x600] sm:$0xf]
  %v419 = vld [vmem:[%s1 + $0x604] sm:$0xf]
  %v420 = vld [vmem:[%s1 + $0x608] sm:$0xf]
  %v421 = vld [vmem:[%s1 + $0x60c] sm:$0xf]
  %v422 = vld [vmem:[%s1 + $0x610] sm:$0xf]
  %v423 = vld [vmem:[%s1 + $0x614] sm:$0xf]
  %v424 = vld [vmem:[%s1 + $0x618] sm:$0xf]
  %v425 = vld [vmem:[%s1 + $0x61c] sm:$0xf]
  %v426 = vld [vmem:[%s2] sm:$0x1]
  %v428 = vperm.slane %v426, 0
  %v443 = vunpack.c.l.b16 %v21
  %v444 = vunpack.c.h.b16 %v21
  %v445 = vunpack.c.l.b16 %v22
  %v446 = vunpack.c.h.b16 %v22
  %v447 = vunpack.c.l.b16 %v23
  %v448 = vunpack.c.h.b16 %v23
  %v449 = vunpack.c.l.b16 %v24
  %v450 = vunpack.c.h.b16 %v24
  %v451 = vunpack.c.l.b16 %v25
  %v452 = vunpack.c.h.b16 %v25
  %v453 = vunpack.c.l.b16 %v26
  %v454 = vunpack.c.h.b16 %v26
  %v455 = vunpack.c.l.b16 %v27
  %v456 = vunpack.c.h.b16 %v27
  %v457 = vunpack.c.l.b16 %v28
  %v458 = vunpack.c.h.b16 %v28
  %v459 = vunpack.c.l.b16 %v29
  %v460 = vunpack.c.h.b16 %v29
  %v461 = vunpack.c.l.b16 %v30
  %v462 = vunpack.c.h.b16 %v30
  %v463 = vunpack.c.l.b16 %v31
  %v464 = vunpack.c.h.b16 %v31
  %v465 = vunpack.c.l.b16 %v32
  %v466 = vunpack.c.h.b16 %v32
  %v467 = vunpack.c.l.b16 %v33
  %v468 = vpack.c.b16 %v443, %v443
  %v469 = vpack.c.b16 %v444, %v444
  %v470 = vpack.c.b16 %v445, %v445
  %v471 = vpack.c.b16 %v446, %v446
  %v472 = vpack.c.b16 %v447, %v447
  %v473 = vpack.c.b16 %v448, %v448
  %v474 = vpack.c.b16 %v449, %v449
  %v475 = vpack.c.b16 %v450, %v450
  %v476 = vpack.c.b16 %v451, %v451
  %v477 = vpack.c.b16 %v452, %v452
  %v478 = vpack.c.b16 %v453, %v453
  %v479 = vpack.c.b16 %v454, %v454
  %v480 = vpack.c.b16 %v455, %v455
  %v481 = vpack.c.b16 %v456, %v456
  %v482 = vpack.c.b16 %v457, %v457
  %v483 = vpack.c.b16 %v458, %v458
  %v484 = vpack.c.b16 %v459, %v459
  %v485 = vpack.c.b16 %v460, %v460
  %v486 = vpack.c.b16 %v461, %v461
  %v487 = vpack.c.b16 %v462, %v462
  %v488 = vpack.c.b16 %v463, %v463
  %v489 = vpack.c.b16 %v464, %v464
  %v490 = vpack.c.b16 %v465, %v465
  %v491 = vpack.c.b16 %v466, %v466
  %v492 = vpack.c.b16 %v467, %v467
  %v909 = vunpack.c.l.b16 %v34
  %v910 = vunpack.c.l.b16 %v35
  %v911 = vunpack.c.l.b16 %v36
  %v912 = vunpack.c.l.b16 %v37
  %v913 = vunpack.c.l.b16 %v38
  %v914 = vunpack.c.l.b16 %v39
  %v915 = vunpack.c.l.b16 %v40
  %v916 = vunpack.c.l.b16 %v41
  %v917 = vunpack.c.l.b16 %v42
  %v918 = vunpack.c.l.b16 %v43
  %v919 = vunpack.c.l.b16 %v44
  %v920 = vunpack.c.l.b16 %v45
  %v921 = vunpack.c.l.b16 %v46
  %v922 = vunpack.c.l.b16 %v47
  %v923 = vunpack.c.l.b16 %v48
  %v924 = vunpack.c.l.b16 %v49
  %v925 = vunpack.c.l.b16 %v50
  %v926 = vunpack.c.l.b16 %v51
  %v927 = vunpack.c.l.b16 %v52
  %v928 = vunpack.c.l.b16 %v53
  %v929 = vunpack.c.l.b16 %v54
  %v930 = vunpack.c.l.b16 %v55
  %v931 = vunpack.c.l.b16 %v56
  %v932 = vunpack.c.l.b16 %v57
  %v933 = vunpack.c.l.b16 %v58
  %v934 = vunpack.c.l.b16 %v59
  %v935 = vunpack.c.l.b16 %v60
  %v936 = vunpack.c.l.b16 %v61
  %v937 = vunpack.c.l.b16 %v62
  %v938 = vunpack.c.l.b16 %v63
  %v939 = vunpack.c.l.b16 %v64
  %v940 = vunpack.c.l.b16 %v65
  %v941 = vunpack.c.l.b16 %v66
  %v942 = vunpack.c.l.b16 %v67
  %v943 = vunpack.c.l.b16 %v68
  %v944 = vunpack.c.l.b16 %v69
  %v945 = vunpack.c.l.b16 %v70
  %v946 = vunpack.c.l.b16 %v71
  %v947 = vunpack.c.l.b16 %v72
  %v948 = vunpack.c.l.b16 %v73
  %v949 = vunpack.c.l.b16 %v74
  %v950 = vunpack.c.l.b16 %v75
  %v951 = vunpack.c.l.b16 %v76
  %v952 = vunpack.c.l.b16 %v77
  %v953 = vunpack.c.l.b16 %v78
  %v954 = vunpack.c.l.b16 %v79
  %v955 = vunpack.c.l.b16 %v80
  %v956 = vunpack.c.l.b16 %v81
  %v957 = vunpack.c.l.b16 %v82
  %v958 = vunpack.c.l.b16 %v83
  %v959 = vunpack.c.l.b16 %v84
  %v960 = vunpack.c.l.b16 %v85
  %v961 = vunpack.c.l.b16 %v86
  %v962 = vunpack.c.l.b16 %v87
  %v963 = vunpack.c.l.b16 %v88
  %v964 = vunpack.c.l.b16 %v89
  %v965 = vunpack.c.l.b16 %v90
  %v966 = vunpack.c.l.b16 %v91
  %v967 = vunpack.c.l.b16 %v92
  %v968 = vunpack.c.l.b16 %v93
  %v969 = vunpack.c.l.b16 %v94
  %v970 = vunpack.c.l.b16 %v95
  %v971 = vunpack.c.l.b16 %v96
  %v972 = vunpack.c.l.b16 %v97
  %v973 = vunpack.c.l.b16 %v98
  %v974 = vunpack.c.l.b16 %v99
  %v975 = vunpack.c.l.b16 %v100
  %v976 = vunpack.c.l.b16 %v101
  %v977 = vunpack.c.l.b16 %v102
  %v978 = vunpack.c.l.b16 %v103
  %v979 = vunpack.c.l.b16 %v104
  %v980 = vunpack.c.l.b16 %v105
  %v981 = vunpack.c.l.b16 %v106
  %v982 = vunpack.c.l.b16 %v107
  %v983 = vunpack.c.l.b16 %v108
  %v984 = vunpack.c.l.b16 %v109
  %v985 = vunpack.c.l.b16 %v110
  %v986 = vunpack.c.l.b16 %v111
  %v987 = vunpack.c.l.b16 %v112
  %v988 = vunpack.c.l.b16 %v113
  %v989 = vunpack.c.l.b16 %v114
  %v990 = vunpack.c.l.b16 %v115
  %v991 = vunpack.c.l.b16 %v116
  %v992 = vunpack.c.l.b16 %v117
  %v993 = vunpack.c.l.b16 %v118
  %v994 = vunpack.c.l.b16 %v119
  %v995 = vunpack.c.l.b16 %v120
  %v996 = vunpack.c.l.b16 %v121
  %v997 = vunpack.c.l.b16 %v122
  %v998 = vunpack.c.l.b16 %v123
  %v999 = vunpack.c.l.b16 %v124
  %v1000 = vunpack.c.l.b16 %v125
  %v1001 = vunpack.c.l.b16 %v126
  %v1002 = vunpack.c.l.b16 %v127
  %v1003 = vunpack.c.l.b16 %v128
  %v1004 = vunpack.c.l.b16 %v129
  %v1005 = vunpack.c.l.b16 %v130
  %v1006 = vunpack.c.l.b16 %v131
  %v1007 = vunpack.c.l.b16 %v132
  %v1008 = vunpack.c.l.b16 %v133
  %v1009 = vunpack.c.l.b16 %v134
  %v1010 = vunpack.c.l.b16 %v135
  %v1011 = vunpack.c.l.b16 %v136
  %v1012 = vunpack.c.l.b16 %v137
  %v1013 = vunpack.c.l.b16 %v138
  %v1014 = vunpack.c.l.b16 %v139
  %v1015 = vunpack.c.l.b16 %v140
  %v1016 = vunpack.c.l.b16 %v141
  %v1017 = vunpack.c.l.b16 %v142
  %v1018 = vunpack.c.l.b16 %v143
  %v1019 = vunpack.c.l.b16 %v144
  %v1020 = vunpack.c.l.b16 %v145
  %v1021 = vunpack.c.l.b16 %v146
  %v1022 = vunpack.c.l.b16 %v147
  %v1023 = vunpack.c.l.b16 %v148
  %v1024 = vunpack.c.l.b16 %v149
  %v1025 = vunpack.c.l.b16 %v150
  %v1026 = vunpack.c.l.b16 %v151
  %v1027 = vunpack.c.l.b16 %v152
  %v1028 = vunpack.c.l.b16 %v153
  %v1029 = vunpack.c.l.b16 %v154
  %v1030 = vunpack.c.l.b16 %v155
  %v1031 = vunpack.c.l.b16 %v156
  %v1032 = vunpack.c.l.b16 %v157
  %v1033 = vunpack.c.l.b16 %v158
  %v1034 = vunpack.c.l.b16 %v159
  %v1035 = vunpack.c.l.b16 %v160
  %v1036 = vunpack.c.l.b16 %v161
  %v1037 = vunpack.c.l.b16 %v162
  %v1038 = vunpack.c.l.b16 %v163
  %v1039 = vunpack.c.l.b16 %v164
  %v1040 = vunpack.c.l.b16 %v165
  %v1041 = vunpack.c.l.b16 %v166
  %v1042 = vunpack.c.l.b16 %v167
  %v1043 = vunpack.c.l.b16 %v168
  %v1044 = vunpack.c.l.b16 %v169
  %v1045 = vunpack.c.l.b16 %v170
  %v1046 = vunpack.c.l.b16 %v171
  %v1047 = vunpack.c.l.b16 %v172
  %v1048 = vunpack.c.l.b16 %v173
  %v1049 = vunpack.c.l.b16 %v174
  %v1050 = vunpack.c.l.b16 %v175
  %v1051 = vunpack.c.l.b16 %v176
  %v1052 = vunpack.c.l.b16 %v177
  %v1053 = vunpack.c.l.b16 %v178
  %v1054 = vunpack.c.l.b16 %v179
  %v1055 = vunpack.c.l.b16 %v180
  %v1056 = vunpack.c.l.b16 %v181
  %v1057 = vunpack.c.l.b16 %v182
  %v1058 = vunpack.c.l.b16 %v183
  %v1059 = vunpack.c.l.b16 %v184
  %v1060 = vunpack.c.l.b16 %v185
  %v1061 = vunpack.c.l.b16 %v186
  %v1062 = vunpack.c.l.b16 %v187
  %v1063 = vunpack.c.l.b16 %v188
  %v1064 = vunpack.c.l.b16 %v189
  %v1065 = vunpack.c.l.b16 %v190
  %v1066 = vunpack.c.l.b16 %v191
  %v1067 = vunpack.c.l.b16 %v192
  %v1068 = vunpack.c.l.b16 %v193
  %v1069 = vunpack.c.l.b16 %v194
  %v1070 = vunpack.c.l.b16 %v195
  %v1071 = vunpack.c.l.b16 %v196
  %v1072 = vunpack.c.l.b16 %v197
  %v1073 = vunpack.c.l.b16 %v198
  %v1074 = vunpack.c.l.b16 %v199
  %v1075 = vunpack.c.l.b16 %v200
  %v1076 = vunpack.c.l.b16 %v201
  %v1077 = vunpack.c.l.b16 %v202
  %v1078 = vunpack.c.l.b16 %v203
  %v1079 = vunpack.c.l.b16 %v204
  %v1080 = vunpack.c.l.b16 %v205
  %v1081 = vunpack.c.l.b16 %v206
  %v1082 = vunpack.c.l.b16 %v207
  %v1083 = vunpack.c.l.b16 %v208
  %v1084 = vunpack.c.l.b16 %v209
  %v1085 = vunpack.c.l.b16 %v210
  %v1086 = vunpack.c.l.b16 %v211
  %v1087 = vunpack.c.l.b16 %v212
  %v1088 = vunpack.c.l.b16 %v213
  %v1089 = vunpack.c.l.b16 %v214
  %v1090 = vunpack.c.l.b16 %v215
  %v1091 = vunpack.c.l.b16 %v216
  %v1092 = vunpack.c.l.b16 %v217
  %v1093 = vunpack.c.l.b16 %v218
  %v1094 = vunpack.c.l.b16 %v219
  %v1095 = vunpack.c.l.b16 %v220
  %v1096 = vunpack.c.l.b16 %v221
  %v1097 = vunpack.c.l.b16 %v222
  %v1098 = vunpack.c.l.b16 %v223
  %v1099 = vunpack.c.l.b16 %v224
  %v1100 = vunpack.c.l.b16 %v225
  %v1101 = vunpack.c.l.b16 %v226
  %v1102 = vunpack.c.l.b16 %v227
  %v1103 = vunpack.c.l.b16 %v228
  %v1104 = vunpack.c.l.b16 %v229
  %v1105 = vunpack.c.l.b16 %v230
  %v1106 = vunpack.c.l.b16 %v231
  %v1107 = vunpack.c.l.b16 %v232
  %v1108 = vunpack.c.l.b16 %v233
  %v1109 = vunpack.c.l.b16 %v234
  %v1110 = vunpack.c.l.b16 %v235
  %v1111 = vunpack.c.l.b16 %v236
  %v1112 = vunpack.c.l.b16 %v237
  %v1113 = vunpack.c.l.b16 %v238
  %v1114 = vunpack.c.l.b16 %v239
  %v1115 = vunpack.c.l.b16 %v240
  %v1116 = vunpack.c.l.b16 %v241
  %v1117 = vunpack.c.l.b16 %v242
  %v1118 = vunpack.c.l.b16 %v243
  %v1119 = vunpack.c.l.b16 %v244
  %v1120 = vunpack.c.l.b16 %v245
  %v1121 = vunpack.c.l.b16 %v246
  %v1122 = vunpack.c.l.b16 %v247
  %v1123 = vunpack.c.l.b16 %v248
  %v1124 = vunpack.c.l.b16 %v249
  %v1125 = vunpack.c.l.b16 %v250
  %v1126 = vunpack.c.l.b16 %v251
  %v1127 = vunpack.c.l.b16 %v252
  %v1128 = vunpack.c.l.b16 %v253
  %v1129 = vunpack.c.l.b16 %v254
  %v1130 = vunpack.c.l.b16 %v255
  %v1131 = vunpack.c.l.b16 %v256
  %v1132 = vunpack.c.l.b16 %v257
  %v1133 = vunpack.c.l.b16 %v258
  %v1134 = vunpack.c.l.b16 %v259
  %v1135 = vunpack.c.l.b16 %v260
  %v1136 = vunpack.c.l.b16 %v261
  %v1137 = vunpack.c.l.b16 %v262
  %v1138 = vunpack.c.l.b16 %v263
  %v1139 = vunpack.c.l.b16 %v264
  %v1140 = vunpack.c.l.b16 %v265
  %v1141 = vunpack.c.l.b16 %v266
  %v1142 = vunpack.c.l.b16 %v267
  %v1143 = vunpack.c.l.b16 %v268
  %v1144 = vunpack.c.l.b16 %v269
  %v1145 = vunpack.c.l.b16 %v270
  %v1146 = vunpack.c.l.b16 %v271
  %v1147 = vunpack.c.l.b16 %v272
  %v1148 = vunpack.c.l.b16 %v273
  %v1149 = vunpack.c.l.b16 %v274
  %v1150 = vunpack.c.l.b16 %v275
  %v1151 = vunpack.c.l.b16 %v276
  %v1152 = vunpack.c.l.b16 %v277
  %v1153 = vunpack.c.l.b16 %v278
  %v1154 = vunpack.c.l.b16 %v279
  %v1155 = vunpack.c.l.b16 %v280
  %v1156 = vunpack.c.l.b16 %v281
  %v1157 = vunpack.c.l.b16 %v282
  %v1158 = vunpack.c.l.b16 %v283
  %v1159 = vunpack.c.l.b16 %v284
  %v1160 = vunpack.c.l.b16 %v285
  %v1161 = vunpack.c.l.b16 %v286
  %v1162 = vunpack.c.l.b16 %v287
  %v1163 = vunpack.c.l.b16 %v288
  %v1164 = vunpack.c.l.b16 %v289
  %v1165 = vunpack.c.l.b16 %v290
  %v1166 = vunpack.c.l.b16 %v291
  %v1167 = vunpack.c.l.b16 %v292
  %v1168 = vunpack.c.l.b16 %v293
  %v1169 = vunpack.c.l.b16 %v294
  %v1170 = vunpack.c.l.b16 %v295
  %v1171 = vunpack.c.l.b16 %v296
  %v1172 = vunpack.c.l.b16 %v297
  %v1173 = vunpack.c.l.b16 %v298
  %v1174 = vunpack.c.l.b16 %v299
  %v1175 = vunpack.c.l.b16 %v300
  %v1176 = vunpack.c.l.b16 %v301
  %v1177 = vunpack.c.l.b16 %v302
  %v1178 = vunpack.c.l.b16 %v303
  %v1179 = vunpack.c.l.b16 %v304
  %v1180 = vunpack.c.l.b16 %v305
  %v1181 = vunpack.c.l.b16 %v306
  %v1182 = vunpack.c.l.b16 %v307
  %v1183 = vunpack.c.l.b16 %v308
  %v1184 = vunpack.c.l.b16 %v309
  %v1185 = vunpack.c.l.b16 %v310
  %v1186 = vunpack.c.l.b16 %v311
  %v1187 = vunpack.c.l.b16 %v312
  %v1188 = vunpack.c.l.b16 %v313
  %v1189 = vunpack.c.l.b16 %v314
  %v1190 = vunpack.c.l.b16 %v315
  %v1191 = vunpack.c.l.b16 %v316
  %v1192 = vunpack.c.l.b16 %v317
  %v1193 = vunpack.c.l.b16 %v318
  %v1194 = vunpack.c.l.b16 %v319
  %v1195 = vunpack.c.l.b16 %v320
  %v1196 = vunpack.c.l.b16 %v321
  %v1197 = vunpack.c.l.b16 %v322
  %v1198 = vunpack.c.l.b16 %v323
  %v1199 = vunpack.c.l.b16 %v324
  %v1200 = vunpack.c.l.b16 %v325
  %v1201 = vunpack.c.l.b16 %v326
  %v1202 = vunpack.c.l.b16 %v327
  %v1203 = vunpack.c.l.b16 %v328
  %v1204 = vunpack.c.l.b16 %v329
  %v1205 = vunpack.c.l.b16 %v330
  %v1206 = vunpack.c.l.b16 %v331
  %v1207 = vunpack.c.l.b16 %v332
  %v1208 = vunpack.c.l.b16 %v333
  %v1209 = vunpack.c.l.b16 %v334
  %v1210 = vunpack.c.l.b16 %v335
  %v1211 = vunpack.c.l.b16 %v336
  %v1212 = vunpack.c.l.b16 %v337
  %v1213 = vunpack.c.l.b16 %v338
  %v1214 = vunpack.c.l.b16 %v339
  %v1215 = vunpack.c.l.b16 %v340
  %v1216 = vunpack.c.l.b16 %v341
  %v1217 = vunpack.c.l.b16 %v342
  %v1218 = vunpack.c.l.b16 %v343
  %v1219 = vunpack.c.l.b16 %v344
  %v1220 = vunpack.c.l.b16 %v345
  %v1221 = vunpack.c.l.b16 %v346
  %v1222 = vunpack.c.l.b16 %v347
  %v1223 = vunpack.c.l.b16 %v348
  %v1224 = vunpack.c.l.b16 %v349
  %v1225 = vunpack.c.l.b16 %v350
  %v1226 = vunpack.c.l.b16 %v351
  %v1227 = vunpack.c.l.b16 %v352
  %v1228 = vunpack.c.l.b16 %v353
  %v1229 = vunpack.c.l.b16 %v354
  %v1230 = vunpack.c.l.b16 %v355
  %v1231 = vunpack.c.l.b16 %v356
  %v1232 = vunpack.c.l.b16 %v357
  %v1233 = vunpack.c.l.b16 %v358
  %v1234 = vunpack.c.l.b16 %v359
  %v1235 = vunpack.c.l.b16 %v360
  %v1236 = vunpack.c.l.b16 %v361
  %v1237 = vunpack.c.l.b16 %v362
  %v1238 = vunpack.c.l.b16 %v363
  %v1239 = vunpack.c.l.b16 %v364
  %v1240 = vunpack.c.l.b16 %v365
  %v1241 = vunpack.c.l.b16 %v366
  %v1242 = vunpack.c.l.b16 %v367
  %v1243 = vunpack.c.l.b16 %v368
  %v1244 = vunpack.c.l.b16 %v369
  %v1245 = vunpack.c.l.b16 %v370
  %v1246 = vunpack.c.l.b16 %v371
  %v1247 = vunpack.c.l.b16 %v372
  %v1248 = vunpack.c.l.b16 %v373
  %v1249 = vunpack.c.l.b16 %v374
  %v1250 = vunpack.c.l.b16 %v375
  %v1251 = vunpack.c.l.b16 %v376
  %v1252 = vunpack.c.l.b16 %v377
  %v1253 = vunpack.c.l.b16 %v378
  %v1254 = vunpack.c.l.b16 %v379
  %v1255 = vunpack.c.l.b16 %v380
  %v1256 = vunpack.c.l.b16 %v381
  %v1257 = vunpack.c.l.b16 %v382
  %v1258 = vunpack.c.l.b16 %v383
  %v1259 = vunpack.c.l.b16 %v384
  %v1260 = vunpack.c.l.b16 %v385
  %v1261 = vunpack.c.l.b16 %v386
  %v1262 = vunpack.c.l.b16 %v387
  %v1263 = vunpack.c.l.b16 %v388
  %v1264 = vunpack.c.l.b16 %v389
  %v1265 = vunpack.c.l.b16 %v390
  %v1266 = vunpack.c.l.b16 %v391
  %v1267 = vunpack.c.l.b16 %v392
  %v1268 = vunpack.c.l.b16 %v393
  %v1269 = vunpack.c.l.b16 %v394
  %v1270 = vunpack.c.l.b16 %v395
  %v1271 = vunpack.c.l.b16 %v396
  %v1272 = vunpack.c.l.b16 %v397
  %v1273 = vunpack.c.l.b16 %v398
  %v1274 = vunpack.c.l.b16 %v399
  %v1275 = vunpack.c.l.b16 %v400
  %v1276 = vunpack.c.l.b16 %v401
  %v1277 = vunpack.c.l.b16 %v402
  %v1278 = vunpack.c.l.b16 %v403
  %v1279 = vunpack.c.l.b16 %v404
  %v1280 = vunpack.c.l.b16 %v405
  %v1281 = vunpack.c.l.b16 %v406
  %v1282 = vunpack.c.l.b16 %v407
  %v1283 = vunpack.c.l.b16 %v408
  %v1284 = vunpack.c.l.b16 %v409
  %v1285 = vunpack.c.l.b16 %v410
  %v1286 = vunpack.c.l.b16 %v411
  %v1287 = vunpack.c.l.b16 %v412
  %v1288 = vunpack.c.l.b16 %v413
  %v1289 = vunpack.c.l.b16 %v414
  %v1290 = vunpack.c.l.b16 %v415
  %v1291 = vunpack.c.l.b16 %v416
  %v1292 = vunpack.c.l.b16 %v417
  %v1293 = vunpack.c.l.b16 %v418
  %v1294 = vunpack.c.l.b16 %v419
  %v1295 = vunpack.c.l.b16 %v420
  %v1296 = vunpack.c.l.b16 %v421
  %v1297 = vunpack.c.l.b16 %v422
  %v1298 = vunpack.c.l.b16 %v423
  %v1299 = vunpack.c.l.b16 %v424
  %v1300 = vunpack.c.l.b16 %v425
  %v1301 = vpack.c.b16 %v910, %v909
  %v1302 = vpack.c.b16 %v912, %v911
  %v1303 = vpack.c.b16 %v914, %v913
  %v1304 = vpack.c.b16 %v916, %v915
  %v1305 = vpack.c.b16 %v918, %v917
  %v1306 = vpack.c.b16 %v920, %v919
  %v1307 = vpack.c.b16 %v922, %v921
  %v1308 = vpack.c.b16 %v924, %v923
  %v1309 = vpack.c.b16 %v926, %v925
  %v1310 = vpack.c.b16 %v928, %v927
  %v1311 = vpack.c.b16 %v930, %v929
  %v1312 = vpack.c.b16 %v932, %v931
  %v1313 = vpack.c.b16 %v934, %v933
  %v1314 = vpack.c.b16 %v936, %v935
  %v1315 = vpack.c.b16 %v938, %v937
  %v1316 = vpack.c.b16 %v940, %v939
  %v1317 = vpack.c.b16 %v942, %v941
  %v1318 = vpack.c.b16 %v944, %v943
  %v1319 = vpack.c.b16 %v946, %v945
  %v1320 = vpack.c.b16 %v948, %v947
  %v1321 = vpack.c.b16 %v950, %v949
  %v1322 = vpack.c.b16 %v952, %v951
  %v1323 = vpack.c.b16 %v954, %v953
  %v1324 = vpack.c.b16 %v956, %v955
  %v1325 = vpack.c.b16 %v958, %v957
  %v1326 = vpack.c.b16 %v960, %v959
  %v1327 = vpack.c.b16 %v962, %v961
  %v1328 = vpack.c.b16 %v964, %v963
  %v1329 = vpack.c.b16 %v966, %v965
  %v1330 = vpack.c.b16 %v968, %v967
  %v1331 = vpack.c.b16 %v970, %v969
  %v1332 = vpack.c.b16 %v972, %v971
  %v1333 = vpack.c.b16 %v974, %v973
  %v1334 = vpack.c.b16 %v976, %v975
  %v1335 = vpack.c.b16 %v978, %v977
  %v1336 = vpack.c.b16 %v980, %v979
  %v1337 = vpack.c.b16 %v982, %v981
  %v1338 = vpack.c.b16 %v984, %v983
  %v1339 = vpack.c.b16 %v986, %v985
  %v1340 = vpack.c.b16 %v988, %v987
  %v1341 = vpack.c.b16 %v990, %v989
  %v1342 = vpack.c.b16 %v992, %v991
  %v1343 = vpack.c.b16 %v994, %v993
  %v1344 = vpack.c.b16 %v996, %v995
  %v1345 = vpack.c.b16 %v998, %v997
  %v1346 = vpack.c.b16 %v1000, %v999
  %v1347 = vpack.c.b16 %v1002, %v1001
  %v1348 = vpack.c.b16 %v1004, %v1003
  %v1349 = vpack.c.b16 %v1006, %v1005
  %v1350 = vpack.c.b16 %v1008, %v1007
  %v1351 = vpack.c.b16 %v1010, %v1009
  %v1352 = vpack.c.b16 %v1012, %v1011
  %v1353 = vpack.c.b16 %v1014, %v1013
  %v1354 = vpack.c.b16 %v1016, %v1015
  %v1355 = vpack.c.b16 %v1018, %v1017
  %v1356 = vpack.c.b16 %v1020, %v1019
  %v1357 = vpack.c.b16 %v1022, %v1021
  %v1358 = vpack.c.b16 %v1024, %v1023
  %v1359 = vpack.c.b16 %v1026, %v1025
  %v1360 = vpack.c.b16 %v1028, %v1027
  %v1361 = vpack.c.b16 %v1030, %v1029
  %v1362 = vpack.c.b16 %v1032, %v1031
  %v1363 = vpack.c.b16 %v1034, %v1033
  %v1364 = vpack.c.b16 %v1036, %v1035
  %v1365 = vpack.c.b16 %v1038, %v1037
  %v1366 = vpack.c.b16 %v1040, %v1039
  %v1367 = vpack.c.b16 %v1042, %v1041
  %v1368 = vpack.c.b16 %v1044, %v1043
  %v1369 = vpack.c.b16 %v1046, %v1045
  %v1370 = vpack.c.b16 %v1048, %v1047
  %v1371 = vpack.c.b16 %v1050, %v1049
  %v1372 = vpack.c.b16 %v1052, %v1051
  %v1373 = vpack.c.b16 %v1054, %v1053
  %v1374 = vpack.c.b16 %v1056, %v1055
  %v1375 = vpack.c.b16 %v1058, %v1057
  %v1376 = vpack.c.b16 %v1060, %v1059
  %v1377 = vpack.c.b16 %v1062, %v1061
  %v1378 = vpack.c.b16 %v1064, %v1063
  %v1379 = vpack.c.b16 %v1066, %v1065
  %v1380 = vpack.c.b16 %v1068, %v1067
  %v1381 = vpack.c.b16 %v1070, %v1069
  %v1382 = vpack.c.b16 %v1072, %v1071
  %v1383 = vpack.c.b16 %v1074, %v1073
  %v1384 = vpack.c.b16 %v1076, %v1075
  %v1385 = vpack.c.b16 %v1078, %v1077
  %v1386 = vpack.c.b16 %v1080, %v1079
  %v1387 = vpack.c.b16 %v1082, %v1081
  %v1388 = vpack.c.b16 %v1084, %v1083
  %v1389 = vpack.c.b16 %v1086, %v1085
  %v1390 = vpack.c.b16 %v1088, %v1087
  %v1391 = vpack.c.b16 %v1090, %v1089
  %v1392 = vpack.c.b16 %v1092, %v1091
  %v1393 = vpack.c.b16 %v1094, %v1093
  %v1394 = vpack.c.b16 %v1096, %v1095
  %v1395 = vpack.c.b16 %v1098, %v1097
  %v1396 = vpack.c.b16 %v1100, %v1099
  %v1397 = vpack.c.b16 %v1102, %v1101
  %v1398 = vpack.c.b16 %v1104, %v1103
  %v1399 = vpack.c.b16 %v1106, %v1105
  %v1400 = vpack.c.b16 %v1108, %v1107
  %v1401 = vpack.c.b16 %v1110, %v1109
  %v1402 = vpack.c.b16 %v1112, %v1111
  %v1403 = vpack.c.b16 %v1114, %v1113
  %v1404 = vpack.c.b16 %v1116, %v1115
  %v1405 = vpack.c.b16 %v1118, %v1117
  %v1406 = vpack.c.b16 %v1120, %v1119
  %v1407 = vpack.c.b16 %v1122, %v1121
  %v1408 = vpack.c.b16 %v1124, %v1123
  %v1409 = vpack.c.b16 %v1126, %v1125
  %v1410 = vpack.c.b16 %v1128, %v1127
  %v1411 = vpack.c.b16 %v1130, %v1129
  %v1412 = vpack.c.b16 %v1132, %v1131
  %v1413 = vpack.c.b16 %v1134, %v1133
  %v1414 = vpack.c.b16 %v1136, %v1135
  %v1415 = vpack.c.b16 %v1138, %v1137
  %v1416 = vpack.c.b16 %v1140, %v1139
  %v1417 = vpack.c.b16 %v1142, %v1141
  %v1418 = vpack.c.b16 %v1144, %v1143
  %v1419 = vpack.c.b16 %v1146, %v1145
  %v1420 = vpack.c.b16 %v1148, %v1147
  %v1421 = vpack.c.b16 %v1150, %v1149
  %v1422 = vpack.c.b16 %v1152, %v1151
  %v1423 = vpack.c.b16 %v1154, %v1153
  %v1424 = vpack.c.b16 %v1156, %v1155
  %v1425 = vpack.c.b16 %v1158, %v1157
  %v1426 = vpack.c.b16 %v1160, %v1159
  %v1427 = vpack.c.b16 %v1162, %v1161
  %v1428 = vpack.c.b16 %v1164, %v1163
  %v1429 = vpack.c.b16 %v1166, %v1165
  %v1430 = vpack.c.b16 %v1168, %v1167
  %v1431 = vpack.c.b16 %v1170, %v1169
  %v1432 = vpack.c.b16 %v1172, %v1171
  %v1433 = vpack.c.b16 %v1174, %v1173
  %v1434 = vpack.c.b16 %v1176, %v1175
  %v1435 = vpack.c.b16 %v1178, %v1177
  %v1436 = vpack.c.b16 %v1180, %v1179
  %v1437 = vpack.c.b16 %v1182, %v1181
  %v1438 = vpack.c.b16 %v1184, %v1183
  %v1439 = vpack.c.b16 %v1186, %v1185
  %v1440 = vpack.c.b16 %v1188, %v1187
  %v1441 = vpack.c.b16 %v1190, %v1189
  %v1442 = vpack.c.b16 %v1192, %v1191
  %v1443 = vpack.c.b16 %v1194, %v1193
  %v1444 = vpack.c.b16 %v1196, %v1195
  %v1445 = vpack.c.b16 %v1198, %v1197
  %v1446 = vpack.c.b16 %v1200, %v1199
  %v1447 = vpack.c.b16 %v1202, %v1201
  %v1448 = vpack.c.b16 %v1204, %v1203
  %v1449 = vpack.c.b16 %v1206, %v1205
  %v1450 = vpack.c.b16 %v1208, %v1207
  %v1451 = vpack.c.b16 %v1210, %v1209
  %v1452 = vpack.c.b16 %v1212, %v1211
  %v1453 = vpack.c.b16 %v1214, %v1213
  %v1454 = vpack.c.b16 %v1216, %v1215
  %v1455 = vpack.c.b16 %v1218, %v1217
  %v1456 = vpack.c.b16 %v1220, %v1219
  %v1457 = vpack.c.b16 %v1222, %v1221
  %v1458 = vpack.c.b16 %v1224, %v1223
  %v1459 = vpack.c.b16 %v1226, %v1225
  %v1460 = vpack.c.b16 %v1228, %v1227
  %v1461 = vpack.c.b16 %v1230, %v1229
  %v1462 = vpack.c.b16 %v1232, %v1231
  %v1463 = vpack.c.b16 %v1234, %v1233
  %v1464 = vpack.c.b16 %v1236, %v1235
  %v1465 = vpack.c.b16 %v1238, %v1237
  %v1466 = vpack.c.b16 %v1240, %v1239
  %v1467 = vpack.c.b16 %v1242, %v1241
  %v1468 = vpack.c.b16 %v1244, %v1243
  %v1469 = vpack.c.b16 %v1246, %v1245
  %v1470 = vpack.c.b16 %v1248, %v1247
  %v1471 = vpack.c.b16 %v1250, %v1249
  %v1472 = vpack.c.b16 %v1252, %v1251
  %v1473 = vpack.c.b16 %v1254, %v1253
  %v1474 = vpack.c.b16 %v1256, %v1255
  %v1475 = vpack.c.b16 %v1258, %v1257
  %v1476 = vpack.c.b16 %v1260, %v1259
  %v1477 = vpack.c.b16 %v1262, %v1261
  %v1478 = vpack.c.b16 %v1264, %v1263
  %v1479 = vpack.c.b16 %v1266, %v1265
  %v1480 = vpack.c.b16 %v1268, %v1267
  %v1481 = vpack.c.b16 %v1270, %v1269
  %v1482 = vpack.c.b16 %v1272, %v1271
  %v1483 = vpack.c.b16 %v1274, %v1273
  %v1484 = vpack.c.b16 %v1276, %v1275
  %v1485 = vpack.c.b16 %v1278, %v1277
  %v1486 = vpack.c.b16 %v1280, %v1279
  %v1487 = vpack.c.b16 %v1282, %v1281
  %v1488 = vpack.c.b16 %v1284, %v1283
  %v1489 = vpack.c.b16 %v1286, %v1285
  %v1490 = vpack.c.b16 %v1288, %v1287
  %v1491 = vpack.c.b16 %v1290, %v1289
  %v1492 = vpack.c.b16 %v1292, %v1291
  %v1493 = vpack.c.b16 %v1294, %v1293
  %v1494 = vpack.c.b16 %v1296, %v1295
  %v1495 = vpack.c.b16 %v1298, %v1297
  %v1496 = vpack.c.b16 %v1300, %v1299
  %vm1693 = vcmask 523264
  %v1695 = vsel %vm1693, %v492, 0
  %1697 = vmatpush.bf16.msra.mxu0 %v1308
  %1698 = vmatpush.bf16.msra.mxu0 %v1307
  %1699 = vmatpush.bf16.msra.mxu0 %v1306
  %1700 = vmatpush.bf16.msra.mxu0 %v1305
  %1701 = vmatpush.bf16.msra.mxu0 %v1304
  %1702 = vmatpush.bf16.msra.mxu0 %v1303
  %1703 = vmatpush.bf16.msra.mxu0 %v1302
  %1704 = vmatpush.bf16.msra.mxu0 %v1301
  %1705 = vmatmul.bf16.gmra.mxu0 %v468
  %v1706 = vpop.f32.mrf.mxu0
  %v1707 = vadd.f32 %v428, %v1706
  %v1708 = vpop.f32.mrf.mxu0
  %1709 = vdwg.mxu0
  %1710 = vmatpush.bf16.msra.mxu0 %v1316
  %1711 = vmatpush.bf16.msra.mxu0 %v1315
  %1712 = vmatpush.bf16.msra.mxu0 %v1314
  %1713 = vmatpush.bf16.msra.mxu0 %v1313
  %1714 = vmatpush.bf16.msra.mxu0 %v1312
  %1715 = vmatpush.bf16.msra.mxu0 %v1311
  %1716 = vmatpush.bf16.msra.mxu0 %v1310
  %1717 = vmatpush.bf16.msra.mxu0 %v1309
  %1718 = vmatmul.bf16.gmra.mxu0 %v469
  %v1719 = vpop.f32.mrf.mxu0
  %v1720 = vadd.f32 %v1707, %v1719
  %v1721 = vpop.f32.mrf.mxu0
  %1722 = vdwg.mxu0
  %1723 = vmatpush.bf16.msra.mxu0 %v1324
  %1724 = vmatpush.bf16.msra.mxu0 %v1323
  %1725 = vmatpush.bf16.msra.mxu0 %v1322
  %1726 = vmatpush.bf16.msra.mxu0 %v1321
  %1727 = vmatpush.bf16.msra.mxu0 %v1320
  %1728 = vmatpush.bf16.msra.mxu0 %v1319
  %1729 = vmatpush.bf16.msra.mxu0 %v1318
  %1730 = vmatpush.bf16.msra.mxu0 %v1317
  %1731 = vmatmul.bf16.gmra.mxu0 %v470
  %v1732 = vpop.f32.mrf.mxu0
  %v1733 = vadd.f32 %v1720, %v1732
  %v1734 = vpop.f32.mrf.mxu0
  %1735 = vdwg.mxu0
  %1736 = vmatpush.bf16.msra.mxu0 %v1332
  %1737 = vmatpush.bf16.msra.mxu0 %v1331
  %1738 = vmatpush.bf16.msra.mxu0 %v1330
  %1739 = vmatpush.bf16.msra.mxu0 %v1329
  %1740 = vmatpush.bf16.msra.mxu0 %v1328
  %1741 = vmatpush.bf16.msra.mxu0 %v1327
  %1742 = vmatpush.bf16.msra.mxu0 %v1326
  %1743 = vmatpush.bf16.msra.mxu0 %v1325
  %1744 = vmatmul.bf16.gmra.mxu0 %v471
  %v1745 = vpop.f32.mrf.mxu0
  %v1746 = vadd.f32 %v1733, %v1745
  %v1747 = vpop.f32.mrf.mxu0
  %1748 = vdwg.mxu0
  %1749 = vmatpush.bf16.msra.mxu0 %v1340
  %1750 = vmatpush.bf16.msra.mxu0 %v1339
  %1751 = vmatpush.bf16.msra.mxu0 %v1338
  %1752 = vmatpush.bf16.msra.mxu0 %v1337
  %1753 = vmatpush.bf16.msra.mxu0 %v1336
  %1754 = vmatpush.bf16.msra.mxu0 %v1335
  %1755 = vmatpush.bf16.msra.mxu0 %v1334
  %1756 = vmatpush.bf16.msra.mxu0 %v1333
  %1757 = vmatmul.bf16.gmra.mxu0 %v472
  %v1758 = vpop.f32.mrf.mxu0
  %v1759 = vadd.f32 %v1746, %v1758
  %v1760 = vpop.f32.mrf.mxu0
  %1761 = vdwg.mxu0
  %1762 = vmatpush.bf16.msra.mxu0 %v1348
  %1763 = vmatpush.bf16.msra.mxu0 %v1347
  %1764 = vmatpush.bf16.msra.mxu0 %v1346
  %1765 = vmatpush.bf16.msra.mxu0 %v1345
  %1766 = vmatpush.bf16.msra.mxu0 %v1344
  %1767 = vmatpush.bf16.msra.mxu0 %v1343
  %1768 = vmatpush.bf16.msra.mxu0 %v1342
  %1769 = vmatpush.bf16.msra.mxu0 %v1341
  %1770 = vmatmul.bf16.gmra.mxu0 %v473
  %v1771 = vpop.f32.mrf.mxu0
  %v1772 = vadd.f32 %v1759, %v1771
  %v1773 = vpop.f32.mrf.mxu0
  %1774 = vdwg.mxu0
  %1775 = vmatpush.bf16.msra.mxu0 %v1356
  %1776 = vmatpush.bf16.msra.mxu0 %v1355
  %1777 = vmatpush.bf16.msra.mxu0 %v1354
  %1778 = vmatpush.bf16.msra.mxu0 %v1353
  %1779 = vmatpush.bf16.msra.mxu0 %v1352
  %1780 = vmatpush.bf16.msra.mxu0 %v1351
  %1781 = vmatpush.bf16.msra.mxu0 %v1350
  %1782 = vmatpush.bf16.msra.mxu0 %v1349
  %1783 = vmatmul.bf16.gmra.mxu0 %v474
  %v1784 = vpop.f32.mrf.mxu0
  %v1785 = vadd.f32 %v1772, %v1784
  %v1786 = vpop.f32.mrf.mxu0
  %1787 = vdwg.mxu0
  %1788 = vmatpush.bf16.msra.mxu0 %v1364
  %1789 = vmatpush.bf16.msra.mxu0 %v1363
  %1790 = vmatpush.bf16.msra.mxu0 %v1362
  %1791 = vmatpush.bf16.msra.mxu0 %v1361
  %1792 = vmatpush.bf16.msra.mxu0 %v1360
  %1793 = vmatpush.bf16.msra.mxu0 %v1359
  %1794 = vmatpush.bf16.msra.mxu0 %v1358
  %1795 = vmatpush.bf16.msra.mxu0 %v1357
  %1796 = vmatmul.bf16.gmra.mxu0 %v475
  %v1797 = vpop.f32.mrf.mxu0
  %v1798 = vadd.f32 %v1785, %v1797
  %v1799 = vpop.f32.mrf.mxu0
  %1800 = vdwg.mxu0
  %1801 = vmatpush.bf16.msra.mxu0 %v1372
  %1802 = vmatpush.bf16.msra.mxu0 %v1371
  %1803 = vmatpush.bf16.msra.mxu0 %v1370
  %1804 = vmatpush.bf16.msra.mxu0 %v1369
  %1805 = vmatpush.bf16.msra.mxu0 %v1368
  %1806 = vmatpush.bf16.msra.mxu0 %v1367
  %1807 = vmatpush.bf16.msra.mxu0 %v1366
  %1808 = vmatpush.bf16.msra.mxu0 %v1365
  %1809 = vmatmul.bf16.gmra.mxu0 %v476
  %v1810 = vpop.f32.mrf.mxu0
  %v1811 = vadd.f32 %v1798, %v1810
  %v1812 = vpop.f32.mrf.mxu0
  %1813 = vdwg.mxu0
  %1814 = vmatpush.bf16.msra.mxu0 %v1380
  %1815 = vmatpush.bf16.msra.mxu0 %v1379
  %1816 = vmatpush.bf16.msra.mxu0 %v1378
  %1817 = vmatpush.bf16.msra.mxu0 %v1377
  %1818 = vmatpush.bf16.msra.mxu0 %v1376
  %1819 = vmatpush.bf16.msra.mxu0 %v1375
  %1820 = vmatpush.bf16.msra.mxu0 %v1374
  %1821 = vmatpush.bf16.msra.mxu0 %v1373
  %1822 = vmatmul.bf16.gmra.mxu0 %v477
  %v1823 = vpop.f32.mrf.mxu0
  %v1824 = vadd.f32 %v1811, %v1823
  %v1825 = vpop.f32.mrf.mxu0
  %1826 = vdwg.mxu0
  %1827 = vmatpush.bf16.msra.mxu0 %v1388
  %1828 = vmatpush.bf16.msra.mxu0 %v1387
  %1829 = vmatpush.bf16.msra.mxu0 %v1386
  %1830 = vmatpush.bf16.msra.mxu0 %v1385
  %1831 = vmatpush.bf16.msra.mxu0 %v1384
  %1832 = vmatpush.bf16.msra.mxu0 %v1383
  %1833 = vmatpush.bf16.msra.mxu0 %v1382
  %1834 = vmatpush.bf16.msra.mxu0 %v1381
  %1835 = vmatmul.bf16.gmra.mxu0 %v478
  %v1836 = vpop.f32.mrf.mxu0
  %v1837 = vadd.f32 %v1824, %v1836
  %v1838 = vpop.f32.mrf.mxu0
  %1839 = vdwg.mxu0
  %1840 = vmatpush.bf16.msra.mxu0 %v1396
  %1841 = vmatpush.bf16.msra.mxu0 %v1395
  %1842 = vmatpush.bf16.msra.mxu0 %v1394
  %1843 = vmatpush.bf16.msra.mxu0 %v1393
  %1844 = vmatpush.bf16.msra.mxu0 %v1392
  %1845 = vmatpush.bf16.msra.mxu0 %v1391
  %1846 = vmatpush.bf16.msra.mxu0 %v1390
  %1847 = vmatpush.bf16.msra.mxu0 %v1389
  %1848 = vmatmul.bf16.gmra.mxu0 %v479
  %v1849 = vpop.f32.mrf.mxu0
  %v1850 = vadd.f32 %v1837, %v1849
  %v1851 = vpop.f32.mrf.mxu0
  %1852 = vdwg.mxu0
  %1853 = vmatpush.bf16.msra.mxu0 %v1404
  %1854 = vmatpush.bf16.msra.mxu0 %v1403
  %1855 = vmatpush.bf16.msra.mxu0 %v1402
  %1856 = vmatpush.bf16.msra.mxu0 %v1401
  %1857 = vmatpush.bf16.msra.mxu0 %v1400
  %1858 = vmatpush.bf16.msra.mxu0 %v1399
  %1859 = vmatpush.bf16.msra.mxu0 %v1398
  %1860 = vmatpush.bf16.msra.mxu0 %v1397
  %1861 = vmatmul.bf16.gmra.mxu0 %v480
  %v1862 = vpop.f32.mrf.mxu0
  %v1863 = vadd.f32 %v1850, %v1862
  %v1864 = vpop.f32.mrf.mxu0
  %1865 = vdwg.mxu0
  %1866 = vmatpush.bf16.msra.mxu0 %v1412
  %1867 = vmatpush.bf16.msra.mxu0 %v1411
  %1868 = vmatpush.bf16.msra.mxu0 %v1410
  %1869 = vmatpush.bf16.msra.mxu0 %v1409
  %1870 = vmatpush.bf16.msra.mxu0 %v1408
  %1871 = vmatpush.bf16.msra.mxu0 %v1407
  %1872 = vmatpush.bf16.msra.mxu0 %v1406
  %1873 = vmatpush.bf16.msra.mxu0 %v1405
  %1874 = vmatmul.bf16.gmra.mxu0 %v481
  %v1875 = vpop.f32.mrf.mxu0
  %v1876 = vadd.f32 %v1863, %v1875
  %v1877 = vpop.f32.mrf.mxu0
  %1878 = vdwg.mxu0
  %1879 = vmatpush.bf16.msra.mxu0 %v1420
  %1880 = vmatpush.bf16.msra.mxu0 %v1419
  %1881 = vmatpush.bf16.msra.mxu0 %v1418
  %1882 = vmatpush.bf16.msra.mxu0 %v1417
  %1883 = vmatpush.bf16.msra.mxu0 %v1416
  %1884 = vmatpush.bf16.msra.mxu0 %v1415
  %1885 = vmatpush.bf16.msra.mxu0 %v1414
  %1886 = vmatpush.bf16.msra.mxu0 %v1413
  %1887 = vmatmul.bf16.gmra.mxu0 %v482
  %v1888 = vpop.f32.mrf.mxu0
  %v1889 = vadd.f32 %v1876, %v1888
  %v1890 = vpop.f32.mrf.mxu0
  %1891 = vdwg.mxu0
  %1892 = vmatpush.bf16.msra.mxu0 %v1428
  %1893 = vmatpush.bf16.msra.mxu0 %v1427
  %1894 = vmatpush.bf16.msra.mxu0 %v1426
  %1895 = vmatpush.bf16.msra.mxu0 %v1425
  %1896 = vmatpush.bf16.msra.mxu0 %v1424
  %1897 = vmatpush.bf16.msra.mxu0 %v1423
  %1898 = vmatpush.bf16.msra.mxu0 %v1422
  %1899 = vmatpush.bf16.msra.mxu0 %v1421
  %1900 = vmatmul.bf16.gmra.mxu0 %v483
  %v1901 = vpop.f32.mrf.mxu0
  %v1902 = vadd.f32 %v1889, %v1901
  %v1903 = vpop.f32.mrf.mxu0
  %1904 = vdwg.mxu0
  %1905 = vmatpush.bf16.msra.mxu0 %v1436
  %1906 = vmatpush.bf16.msra.mxu0 %v1435
  %1907 = vmatpush.bf16.msra.mxu0 %v1434
  %1908 = vmatpush.bf16.msra.mxu0 %v1433
  %1909 = vmatpush.bf16.msra.mxu0 %v1432
  %1910 = vmatpush.bf16.msra.mxu0 %v1431
  %1911 = vmatpush.bf16.msra.mxu0 %v1430
  %1912 = vmatpush.bf16.msra.mxu0 %v1429
  %1913 = vmatmul.bf16.gmra.mxu0 %v484
  %v1914 = vpop.f32.mrf.mxu0
  %v1915 = vadd.f32 %v1902, %v1914
  %v1916 = vpop.f32.mrf.mxu0
  %1917 = vdwg.mxu0
  %1918 = vmatpush.bf16.msra.mxu0 %v1444
  %1919 = vmatpush.bf16.msra.mxu0 %v1443
  %1920 = vmatpush.bf16.msra.mxu0 %v1442
  %1921 = vmatpush.bf16.msra.mxu0 %v1441
  %1922 = vmatpush.bf16.msra.mxu0 %v1440
  %1923 = vmatpush.bf16.msra.mxu0 %v1439
  %1924 = vmatpush.bf16.msra.mxu0 %v1438
  %1925 = vmatpush.bf16.msra.mxu0 %v1437
  %1926 = vmatmul.bf16.gmra.mxu0 %v485
  %v1927 = vpop.f32.mrf.mxu0
  %v1928 = vadd.f32 %v1915, %v1927
  %v1929 = vpop.f32.mrf.mxu0
  %1930 = vdwg.mxu0
  %1931 = vmatpush.bf16.msra.mxu0 %v1452
  %1932 = vmatpush.bf16.msra.mxu0 %v1451
  %1933 = vmatpush.bf16.msra.mxu0 %v1450
  %1934 = vmatpush.bf16.msra.mxu0 %v1449
  %1935 = vmatpush.bf16.msra.mxu0 %v1448
  %1936 = vmatpush.bf16.msra.mxu0 %v1447
  %1937 = vmatpush.bf16.msra.mxu0 %v1446
  %1938 = vmatpush.bf16.msra.mxu0 %v1445
  %1939 = vmatmul.bf16.gmra.mxu0 %v486
  %v1940 = vpop.f32.mrf.mxu0
  %v1941 = vadd.f32 %v1928, %v1940
  %v1942 = vpop.f32.mrf.mxu0
  %1943 = vdwg.mxu0
  %1944 = vmatpush.bf16.msra.mxu0 %v1460
  %1945 = vmatpush.bf16.msra.mxu0 %v1459
  %1946 = vmatpush.bf16.msra.mxu0 %v1458
  %1947 = vmatpush.bf16.msra.mxu0 %v1457
  %1948 = vmatpush.bf16.msra.mxu0 %v1456
  %1949 = vmatpush.bf16.msra.mxu0 %v1455
  %1950 = vmatpush.bf16.msra.mxu0 %v1454
  %1951 = vmatpush.bf16.msra.mxu0 %v1453
  %1952 = vmatmul.bf16.gmra.mxu0 %v487
  %v1953 = vpop.f32.mrf.mxu0
  %v1954 = vadd.f32 %v1941, %v1953
  %v1955 = vpop.f32.mrf.mxu0
  %1956 = vdwg.mxu0
  %1957 = vmatpush.bf16.msra.mxu0 %v1468
  %1958 = vmatpush.bf16.msra.mxu0 %v1467
  %1959 = vmatpush.bf16.msra.mxu0 %v1466
  %1960 = vmatpush.bf16.msra.mxu0 %v1465
  %1961 = vmatpush.bf16.msra.mxu0 %v1464
  %1962 = vmatpush.bf16.msra.mxu0 %v1463
  %1963 = vmatpush.bf16.msra.mxu0 %v1462
  %1964 = vmatpush.bf16.msra.mxu0 %v1461
  %1965 = vmatmul.bf16.gmra.mxu0 %v488
  %v1966 = vpop.f32.mrf.mxu0
  %v1967 = vadd.f32 %v1954, %v1966
  %v1968 = vpop.f32.mrf.mxu0
  %1969 = vdwg.mxu0
  %1970 = vmatpush.bf16.msra.mxu0 %v1476
  %1971 = vmatpush.bf16.msra.mxu0 %v1475
  %1972 = vmatpush.bf16.msra.mxu0 %v1474
  %1973 = vmatpush.bf16.msra.mxu0 %v1473
  %1974 = vmatpush.bf16.msra.mxu0 %v1472
  %1975 = vmatpush.bf16.msra.mxu0 %v1471
  %1976 = vmatpush.bf16.msra.mxu0 %v1470
  %1977 = vmatpush.bf16.msra.mxu0 %v1469
  %1978 = vmatmul.bf16.gmra.mxu0 %v489
  %v1979 = vpop.f32.mrf.mxu0
  %v1980 = vadd.f32 %v1967, %v1979
  %v1981 = vpop.f32.mrf.mxu0
  %1982 = vdwg.mxu0
  %1983 = vmatpush.bf16.msra.mxu0 %v1484
  %1984 = vmatpush.bf16.msra.mxu0 %v1483
  %1985 = vmatpush.bf16.msra.mxu0 %v1482
  %1986 = vmatpush.bf16.msra.mxu0 %v1481
  %1987 = vmatpush.bf16.msra.mxu0 %v1480
  %1988 = vmatpush.bf16.msra.mxu0 %v1479
  %1989 = vmatpush.bf16.msra.mxu0 %v1478
  %1990 = vmatpush.bf16.msra.mxu0 %v1477
  %1991 = vmatmul.bf16.gmra.mxu0 %v490
  %v1992 = vpop.f32.mrf.mxu0
  %v1993 = vadd.f32 %v1980, %v1992
  %v1994 = vpop.f32.mrf.mxu0
  %1995 = vdwg.mxu0
  %1996 = vmatpush.bf16.msra.mxu0 %v1492
  %1997 = vmatpush.bf16.msra.mxu0 %v1491
  %1998 = vmatpush.bf16.msra.mxu0 %v1490
  %1999 = vmatpush.bf16.msra.mxu0 %v1489
  %2000 = vmatpush.bf16.msra.mxu0 %v1488
  %2001 = vmatpush.bf16.msra.mxu0 %v1487
  %2002 = vmatpush.bf16.msra.mxu0 %v1486
  %2003 = vmatpush.bf16.msra.mxu0 %v1485
  %2004 = vmatmul.bf16.gmra.mxu0 %v491
  %v2005 = vpop.f32.mrf.mxu0
  %v2006 = vadd.f32 %v1993, %v2005
  %v2007 = vpop.f32.mrf.mxu0
  %2008 = vdwg.mxu0
  %2009 = vmatpush.bf16.msra.mxu0 0
  %2010 = vmatpush.bf16.msra.mxu0 0
  %2011 = vmatpush.bf16.msra.mxu0 0
  %2012 = vmatpush.bf16.msra.mxu0 0
  %2013 = vmatpush.bf16.msra.mxu0 %v1496
  %2014 = vmatpush.bf16.msra.mxu0 %v1495
  %2015 = vmatpush.bf16.msra.mxu0 %v1494
  %2016 = vmatpush.bf16.msra.mxu0 %v1493
  %2017 = vmatmul.bf16.gmra.mxu0 %v1695
  %v2018 = vpop.f32.mrf.mxu0
  %v2019 = vadd.f32 %v2006, %v2018
  %v2020 = vpop.f32.mrf.mxu0
  %2021 = vdwg.mxu0
  %v2022 = vmax.f32 %v2019, 0.0
  %v2023 = vpack.c.bf16 %v2022, %v2022
  %v2024 = vld [vmem:[%s3] sm:$0xf]
  %v2025 = vld [vmem:[%s3 + $0x4] sm:$0xf]
  %v2026 = vld [vmem:[%s3 + $0x8] sm:$0xf]
  %v2027 = vld [vmem:[%s3 + $0xc] sm:$0xf]
  %v2028 = vld [vmem:[%s3 + $0x10] sm:$0xf]
  %v2029 = vld [vmem:[%s3 + $0x14] sm:$0xf]
  %v2030 = vld [vmem:[%s3 + $0x18] sm:$0xf]
  %v2031 = vld [vmem:[%s3 + $0x1c] sm:$0xf]
  %v2032 = vld [vmem:[%s3 + $0x20] sm:$0xf]
  %v2033 = vld [vmem:[%s3 + $0x24] sm:$0xf]
  %v2034 = vld [vmem:[%s3 + $0x28] sm:$0xf]
  %v2035 = vld [vmem:[%s3 + $0x2c] sm:$0xf]
  %v2036 = vld [vmem:[%s3 + $0x30] sm:$0xf]
  %v2037 = vld [vmem:[%s3 + $0x34] sm:$0xf]
  %v2038 = vld [vmem:[%s3 + $0x38] sm:$0xf]
  %v2039 = vld [vmem:[%s3 + $0x3c] sm:$0xf]
  %v2040 = vld [vmem:[%s4] sm:$0x1]
  %v2042 = vperm.slane %v2040, 0
  %v2060 = vunpack.c.l.b16 %v2024
  %v2061 = vunpack.c.l.b16 %v2025
  %v2062 = vunpack.c.l.b16 %v2026
  %v2063 = vunpack.c.l.b16 %v2027
  %v2064 = vunpack.c.l.b16 %v2028
  %v2065 = vunpack.c.l.b16 %v2029
  %v2066 = vunpack.c.l.b16 %v2030
  %v2067 = vunpack.c.l.b16 %v2031
  %v2068 = vunpack.c.l.b16 %v2032
  %v2069 = vunpack.c.l.b16 %v2033
  %v2070 = vunpack.c.l.b16 %v2034
  %v2071 = vunpack.c.l.b16 %v2035
  %v2072 = vunpack.c.l.b16 %v2036
  %v2073 = vunpack.c.l.b16 %v2037
  %v2074 = vunpack.c.l.b16 %v2038
  %v2075 = vunpack.c.l.b16 %v2039
  %v2076 = vpack.c.b16 %v2061, %v2060
  %v2077 = vpack.c.b16 %v2063, %v2062
  %v2078 = vpack.c.b16 %v2065, %v2064
  %v2079 = vpack.c.b16 %v2067, %v2066
  %v2080 = vpack.c.b16 %v2069, %v2068
  %v2081 = vpack.c.b16 %v2071, %v2070
  %v2082 = vpack.c.b16 %v2073, %v2072
  %v2083 = vpack.c.b16 %v2075, %v2074
  %2092 = vmatpush.bf16.msra.mxu0 %v2083
  %2093 = vmatpush.bf16.msra.mxu0 %v2082
  %2094 = vmatpush.bf16.msra.mxu0 %v2081
  %2095 = vmatpush.bf16.msra.mxu0 %v2080
  %2096 = vmatpush.bf16.msra.mxu0 %v2079
  %2097 = vmatpush.bf16.msra.mxu0 %v2078
  %2098 = vmatpush.bf16.msra.mxu0 %v2077
  %2099 = vmatpush.bf16.msra.mxu0 %v2076
  %2100 = vmatmul.bf16.gmra.mxu0 %v2023
  %v2101 = vpop.f32.mrf.mxu0
  %v2102 = vadd.f32 %v2042, %v2101
  %v2103 = vpop.f32.mrf.mxu0
  %2104 = vdwg.mxu0
  %vm2105 = vcmask 80896
  %2106 = vst.msk [vmem:[%s5] sm:$0xff] %vm2105, %v2102
  // Predicated region
  $region22: #{simple_cnn_forward.5} parent=0 // pred_check
    _
  $region23: #{simple_cnn_forward.5} parent=0 // pred_check_branch
    %2108 = sbr.rel (0) target = $region25
  $region24: #{simple_cnn_forward.5} parent=0 // pred_region
    _
  $region25: #{simple_cnn_forward.5} parent=0 // pred_fallthru
    _
  // Predicated region
  $region26: #{simple_cnn_forward.5} parent=0 // pred_check
    _
  $region27: #{simple_cnn_forward.5} parent=0 // pred_check_branch
    %2110 = sbr.rel (0) target = $region29
  $region28: #{simple_cnn_forward.5} parent=0 // pred_region
    _
  $region29: #{simple_cnn_forward.5} parent=0 // pred_fallthru
    _

</llo_original>
